<compile_context>
chip_gen: v6e
topology: v6e:2x2x1
jax: 0.10.0
libtpu: 0.0.40
codegen_flags: <defaults>
</compile_context>

<pallas_src>
import math

import jax
import jax.numpy as jnp
from jax.experimental import pallas as pl
from jax.experimental.pallas import tpu as pltpu

# ----- model constants (from the PyTorch module) -----
d_k = d_v = 64
d_model = 512
n_heads = 8
LN_EPS = 1e-5


# =========================== Pallas kernel ===========================

def mha_ln_kernel(xq_ref, xk_ref, xv_ref, mask_ref, wqkv_ref, wo_ref,
                  out_ref, attn_ref):
    """One (batch, q-tile) step: MHA + output projection + residual + LayerNorm.

    xq_ref   : (1, tq, D)        f32   query rows (also the residual)
    xk_ref   : (1, Lk, D)        f32
    xv_ref   : (1, Lk, D)        f32
    mask_ref : (1, tq, Lk)       int8  nonzero == masked out
    wqkv_ref : (3, D, H*d_k)     bf16  stacked Wq/Wk/Wv; Wq pre-scaled by 1/sqrt(d_k)
    wo_ref   : (H*d_v, D)        bf16  output projection
    out_ref  : (1, tq, D)        f32
    attn_ref : (1, H, tq, Lk)    f32   written directly in final (B,H,Lq,Lk) layout
    """
    tq = xq_ref.shape[1]
    Lk = xk_ref.shape[1]

    xq_f32 = xq_ref[0]                                   # (tq, D) residual, f32
    xq = xq_f32.astype(jnp.bfloat16)
    xk = xk_ref[0].astype(jnp.bfloat16)
    xv = xv_ref[0].astype(jnp.bfloat16)

    # ---- fused, lane-dense projections: (rows, 512) @ (512, 512), f32 MXU acc ----
    q = jnp.dot(xq, wqkv_ref[0], preferred_element_type=jnp.float32)   # (tq, H*dk)
    k = jnp.dot(xk, wqkv_ref[1], preferred_element_type=jnp.float32)   # (Lk, H*dk)
    v = jnp.dot(xv, wqkv_ref[2], preferred_element_type=jnp.float32)   # (Lk, H*dv)

    # ---- head-batched attention core (heads = leading batch dim) ----
    qh = pltpu.einshape("qhd->hqd", q.reshape(tq, n_heads, d_k)).astype(jnp.bfloat16)
    kh = pltpu.einshape("khd->hkd", k.reshape(Lk, n_heads, d_k)).astype(jnp.bfloat16)
    vh = pltpu.einshape("khd->hkd", v.reshape(Lk, n_heads, d_v)).astype(jnp.bfloat16)

    # scores (1/sqrt(d_k) already folded into Wq)
    s = jnp.einsum('hqd,hkd->hqk', qh, kh,
                   preferred_element_type=jnp.float32)                 # (H, tq, Lk)

    # masked_fill_(attn_mask, -1e9): exact PyTorch semantics (fully-masked rows
    # become uniform after softmax, same as torch)
    masked = (mask_ref[0] != 0)[None, :, :]                            # (1, tq, Lk)
    s = jnp.where(masked, jnp.float32(-1e9), s)

    # softmax over keys — EXACT reciprocal because `attn` is a module output
    s = s - jnp.max(s, axis=-1, keepdims=True)
    e = jnp.exp(s)
    a = e / jnp.sum(e, axis=-1, keepdims=True)                         # (H, tq, Lk)
    attn_ref[0] = a.astype(attn_ref.dtype)

    # attention-weighted values, heads still batched
    ctx = jnp.einsum('hqk,hkd->hqd', a.astype(jnp.bfloat16), vh,
                     preferred_element_type=jnp.float32)               # (H, tq, dv)

    # ---- fused output projection: one (tq, 512) @ (512, 512) matmul ----
    ctx_qhd = pltpu.einshape("hqd->qhd", ctx).reshape(tq, n_heads * d_v)
    o = jnp.dot(ctx_qhd.astype(jnp.bfloat16), wo_ref[...],
                preferred_element_type=jnp.float32)                    # (tq, D)

    # ---- residual + LayerNorm (fresh nn.LayerNorm -> gamma=1, beta=0) ----
    y = o + xq_f32
    mu = jnp.mean(y, axis=-1, keepdims=True)
    var = jnp.mean(jnp.square(y - mu), axis=-1, keepdims=True)
    out_ref[0] = ((y - mu) * jax.lax.rsqrt(var + LN_EPS)).astype(out_ref.dtype)


# =========================== wrappers ===========================

def pack_params(wq, wk, wv, wo):
    """One-time repack to bf16 MXU-friendly slabs.

    wq/wk/wv: (d_model, n_heads*d_k) laid out for x @ W (== torch Linear weight.T)
    wo:       (n_heads*d_v, d_model)
    1/sqrt(d_k) is folded into Wq so the kernel never scales scores.
    """
    assert n_heads * d_k == d_model and n_heads * d_v == d_model
    inv_sqrt_dk = 1.0 / math.sqrt(d_k)
    w_qkv = jnp.stack([wq * inv_sqrt_dk, wk, wv]).astype(jnp.bfloat16)  # (3, D, H*dk)
    w_o = wo.astype(jnp.bfloat16)                                       # (H*dv, D)
    return w_qkv, w_o


@jax.jit
def multi_head_attention(input_Q, input_K, input_V, attn_mask, w_qkv, w_o):
    """input_Q: (B, Lq, D); input_K/input_V: (B, Lk, D); attn_mask: (B, Lq, Lk) bool.
    Returns (LayerNorm(fc(context) + input_Q), attn[B, H, Lq, Lk])."""
    B, Lq, D = input_Q.shape
    Lk = input_K.shape[1]

    # q-row tiling: one tile at small Lq; multiple pipelined tiles at larger Lq.
    tq = Lq if Lq <= 512 else 512
    assert Lq % tq == 0, "len_q must be a multiple of the q-tile size"
    nq = Lq // tq

    # 1-byte mask: 4x less mask DMA than a precomputed f32 bias, applied in-kernel.
    mask_i8 = attn_mask.astype(jnp.int8)

    # TODO(synk): for very long Lk (v7x 64 MiB VMEM) add flash-style Lk tiling with
    # online softmax; full-Lk-per-step is fine at these sizes.
    out, attn = pl.pallas_call(
        mha_ln_kernel,
        grid=(B, nq),
        in_specs=[
            pl.BlockSpec((1, tq, D), lambda b, qi: (b, qi, 0)),
            pl.BlockSpec((1, Lk, D), lambda b, qi: (b, 0, 0)),
            pl.BlockSpec((1, Lk, D), lambda b, qi: (b, 0, 0)),
            pl.BlockSpec((1, tq, Lk), lambda b, qi: (b, qi, 0)),
            # weights: constant index_map -> fetched once, resident across all steps
            pl.BlockSpec((3, D, n_heads * d_k), lambda b, qi: (0, 0, 0)),
            pl.BlockSpec((n_heads * d_v, D), lambda b, qi: (0, 0)),
        ],
        out_specs=(
            pl.BlockSpec((1, tq, D), lambda b, qi: (b, qi, 0)),
            # attn stored directly in (B, H, Lq, Lk) order (no external transpose);
            # last dim becomes lane-dense automatically once Lk >= 128.
            pl.BlockSpec((1, n_heads, tq, Lk), lambda b, qi: (b, 0, qi, 0)),
        ),
        out_shape=(
            jax.ShapeDtypeStruct((B, Lq, D), jnp.float32),
            jax.ShapeDtypeStruct((B, n_heads, Lq, Lk), jnp.float32),
        ),
        compiler_params=pltpu.CompilerParams(
            dimension_semantics=("parallel", "parallel")),
    )(input_Q.astype(jnp.float32), input_K.astype(jnp.float32),
      input_V.astype(jnp.float32), mask_i8, w_qkv, w_o)

    return out, attn


# =========================== main ===========================

if __name__ == "__main__":
    key = jax.random.PRNGKey(0)
    kq, kk, kv, kwq, kwk, kwv, kwo = jax.random.split(key, 7)

    B, len_q, len_k = 2, 8, 8

    input_Q = jax.random.normal(kq, (B, len_q, d_model), jnp.float32)
    input_K = jax.random.normal(kk, (B, len_k, d_model), jnp.float32)
    input_V = jax.random.normal(kv, (B, len_k, d_model), jnp.float32)

    # causal (subsequent) mask, True == masked out
    causal = jnp.triu(jnp.ones((len_q, len_k), jnp.float32), k=1) > 0
    attn_mask = jnp.broadcast_to(causal[None, :, :], (B, len_q, len_k))

    # weights stored as (in, out) so the kernel computes x @ W  (== torch x @ W.T)
    wq = jax.random.normal(kwq, (d_model, n_heads * d_k), jnp.float32) * 0.02
    wk = jax.random.normal(kwk, (d_model, n_heads * d_k), jnp.float32) * 0.02
    wv = jax.random.normal(kwv, (d_model, n_heads * d_v), jnp.float32) * 0.02
    wo = jax.random.normal(kwo, (n_heads * d_v, d_model), jnp.float32) * 0.02

    w_qkv, w_o = pack_params(wq, wk, wv, wo)

    out, attn = multi_head_attention(input_Q, input_K, input_V, attn_mask, w_qkv, w_o)
    jax.block_until_ready((out, attn))

    assert out.shape == (B, len_q, d_model)
    assert attn.shape == (B, n_heads, len_q, len_k)
    assert bool(jnp.all(jnp.isfinite(out)))
    assert bool(jnp.all(jnp.isfinite(attn)))
    # softmax rows sum to 1 (exact reciprocal used for the returned probabilities)
    assert bool(jnp.allclose(jnp.sum(attn, axis=-1), 1.0, atol=1e-5))
    print("KERNEL_OK")
</pallas_src>

<mosaic_0001>
module attributes {stable_mosaic.version = 11 : i64} {
  func.func @mha_ln_kernel(%arg0: i32, %arg1: i32, %arg2: memref<1x8x512xf32, #tpu.memory_space<vmem>>, %arg3: memref<1x8x512xf32, #tpu.memory_space<vmem>>, %arg4: memref<1x8x512xf32, #tpu.memory_space<vmem>>, %arg5: memref<1x8x8xi8, #tpu.memory_space<vmem>>, %arg6: memref<3x512x512xbf16, #tpu.memory_space<vmem>>, %arg7: memref<512x512xbf16, #tpu.memory_space<vmem>>, %arg8: memref<1x8x512xf32, #tpu.memory_space<vmem>>, %arg9: memref<1x8x8x8xf32, #tpu.memory_space<vmem>>) attributes {dimension_semantics = [#tpu.dimension_semantics<parallel>, #tpu.dimension_semantics<parallel>], iteration_bounds = array<i64: 2, 1>, scalar_prefetch = 0 : i64, scratch_operands = 0 : i64, tpu.core_type = #tpu.core_type<tc>, window_params = [{transform_indices = @transform_0, window_bounds = array<i64: 1, 8, 512>}, {transform_indices = @transform_1, window_bounds = array<i64: 1, 8, 512>}, {transform_indices = @transform_2, window_bounds = array<i64: 1, 8, 512>}, {transform_indices = @transform_3, window_bounds = array<i64: 1, 8, 8>}, {pipeline_mode = #tpu.pipeline_mode<synchronous>, transform_indices = @transform_4, window_bounds = array<i64: 3, 512, 512>}, {pipeline_mode = #tpu.pipeline_mode<synchronous>, transform_indices = @transform_5, window_bounds = array<i64: 512, 512>}, {transform_indices = @transform_6, window_bounds = array<i64: 1, 8, 512>}, {transform_indices = @transform_7, window_bounds = array<i64: 1, 8, 8, 8>}]} {
    %c0 = arith.constant 0 : index
    %c0_0 = arith.constant 0 : index
    %c0_1 = arith.constant 0 : index
    %0 = vector.load %arg2[%c0, %c0_0, %c0_1] : memref<1x8x512xf32, #tpu.memory_space<vmem>>, vector<1x8x512xf32>
    %1 = vector.shape_cast %0 : vector<1x8x512xf32> to vector<8x512xf32>
    %2 = arith.truncf %1 : vector<8x512xf32> to vector<8x512xbf16>
    %c0_2 = arith.constant 0 : index
    %c0_3 = arith.constant 0 : index
    %c0_4 = arith.constant 0 : index
    %3 = vector.load %arg3[%c0_2, %c0_3, %c0_4] : memref<1x8x512xf32, #tpu.memory_space<vmem>>, vector<1x8x512xf32>
    %4 = vector.shape_cast %3 : vector<1x8x512xf32> to vector<8x512xf32>
    %5 = arith.truncf %4 : vector<8x512xf32> to vector<8x512xbf16>
    %c0_5 = arith.constant 0 : index
    %c0_6 = arith.constant 0 : index
    %c0_7 = arith.constant 0 : index
    %6 = vector.load %arg4[%c0_5, %c0_6, %c0_7] : memref<1x8x512xf32, #tpu.memory_space<vmem>>, vector<1x8x512xf32>
    %7 = vector.shape_cast %6 : vector<1x8x512xf32> to vector<8x512xf32>
    %8 = arith.truncf %7 : vector<8x512xf32> to vector<8x512xbf16>
    %c0_8 = arith.constant 0 : index
    %c0_9 = arith.constant 0 : index
    %c0_10 = arith.constant 0 : index
    %9 = vector.load %arg6[%c0_8, %c0_9, %c0_10] : memref<3x512x512xbf16, #tpu.memory_space<vmem>>, vector<1x512x512xbf16>
    %10 = vector.shape_cast %9 : vector<1x512x512xbf16> to vector<512x512xbf16>
    %cst = arith.constant dense<0.000000e+00> : vector<8x512xf32>
    %11 = tpu.matmul %2, %10, %cst {dimension_numbers = #tpu.dot_dimension_numbers<[1], [0], [0], [1], [0, 0, 1, 1], [], []>} : vector<8x512xbf16>, vector<512x512xbf16>, vector<8x512xf32> -> vector<8x512xf32>
    %c1 = arith.constant 1 : index
    %c0_11 = arith.constant 0 : index
    %c0_12 = arith.constant 0 : index
    %12 = vector.load %arg6[%c1, %c0_11, %c0_12] : memref<3x512x512xbf16, #tpu.memory_space<vmem>>, vector<1x512x512xbf16>
    %13 = vector.shape_cast %12 : vector<1x512x512xbf16> to vector<512x512xbf16>
    %cst_13 = arith.constant dense<0.000000e+00> : vector<8x512xf32>
    %14 = tpu.matmul %5, %13, %cst_13 {dimension_numbers = #tpu.dot_dimension_numbers<[1], [0], [0], [1], [0, 0, 1, 1], [], []>} : vector<8x512xbf16>, vector<512x512xbf16>, vector<8x512xf32> -> vector<8x512xf32>
    %c2 = arith.constant 2 : index
    %c0_14 = arith.constant 0 : index
    %c0_15 = arith.constant 0 : index
    %15 = vector.load %arg6[%c2, %c0_14, %c0_15] : memref<3x512x512xbf16, #tpu.memory_space<vmem>>, vector<1x512x512xbf16>
    %16 = vector.shape_cast %15 : vector<1x512x512xbf16> to vector<512x512xbf16>
    %cst_16 = arith.constant dense<0.000000e+00> : vector<8x512xf32>
    %17 = tpu.matmul %8, %16, %cst_16 {dimension_numbers = #tpu.dot_dimension_numbers<[1], [0], [0], [1], [0, 0, 1, 1], [], []>} : vector<8x512xbf16>, vector<512x512xbf16>, vector<8x512xf32> -> vector<8x512xf32>
    %18 = vector.shape_cast %11 : vector<8x512xf32> to vector<8x8x64xf32>
    %19 = tpu.transpose %18, [1, 0, 2] : vector<8x8x64xf32> -> vector<8x8x64xf32>
    %20 = arith.truncf %19 : vector<8x8x64xf32> to vector<8x8x64xbf16>
    %21 = vector.shape_cast %14 : vector<8x512xf32> to vector<8x8x64xf32>
    %22 = tpu.transpose %21, [1, 0, 2] : vector<8x8x64xf32> -> vector<8x8x64xf32>
    %23 = arith.truncf %22 : vector<8x8x64xf32> to vector<8x8x64xbf16>
    %24 = vector.shape_cast %17 : vector<8x512xf32> to vector<8x8x64xf32>
    %25 = tpu.transpose %24, [1, 0, 2] : vector<8x8x64xf32> -> vector<8x8x64xf32>
    %26 = arith.truncf %25 : vector<8x8x64xf32> to vector<8x8x64xbf16>
    "tpu.trace_start"() <{level = 10 : i32, message = "hqd,hkd->hqk"}> : () -> ()
    %cst_17 = arith.constant dense<0.000000e+00> : vector<8x8x8xf32>
    %27 = tpu.matmul %20, %23, %cst_17 {dimension_numbers = #tpu.dot_dimension_numbers<[2], [2], [1], [1], [0, 0, 0, 1, 1, 1], [0], [0]>} : vector<8x8x64xbf16>, vector<8x8x64xbf16>, vector<8x8x8xf32> -> vector<8x8x8xf32>
    "tpu.trace_stop"() : () -> ()
    %c0_18 = arith.constant 0 : index
    %c0_19 = arith.constant 0 : index
    %c0_20 = arith.constant 0 : index
    %28 = vector.load %arg5[%c0_18, %c0_19, %c0_20] : memref<1x8x8xi8, #tpu.memory_space<vmem>>, vector<1x8x8xi8>
    %29 = vector.shape_cast %28 : vector<1x8x8xi8> to vector<8x8xi8>
    %c0_i8 = arith.constant 0 : i8
    %30 = vector.broadcast %c0_i8 : i8 to vector<8x8xi8>
    %31 = arith.cmpi ne, %29, %30 : vector<8x8xi8>
    %32 = vector.shape_cast %31 : vector<8x8xi1> to vector<1x8x8xi1>
    %cst_21 = arith.constant -1.000000e+09 : f32
    %33 = vector.shape_cast %32 : vector<1x8x8xi1> to vector<1x8x8xi1>
    %34 = vector.broadcast %33 : vector<1x8x8xi1> to vector<8x8x8xi1>
    %35 = vector.broadcast %cst_21 : f32 to vector<8x8x8xf32>
    %36 = arith.select %34, %35, %27 : vector<8x8x8xi1>, vector<8x8x8xf32>
    %cst_22 = arith.constant dense<0xFF800000> : vector<8x8xf32>
    %37 = vector.multi_reduction <maximumf>, %36, %cst_22 [2] : vector<8x8x8xf32> to vector<8x8xf32>
    %38 = vector.shape_cast %37 : vector<8x8xf32> to vector<8x8x1xf32>
    %39 = vector.broadcast %38 : vector<8x8x1xf32> to vector<8x8x8xf32>
    %40 = arith.subf %36, %39 : vector<8x8x8xf32>
    %41 = math.exp %40 : vector<8x8x8xf32>
    %cst_23 = arith.constant dense<0.000000e+00> : vector<8x8xf32>
    %42 = vector.multi_reduction <add>, %41, %cst_23 [2] : vector<8x8x8xf32> to vector<8x8xf32>
    %43 = vector.shape_cast %42 : vector<8x8xf32> to vector<8x8x1xf32>
    %44 = vector.broadcast %43 : vector<8x8x1xf32> to vector<8x8x8xf32>
    %45 = arith.divf %41, %44 : vector<8x8x8xf32>
    %c0_24 = arith.constant 0 : index
    %c0_25 = arith.constant 0 : index
    %c0_26 = arith.constant 0 : index
    %c0_27 = arith.constant 0 : index
    %46 = vector.load %arg9[%c0_24, %c0_25, %c0_26, %c0_27] : memref<1x8x8x8xf32, #tpu.memory_space<vmem>>, vector<1x8x8x8xf32>
    %47 = vector.shape_cast %46 : vector<1x8x8x8xf32> to vector<8x8x8xf32>
    %48 = vector.shape_cast %45 : vector<8x8x8xf32> to vector<1x8x8x8xf32>
    tpu.vector_store %arg9[%c0_24, %c0_25, %c0_26, %c0_27], %48 {strides = array<i32>} : memref<1x8x8x8xf32, #tpu.memory_space<vmem>>, vector<1x8x8x8xf32>,
    %49 = arith.truncf %45 : vector<8x8x8xf32> to vector<8x8x8xbf16>
    "tpu.trace_start"() <{level = 10 : i32, message = "hqk,hkd->hqd"}> : () -> ()
    %cst_28 = arith.constant dense<0.000000e+00> : vector<8x8x64xf32>
    %50 = tpu.matmul %49, %26, %cst_28 {dimension_numbers = #tpu.dot_dimension_numbers<[2], [1], [1], [2], [0, 0, 0, 1, 1, 2], [0], [0]>} : vector<8x8x8xbf16>, vector<8x8x64xbf16>, vector<8x8x64xf32> -> vector<8x8x64xf32>
    "tpu.trace_stop"() : () -> ()
    %51 = tpu.transpose %50, [1, 0, 2] : vector<8x8x64xf32> -> vector<8x8x64xf32>
    %52 = vector.shape_cast %51 : vector<8x8x64xf32> to vector<8x512xf32>
    %53 = arith.truncf %52 : vector<8x512xf32> to vector<8x512xbf16>
    %c0_29 = arith.constant 0 : index
    %c0_30 = arith.constant 0 : index
    %54 = vector.load %arg7[%c0_29, %c0_30] : memref<512x512xbf16, #tpu.memory_space<vmem>>, vector<512x512xbf16>
    %cst_31 = arith.constant dense<0.000000e+00> : vector<8x512xf32>
    %55 = tpu.matmul %53, %54, %cst_31 {dimension_numbers = #tpu.dot_dimension_numbers<[1], [0], [0], [1], [0, 0, 1, 1], [], []>} : vector<8x512xbf16>, vector<512x512xbf16>, vector<8x512xf32> -> vector<8x512xf32>
    %56 = arith.addf %55, %1 : vector<8x512xf32>
    %cst_32 = arith.constant dense<0.000000e+00> : vector<8xf32>
    %57 = vector.multi_reduction <add>, %56, %cst_32 [1] : vector<8x512xf32> to vector<8xf32>
    %58 = vector.shape_cast %57 : vector<8xf32> to vector<8x1xf32>
    %cst_33 = arith.constant 5.120000e+02 : f32
    %59 = vector.broadcast %cst_33 : f32 to vector<8x1xf32>
    %60 = arith.divf %58, %59 : vector<8x1xf32>
    %61 = vector.broadcast %60 : vector<8x1xf32> to vector<8x512xf32>
    %62 = arith.subf %56, %61 : vector<8x512xf32>
    %63 = arith.mulf %62, %62 : vector<8x512xf32>
    %cst_34 = arith.constant dense<0.000000e+00> : vector<8xf32>
    %64 = vector.multi_reduction <add>, %63, %cst_34 [1] : vector<8x512xf32> to vector<8xf32>
    %65 = vector.shape_cast %64 : vector<8xf32> to vector<8x1xf32>
    %cst_35 = arith.constant 5.120000e+02 : f32
    %66 = vector.broadcast %cst_35 : f32 to vector<8x1xf32>
    %67 = arith.divf %65, %66 : vector<8x1xf32>
    %68 = vector.broadcast %60 : vector<8x1xf32> to vector<8x512xf32>
    %69 = arith.subf %56, %68 : vector<8x512xf32>
    %cst_36 = arith.constant 9.99999974E-6 : f32
    %70 = vector.broadcast %cst_36 : f32 to vector<8x1xf32>
    %71 = arith.addf %67, %70 : vector<8x1xf32>
    %72 = math.rsqrt %71 : vector<8x1xf32>
    %73 = vector.broadcast %72 : vector<8x1xf32> to vector<8x512xf32>
    %74 = arith.mulf %69, %73 : vector<8x512xf32>
    %c0_37 = arith.constant 0 : index
    %c0_38 = arith.constant 0 : index
    %c0_39 = arith.constant 0 : index
    %75 = vector.load %arg8[%c0_37, %c0_38, %c0_39] : memref<1x8x512xf32, #tpu.memory_space<vmem>>, vector<1x8x512xf32>
    %76 = vector.shape_cast %75 : vector<1x8x512xf32> to vector<8x512xf32>
    %77 = vector.shape_cast %74 : vector<8x512xf32> to vector<1x8x512xf32>
    tpu.vector_store %arg8[%c0_37, %c0_38, %c0_39], %77 {strides = array<i32>} : memref<1x8x512xf32, #tpu.memory_space<vmem>>, vector<1x8x512xf32>,
    return
  }
  func.func @transform_0(%arg0: i32, %arg1: i32) -> (i32, i32, i32) {
    %c0_i32 = arith.constant 0 : i32
    %c0_i32_0 = arith.constant 0 : i32
    return %arg0, %arg1, %c0_i32 : i32, i32, i32
  }
  func.func @transform_1(%arg0: i32, %arg1: i32) -> (i32, i32, i32) {
    %c0_i32 = arith.constant 0 : i32
    %c0_i32_0 = arith.constant 0 : i32
    %c0_i32_1 = arith.constant 0 : i32
    return %arg0, %c0_i32, %c0_i32_0 : i32, i32, i32
  }
  func.func @transform_2(%arg0: i32, %arg1: i32) -> (i32, i32, i32) {
    %c0_i32 = arith.constant 0 : i32
    %c0_i32_0 = arith.constant 0 : i32
    %c0_i32_1 = arith.constant 0 : i32
    return %arg0, %c0_i32, %c0_i32_0 : i32, i32, i32
  }
  func.func @transform_3(%arg0: i32, %arg1: i32) -> (i32, i32, i32) {
    %c0_i32 = arith.constant 0 : i32
    %c0_i32_0 = arith.constant 0 : i32
    return %arg0, %arg1, %c0_i32 : i32, i32, i32
  }
  func.func @transform_4(%arg0: i32, %arg1: i32) -> (i32, i32, i32) {
    %c0_i32 = arith.constant 0 : i32
    %c0_i32_0 = arith.constant 0 : i32
    %c0_i32_1 = arith.constant 0 : i32
    %c0_i32_2 = arith.constant 0 : i32
    return %c0_i32, %c0_i32_0, %c0_i32_1 : i32, i32, i32
  }
  func.func @transform_5(%arg0: i32, %arg1: i32) -> (i32, i32) {
    %c0_i32 = arith.constant 0 : i32
    %c0_i32_0 = arith.constant 0 : i32
    %c0_i32_1 = arith.constant 0 : i32
    return %c0_i32, %c0_i32_0 : i32, i32
  }
  func.func @transform_6(%arg0: i32, %arg1: i32) -> (i32, i32, i32) {
    %c0_i32 = arith.constant 0 : i32
    %c0_i32_0 = arith.constant 0 : i32
    return %arg0, %arg1, %c0_i32 : i32, i32, i32
  }
  func.func @transform_7(%arg0: i32, %arg1: i32) -> (i32, i32, i32, i32) {
    %c0_i32 = arith.constant 0 : i32
    %c0_i32_0 = arith.constant 0 : i32
    %c0_i32_1 = arith.constant 0 : i32
    return %arg0, %c0_i32, %arg1, %c0_i32_0 : i32, i32, i32, i32
  }
}

</mosaic_0001>

<llo_original>
// kernel: multi_head_attention.1
$region0: #{multi_head_attention.1}
  #allocation0 [shape = 'u32[]', space=smem, size = 0x4, offset = 0x4, fixed_abs, tag = 'smem constant byte address 0x4 - core index']
  #allocation1 [shape = 'u32[144,128]{1,0:T(1,128)}', space=vmem, size = 0x12000, scoped, tag = 'internal scratch']
  %s0 = inlined_call_operand.hbm [shape: f32[2,8,512], index: 0, kind: input, shape index: {}]
  %s1 = inlined_call_operand.hbm [shape: f32[2,8,512], index: 1, kind: input, shape index: {}]
  %s2 = inlined_call_operand.hbm [shape: f32[2,8,512], index: 2, kind: input, shape index: {}]
  %s3 = inlined_call_operand.vmem [shape: s8[2,8,8], index: 3, kind: input, shape index: {}]
  %s4 = inlined_call_operand.hbm [shape: bf16[3,512,512], index: 4, kind: input, shape index: {}]
  %s5 = inlined_call_operand.hbm [shape: bf16[512,512], index: 5, kind: input, shape index: {}]
  %s6 = inlined_call_operand.hbm [shape: f32[2,8,512], index: 6, kind: output, shape index: {0}]
  %s7 = inlined_call_operand.hbm [shape: f32[2,8,8,8], index: 7, kind: output, shape index: {1}]
  %8 = xla_tuple %s6, %s7
  %s9 = sld [smem:[#allocation0]]
  $region85: #{multi_head_attention.1} parent=0
    _
  %s11 = ssub.s32 1, %s9
  %s12 = scalar_select 0, %s11, %s9
  $region1: #{multi_head_attention.1} parent=0
    #allocation2 [shape = 'u8[32768]{0}', space=vmem, size = 0x8000, scoped, tag = 'input window, operand 0']
    #allocation3 [shape = 's32[2]{0}', space=sflag, size = 0x8, scoped, tag = 'scoped memory for multi_head_attention.1']
    #allocation4 [shape = 's32[2]{0}', space=sflag, size = 0x8, scoped, tag = 'scoped memory for multi_head_attention.1']
    #allocation5 [shape = 'u8[32768]{0}', space=vmem, size = 0x8000, scoped, tag = 'input window, operand 1']
    #allocation6 [shape = 's32[2]{0}', space=sflag, size = 0x8, scoped, tag = 'scoped memory for multi_head_attention.1']
    #allocation7 [shape = 'u8[32768]{0}', space=vmem, size = 0x8000, scoped, tag = 'input window, operand 2']
    #allocation8 [shape = 'u8[1572864]{0}', space=vmem, size = 0x180000, scoped, tag = 'input window, operand 4, single buffered']
    #allocation9 [shape = 's32[1]{0}', space=sflag, size = 0x4, scoped, tag = 'scoped memory for multi_head_attention.1']
    #allocation10 [shape = 'u8[524288]{0}', space=vmem, size = 0x80000, scoped, tag = 'input window, operand 5, single buffered']
    #allocation11 [shape = 'u8[32768]{0}', space=vmem, size = 0x8000, scoped, tag = 'output window, operand 0']
    #allocation12 [shape = 'u8[65536]{0}', space=vmem, size = 0x10000, scoped, tag = 'output window, operand 1']
    #allocation13 [shape = 's32[2]{0}', space=sflag, size = 0x8, scoped, tag = 'scoped memory for multi_head_attention.1']
    %13 = vsyncpa [#allocation3], 0
    %s14 = scalar_lea.sflag [#allocation3], 1
    %15 = vsyncpa %s14, 0
    %16 = vsyncpa [#allocation6], 0
    %s17 = scalar_lea.sflag [#allocation6], 1
    %18 = vsyncpa %s17, 0
    %19 = vsyncpa [#allocation9], 0
    %20 = vsyncpa [#allocation4], 0
    %s21 = scalar_lea.sflag [#allocation4], 1
    %22 = vsyncpa %s21, 0
    %23 = vsyncpa [#allocation13], 0
    %s24 = scalar_lea.sflag [#allocation13], 1
    %25 = vsyncpa %s24, 0
    loop: start=0, step=1, limit=4
    $region2: #{multi_head_attention.1} parent=1 // loop_pre_header
      _
    $region3: #{multi_head_attention.1} parent=1 // loop_header
      %s27 = sphi 0, %s31
      %p28 = scmp.ge.s32.totalorder %s27, 4
      %s34 = sphi 0, %s46
      %s35 = sphi 0, %s42
      %s36 = sphi 0, %s34
      %s37 = sphi 0, %s35
      %s38 = sphi 0, %s36
      %s39 = sphi 0, %s37
      %s51 = sphi 0, %s53
      %s54 = sphi 0, %s51
      %s55 = sphi 0, %s54
      %s71 = sphi 0, %s55
      %s77 = sphi 0, %s79
      %s80 = sphi 0, %s77
      %s81 = sphi 0, %s80
      %s97 = sphi 0, %s81
      %s103 = sphi 0, %s105
      %s106 = sphi 0, %s103
      %s107 = sphi 0, %s106
      %s123 = sphi 0, %s107
      %s131 = sphi 0, %s133
      %s134 = sphi 0, %s131
      %s135 = sphi 0, %s134
      %s151 = sphi 0, %s135
      %s155 = sphi 0, %s155
      %s157 = sphi 0, %s155
      %s158 = sphi 0, %s157
      %s172 = sphi 0, %s158
      %s176 = sphi 0, %s176
      %s178 = sphi 0, %s176
      %s179 = sphi 0, %s178
      %s193 = sphi 0, %s179
      %s201 = sphi 0, %s203
      %s204 = sphi 0, %s201
      %s205 = sphi 0, %s204
      %s221 = sphi 0, %s205
      %s229 = sphi 0, %s231
      %s232 = sphi 0, %s229
      %s233 = sphi 0, %s232
      %s249 = sphi 0, %s233
    $region4: #{multi_head_attention.1} parent=1 // loop_header_branch
      %30 = sbr.rel (%p28) target = $region8
    $region5: #{multi_head_attention.1} parent=1 // loop_body
      %s32 = ssub.s32 %s27, 1
      %s33 = ssub.s32 %s27, 2
      %s40 = sadd.s32 1, %s35
      %p41 = scmp.ge.s32.totalorder %s40, 1
      %s42 = scalar_select %p41, 0, %s40
      %s43 = sadd.s32 1, %s34
      %s44 = scalar_select %p41, %s43, %s34
      %p45 = scmp.ge.s32.totalorder %s44, 2
      %s46 = scalar_select %p45, 0, %s44
      %s47 = ssub.s32 %s34, %s46
      %s48 = ssub.s32 %s35, %s42
      %s49 = sor.u32 %s47, %s48
      %p50 = scmp.eq.s32.totalorder %s49, 0
      %s52 = sadd.s32 %s51, 1
      %s53 = scalar_select %p50, %s51, %s52
      %p56 = pneg %p50
      %p57 = scmp.eq.s32.totalorder %s27, 1
      %p58 = por %p56, %p57
      %p59 = scmp.ne.s32.totalorder %s51, %s54
      %p60 = scmp.eq.s32.totalorder %s27, 0
      %p61 = por %p59, %p60
      %p62 = scmp.ne.s32.totalorder %s51, %s54
      %p63 = scmp.eq.s32.totalorder %s32, 1
      %p64 = por %p62, %p63
      %p65 = scmp.ne.s32.totalorder %s54, %s55
      %p66 = scmp.eq.s32.totalorder %s32, 0
      %p67 = por %p65, %p66
      %p68 = scmp.ne.s32.totalorder %s54, %s55
      %p69 = scmp.eq.s32.totalorder %s33, 1
      %p70 = por %p68, %p69
      %p72 = scmp.ne.s32.totalorder %s55, %s71
      %p73 = scmp.eq.s32.totalorder %s33, 0
      %p74 = por %p72, %p73
      %s75 = ssub.s32 %s34, %s46
      %p76 = scmp.eq.s32.totalorder %s75, 0
      %s78 = sadd.s32 %s77, 1
      %s79 = scalar_select %p76, %s77, %s78
      %p82 = pneg %p76
      %p83 = scmp.eq.s32.totalorder %s27, 1
      %p84 = por %p82, %p83
      %p85 = scmp.ne.s32.totalorder %s77, %s80
      %p86 = scmp.eq.s32.totalorder %s27, 0
      %p87 = por %p85, %p86
      %p88 = scmp.ne.s32.totalorder %s77, %s80
      %p89 = scmp.eq.s32.totalorder %s32, 1
      %p90 = por %p88, %p89
      %p91 = scmp.ne.s32.totalorder %s80, %s81
      %p92 = scmp.eq.s32.totalorder %s32, 0
      %p93 = por %p91, %p92
      %p94 = scmp.ne.s32.totalorder %s80, %s81
      %p95 = scmp.eq.s32.totalorder %s33, 1
      %p96 = por %p94, %p95
      %p98 = scmp.ne.s32.totalorder %s81, %s97
      %p99 = scmp.eq.s32.totalorder %s33, 0
      %p100 = por %p98, %p99
      %s101 = ssub.s32 %s34, %s46
      %p102 = scmp.eq.s32.totalorder %s101, 0
      %s104 = sadd.s32 %s103, 1
      %s105 = scalar_select %p102, %s103, %s104
      %p108 = pneg %p102
      %p109 = scmp.eq.s32.totalorder %s27, 1
      %p110 = por %p108, %p109
      %p111 = scmp.ne.s32.totalorder %s103, %s106
      %p112 = scmp.eq.s32.totalorder %s27, 0
      %p113 = por %p111, %p112
      %p114 = scmp.ne.s32.totalorder %s103, %s106
      %p115 = scmp.eq.s32.totalorder %s32, 1
      %p116 = por %p114, %p115
      %p117 = scmp.ne.s32.totalorder %s106, %s107
      %p118 = scmp.eq.s32.totalorder %s32, 0
      %p119 = por %p117, %p118
      %p120 = scmp.ne.s32.totalorder %s106, %s107
      %p121 = scmp.eq.s32.totalorder %s33, 1
      %p122 = por %p120, %p121
      %p124 = scmp.ne.s32.totalorder %s107, %s123
      %p125 = scmp.eq.s32.totalorder %s33, 0
      %p126 = por %p124, %p125
      %s127 = ssub.s32 %s34, %s46
      %s128 = ssub.s32 %s35, %s42
      %s129 = sor.u32 %s127, %s128
      %p130 = scmp.eq.s32.totalorder %s129, 0
      %s132 = sadd.s32 %s131, 1
      %s133 = scalar_select %p130, %s131, %s132
      %p136 = pneg %p130
      %p137 = scmp.eq.s32.totalorder %s27, 1
      %p138 = por %p136, %p137
      %p139 = scmp.ne.s32.totalorder %s131, %s134
      %p140 = scmp.eq.s32.totalorder %s27, 0
      %p141 = por %p139, %p140
      %p142 = scmp.ne.s32.totalorder %s131, %s134
      %p143 = scmp.eq.s32.totalorder %s32, 1
      %p144 = por %p142, %p143
      %p145 = scmp.ne.s32.totalorder %s134, %s135
      %p146 = scmp.eq.s32.totalorder %s32, 0
      %p147 = por %p145, %p146
      %p148 = scmp.ne.s32.totalorder %s134, %s135
      %p149 = scmp.eq.s32.totalorder %s33, 1
      %p150 = por %p148, %p149
      %p152 = scmp.ne.s32.totalorder %s135, %s151
      %p153 = scmp.eq.s32.totalorder %s33, 0
      %p154 = por %p152, %p153
      %s156 = sadd.s32 %s155, 1
      %p159 = scmp.eq.s32.totalorder %s27, 1
      %p160 = scmp.ne.s32.totalorder %s155, %s157
      %p161 = scmp.eq.s32.totalorder %s27, 0
      %p162 = por %p160, %p161
      %p163 = scmp.ne.s32.totalorder %s155, %s157
      %p164 = scmp.eq.s32.totalorder %s32, 1
      %p165 = por %p163, %p164
      %p166 = scmp.ne.s32.totalorder %s157, %s158
      %p167 = scmp.eq.s32.totalorder %s32, 0
      %p168 = por %p166, %p167
      %p169 = scmp.ne.s32.totalorder %s157, %s158
      %p170 = scmp.eq.s32.totalorder %s33, 1
      %p171 = por %p169, %p170
      %p173 = scmp.ne.s32.totalorder %s158, %s172
      %p174 = scmp.eq.s32.totalorder %s33, 0
      %p175 = por %p173, %p174
      %s177 = sadd.s32 %s176, 1
      %p180 = scmp.eq.s32.totalorder %s27, 1
      %p181 = scmp.ne.s32.totalorder %s176, %s178
      %p182 = scmp.eq.s32.totalorder %s27, 0
      %p183 = por %p181, %p182
      %p184 = scmp.ne.s32.totalorder %s176, %s178
      %p185 = scmp.eq.s32.totalorder %s32, 1
      %p186 = por %p184, %p185
      %p187 = scmp.ne.s32.totalorder %s178, %s179
      %p188 = scmp.eq.s32.totalorder %s32, 0
      %p189 = por %p187, %p188
      %p190 = scmp.ne.s32.totalorder %s178, %s179
      %p191 = scmp.eq.s32.totalorder %s33, 1
      %p192 = por %p190, %p191
      %p194 = scmp.ne.s32.totalorder %s179, %s193
      %p195 = scmp.eq.s32.totalorder %s33, 0
      %p196 = por %p194, %p195
      %s197 = ssub.s32 %s34, %s46
      %s198 = ssub.s32 %s35, %s42
      %s199 = sor.u32 %s197, %s198
      %p200 = scmp.eq.s32.totalorder %s199, 0
      %s202 = sadd.s32 %s201, 1
      %s203 = scalar_select %p200, %s201, %s202
      %p206 = pneg %p200
      %p207 = scmp.eq.s32.totalorder %s27, 1
      %p208 = por %p206, %p207
      %p209 = scmp.ne.s32.totalorder %s201, %s204
      %p210 = scmp.eq.s32.totalorder %s27, 0
      %p211 = por %p209, %p210
      %p212 = scmp.ne.s32.totalorder %s201, %s204
      %p213 = scmp.eq.s32.totalorder %s32, 1
      %p214 = por %p212, %p213
      %p215 = scmp.ne.s32.totalorder %s204, %s205
      %p216 = scmp.eq.s32.totalorder %s32, 0
      %p217 = por %p215, %p216
      %p218 = scmp.ne.s32.totalorder %s204, %s205
      %p219 = scmp.eq.s32.totalorder %s33, 1
      %p220 = por %p218, %p219
      %p222 = scmp.ne.s32.totalorder %s205, %s221
      %p223 = scmp.eq.s32.totalorder %s33, 0
      %p224 = por %p222, %p223
      %s225 = ssub.s32 %s34, %s46
      %s226 = ssub.s32 %s35, %s42
      %s227 = sor.u32 %s225, %s226
      %p228 = scmp.eq.s32.totalorder %s227, 0
      %s230 = sadd.s32 %s229, 1
      %s231 = scalar_select %p228, %s229, %s230
      %p234 = pneg %p228
      %p235 = scmp.eq.s32.totalorder %s27, 1
      %p236 = por %p234, %p235
      %p237 = scmp.ne.s32.totalorder %s229, %s232
      %p238 = scmp.eq.s32.totalorder %s27, 0
      %p239 = por %p237, %p238
      %p240 = scmp.ne.s32.totalorder %s229, %s232
      %p241 = scmp.eq.s32.totalorder %s32, 1
      %p242 = por %p240, %p241
      %p243 = scmp.ne.s32.totalorder %s232, %s233
      %p244 = scmp.eq.s32.totalorder %s32, 0
      %p245 = por %p243, %p244
      %p246 = scmp.ne.s32.totalorder %s232, %s233
      %p247 = scmp.eq.s32.totalorder %s33, 1
      %p248 = por %p246, %p247
      %p250 = scmp.ne.s32.totalorder %s233, %s249
      %p251 = scmp.eq.s32.totalorder %s33, 0
      %p252 = por %p250, %p251
      %p253 = scmp.le.s32.totalorder 1, %s27
      %p254 = scmp.lt.s32.totalorder %s27, 3
      %p255 = pnand %p253, %p254
      %p256 = pneg %p255
      // Predicated region
      $region9: #{multi_head_attention.1} parent=5 // pred_check
        _
      $region10: #{multi_head_attention.1} parent=5 // pred_check_branch
        %258 = sbr.rel (%p255) target = $region12
      $region11: #{multi_head_attention.1} parent=5 // pred_region
        %s259 = ssub.s32 %s27, 1
        // Predicated region
        $region13: #{multi_head_attention.1} parent=11 // pred_check
          %p260 = pneg %p168
        $region14: #{multi_head_attention.1} parent=11 // pred_check_branch
          %262 = sbr.rel (%p260) target = $region16
        $region15: #{multi_head_attention.1} parent=11 // pred_region
          %s264 = ssub.s32 49152, 49152
          %265 = vsyncadd [#allocation9], %s264
          %s266 = sshll.u32 [#allocation8], 4
          %s267 = int_to_ptr.vmem [resolvable:$true] %s266
          %272 = dma.hbm_to_vmem [thread:$0]  %s4, 49152, %s267, [#allocation9], 256, 256, 16
        $region16: #{multi_head_attention.1} parent=11 // pred_fallthru
          _
        // Predicated region
        $region17: #{multi_head_attention.1} parent=11 // pred_check
          %p273 = pneg %p189
        $region18: #{multi_head_attention.1} parent=11 // pred_check_branch
          %275 = sbr.rel (%p273) target = $region20
        $region19: #{multi_head_attention.1} parent=11 // pred_region
          %s277 = ssub.s32 16384, 16384
          %278 = vsyncadd [#allocation9], %s277
          %s279 = sshll.u32 [#allocation10], 4
          %s280 = int_to_ptr.vmem [resolvable:$true] %s279
          %285 = dma.hbm_to_vmem [thread:$0]  %s5, 16384, %s280, [#allocation9], 256, 256, 16
        $region20: #{multi_head_attention.1} parent=11 // pred_fallthru
          _
      $region12: #{multi_head_attention.1} parent=5 // pred_fallthru
        _
      %p286 = scmp.lt.s32.totalorder %s27, 2
      // Predicated region
      $region21: #{multi_head_attention.1} parent=5 // pred_check
        %p287 = pneg %p286
      $region22: #{multi_head_attention.1} parent=5 // pred_check_branch
        %289 = sbr.rel (%p287) target = $region24
      $region23: #{multi_head_attention.1} parent=5 // pred_region
        // Predicated region
        $region25: #{multi_head_attention.1} parent=23 // pred_check
          %p290 = pneg %p61
        $region26: #{multi_head_attention.1} parent=23 // pred_check_branch
          %292 = sbr.rel (%p290) target = $region28
        $region27: #{multi_head_attention.1} parent=23 // pred_region
          %s293 = sand.u32 %s51, 1
          %s294 = scalar_lea.sflag [#allocation3], %s293
          %s295 = sand.u32 %s51, 1
          %s296 = smul.addr %s295, 32
          %s297 = scalar_lea.vmem [#allocation2], %s296
          %s299 = ssub.s32 512, 512
          %300 = vsyncadd %s294, %s299
          %s301 = smul.addr %s35, 4
          %s302 = smul.addr %s34, 4
          %s303 = sadd.s32 %s301, %s302
          %s304 = smul.addr %s303, 128
          %s305 = scalar_lea.hbm %s0, %s304
          %s307 = sshll.u32 %s297, 4
          %s308 = int_to_ptr.vmem [resolvable:$true] %s307
          %310 = dma.hbm_to_vmem [thread:$0]  %s305, 512, %s308, %s294
        $region28: #{multi_head_attention.1} parent=23 // pred_fallthru
          _
        // Predicated region
        $region29: #{multi_head_attention.1} parent=23 // pred_check
          %p311 = pneg %p87
        $region30: #{multi_head_attention.1} parent=23 // pred_check_branch
          %313 = sbr.rel (%p311) target = $region32
        $region31: #{multi_head_attention.1} parent=23 // pred_region
          %s314 = sand.u32 %s27, 1
          %s315 = scalar_lea.sflag [#allocation6], %s314
          %s316 = sand.u32 %s77, 1
          %s317 = smul.addr %s316, 32
          %s318 = scalar_lea.vmem [#allocation5], %s317
          %s320 = ssub.s32 512, 512
          %321 = vsyncadd %s315, %s320
          %s322 = smul.addr %s34, 4
          %s323 = smul.addr %s322, 128
          %s324 = scalar_lea.hbm %s1, %s323
          %s326 = sshll.u32 %s318, 4
          %s327 = int_to_ptr.vmem [resolvable:$true] %s326
          %329 = dma.hbm_to_vmem [thread:$0]  %s324, 512, %s327, %s315
        $region32: #{multi_head_attention.1} parent=23 // pred_fallthru
          _
        // Predicated region
        $region33: #{multi_head_attention.1} parent=23 // pred_check
          %p330 = pneg %p113
        $region34: #{multi_head_attention.1} parent=23 // pred_check_branch
          %332 = sbr.rel (%p330) target = $region36
        $region35: #{multi_head_attention.1} parent=23 // pred_region
          %s333 = sand.u32 %s27, 1
          %s334 = scalar_lea.sflag [#allocation6], %s333
          %s335 = sand.u32 %s103, 1
          %s336 = smul.addr %s335, 32
          %s337 = scalar_lea.vmem [#allocation7], %s336
          %s339 = ssub.s32 512, 512
          %340 = vsyncadd %s334, %s339
          %s341 = smul.addr %s34, 4
          %s342 = smul.addr %s341, 128
          %s343 = scalar_lea.hbm %s2, %s342
          %s345 = sshll.u32 %s337, 4
          %s346 = int_to_ptr.vmem [resolvable:$true] %s345
          %348 = dma.hbm_to_vmem [thread:$0]  %s343, 512, %s346, %s334
        $region36: #{multi_head_attention.1} parent=23 // pred_fallthru
          _
        // Predicated region
        $region37: #{multi_head_attention.1} parent=23 // pred_check
          %p349 = pneg %p141
        $region38: #{multi_head_attention.1} parent=23 // pred_check_branch
          %351 = sbr.rel (%p349) target = $region40
        $region39: #{multi_head_attention.1} parent=23 // pred_region
          %p352 = scmp.lt.s32.totalorder %s34, 1
          %s353 = scalar_select %p352, %s34, 1
          %p354 = scmp.lt.s32.totalorder %s35, 0
          %s355 = scalar_select %p354, %s35, 0
          %s356 = sadd.s32 %s355, %s353
          %s357 = smul.addr %s356, 2
          %s358 = scalar_lea.vmem %s3, %s357
        $region40: #{multi_head_attention.1} parent=23 // pred_fallthru
          _
      $region24: #{multi_head_attention.1} parent=5 // pred_fallthru
        _
      %p359 = scmp.le.s32.totalorder 1, %s27
      %p360 = scmp.lt.s32.totalorder %s27, 3
      %p361 = pnand %p359, %p360
      %p362 = pneg %p361
      // Predicated region
      $region41: #{multi_head_attention.1} parent=5 // pred_check
        _
      $region42: #{multi_head_attention.1} parent=5 // pred_check_branch
        %364 = sbr.rel (%p361) target = $region44
      $region43: #{multi_head_attention.1} parent=5 // pred_region
        %s365 = ssub.s32 %s27, 1
        %s366 = sand.u32 %s54, 1
        %s367 = scalar_lea.sflag [#allocation3], %s366
        %s368 = sand.u32 %s54, 1
        %s369 = smul.addr %s368, 32
        %s370 = scalar_lea.vmem [#allocation2], %s369
        // Predicated region
        $region45: #{multi_head_attention.1} parent=43 // pred_check
          %p371 = pneg %p67
        $region46: #{multi_head_attention.1} parent=43 // pred_check_branch
          %373 = sbr.rel (%p371) target = $region48
        $region47: #{multi_head_attention.1} parent=43 // pred_region
          %374 = dma.done %s367, 512
        $region48: #{multi_head_attention.1} parent=43 // pred_fallthru
          _
        %s375 = sand.u32 %s32, 1
        %s376 = scalar_lea.sflag [#allocation6], %s375
        %s377 = sand.u32 %s80, 1
        %s378 = smul.addr %s377, 32
        %s379 = scalar_lea.vmem [#allocation5], %s378
        // Predicated region
        $region49: #{multi_head_attention.1} parent=43 // pred_check
          %p380 = pneg %p93
        $region50: #{multi_head_attention.1} parent=43 // pred_check_branch
          %382 = sbr.rel (%p380) target = $region52
        $region51: #{multi_head_attention.1} parent=43 // pred_region
          %383 = dma.done %s376, 512
        $region52: #{multi_head_attention.1} parent=43 // pred_fallthru
          _
        %s384 = sand.u32 %s32, 1
        %s385 = scalar_lea.sflag [#allocation6], %s384
        %s386 = sand.u32 %s106, 1
        %s387 = smul.addr %s386, 32
        %s388 = scalar_lea.vmem [#allocation7], %s387
        // Predicated region
        $region53: #{multi_head_attention.1} parent=43 // pred_check
          %p389 = pneg %p119
        $region54: #{multi_head_attention.1} parent=43 // pred_check_branch
          %391 = sbr.rel (%p389) target = $region56
        $region55: #{multi_head_attention.1} parent=43 // pred_region
          %392 = dma.done %s385, 512
        $region56: #{multi_head_attention.1} parent=43 // pred_fallthru
          _
        // Predicated region
        $region57: #{multi_head_attention.1} parent=43 // pred_check
          %p393 = pneg %p168
        $region58: #{multi_head_attention.1} parent=43 // pred_check_branch
          %395 = sbr.rel (%p393) target = $region60
        $region59: #{multi_head_attention.1} parent=43 // pred_region
          %396 = dma.done [#allocation9], 49152
        $region60: #{multi_head_attention.1} parent=43 // pred_fallthru
          _
        // Predicated region
        $region61: #{multi_head_attention.1} parent=43 // pred_check
          %p397 = pneg %p189
        $region62: #{multi_head_attention.1} parent=43 // pred_check_branch
          %399 = sbr.rel (%p397) target = $region64
        $region63: #{multi_head_attention.1} parent=43 // pred_region
          %400 = dma.done [#allocation9], 16384
        $region64: #{multi_head_attention.1} parent=43 // pred_fallthru
          _
        %s401 = sand.u32 %s54, 1
        %s402 = scalar_lea.sflag [#allocation3], %s401
        %s403 = sand.u32 %s54, 1
        %s404 = smul.addr %s403, 32
        %s405 = scalar_lea.vmem [#allocation2], %s404
        %p406 = pneg %p67
        %p407 = pneg %p64
        %s408 = sand.u32 %s32, 1
        %s409 = scalar_lea.sflag [#allocation6], %s408
        %s410 = sand.u32 %s80, 1
        %s411 = smul.addr %s410, 32
        %s412 = scalar_lea.vmem [#allocation5], %s411
        %p413 = pneg %p93
        %p414 = pneg %p90
        %s415 = sand.u32 %s32, 1
        %s416 = scalar_lea.sflag [#allocation6], %s415
        %s417 = sand.u32 %s106, 1
        %s418 = smul.addr %s417, 32
        %s419 = scalar_lea.vmem [#allocation7], %s418
        %p420 = pneg %p119
        %p421 = pneg %p116
        %p422 = scmp.lt.s32.totalorder %s36, 1
        %s423 = scalar_select %p422, %s36, 1
        %p424 = scmp.lt.s32.totalorder %s37, 0
        %s425 = scalar_select %p424, %s37, 0
        %s426 = sadd.s32 %s425, %s423
        %s427 = smul.addr %s426, 2
        %s428 = scalar_lea.vmem %s3, %s427
        %p429 = pneg %p147
        %p430 = pneg %p144
        %p431 = pneg %p168
        %p432 = pneg %p165
        %p433 = pneg %p189
        %p434 = pneg %p186
        %p435 = pneg %p217
        %p436 = pneg %p214
        %s437 = sand.u32 %s204, 1
        %s438 = scalar_lea.sflag [#allocation4], %s437
        %s439 = sand.u32 %s204, 1
        %s440 = smul.addr %s439, 32
        %s441 = scalar_lea.vmem [#allocation11], %s440
        %p442 = pneg %p245
        %p443 = pneg %p242
        %s444 = sand.u32 %s232, 1
        %s445 = scalar_lea.sflag [#allocation13], %s444
        %s446 = sand.u32 %s232, 1
        %s447 = smul.addr %s446, 64
        %s448 = scalar_lea.vmem [#allocation12], %s447
        %p449 = scmp.lt.s32.totalorder %s36, 1
        %s450 = scalar_select %p449, %s36, 1
        %p451 = scmp.lt.s32.totalorder %s37, 0
        %s452 = scalar_select %p451, %s37, 0
        %s453 = sadd.s32 %s452, %s450
        %s454 = smul.addr %s453, 2
        %s455 = scalar_lea.vmem %s3, %s454
        %v459 = vld [vmem:[%s370] sm:$0xff]
        %v460 = vld [vmem:[%s370 + $0x8] sm:$0xff]
        %v461 = vld [vmem:[%s370 + $0x10] sm:$0xff]
        %v462 = vld [vmem:[%s370 + $0x18] sm:$0xff]
        %v463 = vpack.c.bf16 %v459, %v459
        %v464 = vpack.c.bf16 %v460, %v460
        %v465 = vpack.c.bf16 %v461, %v461
        %v466 = vpack.c.bf16 %v462, %v462
        %v467 = vld [vmem:[%s379] sm:$0xff]
        %v468 = vld [vmem:[%s379 + $0x8] sm:$0xff]
        %v469 = vld [vmem:[%s379 + $0x10] sm:$0xff]
        %v470 = vld [vmem:[%s379 + $0x18] sm:$0xff]
        %v471 = vpack.c.bf16 %v467, %v467
        %v472 = vpack.c.bf16 %v468, %v468
        %v473 = vpack.c.bf16 %v469, %v469
        %v474 = vpack.c.bf16 %v470, %v470
        %v475 = vld [vmem:[%s388] sm:$0xff]
        %v476 = vld [vmem:[%s388 + $0x8] sm:$0xff]
        %v477 = vld [vmem:[%s388 + $0x10] sm:$0xff]
        %v478 = vld [vmem:[%s388 + $0x18] sm:$0xff]
        %v479 = vpack.c.bf16 %v475, %v475
        %v480 = vpack.c.bf16 %v476, %v476
        %v481 = vpack.c.bf16 %v477, %v477
        %v482 = vpack.c.bf16 %v478, %v478
        %v483 = vld [vmem:[#allocation8] sm:$0xff]
        %v484 = vld [vmem:[#allocation8 + $0x8] sm:$0xff]
        %v485 = vld [vmem:[#allocation8 + $0x10] sm:$0xff]
        %v486 = vld [vmem:[#allocation8 + $0x18] sm:$0xff]
        %v487 = vld [vmem:[#allocation8 + $0x20] sm:$0xff]
        %v488 = vld [vmem:[#allocation8 + $0x28] sm:$0xff]
        %v489 = vld [vmem:[#allocation8 + $0x30] sm:$0xff]
        %v490 = vld [vmem:[#allocation8 + $0x38] sm:$0xff]
        %v491 = vld [vmem:[#allocation8 + $0x40] sm:$0xff]
        %v492 = vld [vmem:[#allocation8 + $0x48] sm:$0xff]
        %v493 = vld [vmem:[#allocation8 + $0x50] sm:$0xff]
        %v494 = vld [vmem:[#allocation8 + $0x58] sm:$0xff]
        %v495 = vld [vmem:[#allocation8 + $0x60] sm:$0xff]
        %v496 = vld [vmem:[#allocation8 + $0x68] sm:$0xff]
        %v497 = vld [vmem:[#allocation8 + $0x70] sm:$0xff]
        %v498 = vld [vmem:[#allocation8 + $0x78] sm:$0xff]
        %v499 = vld [vmem:[#allocation8 + $0x80] sm:$0xff]
        %v500 = vld [vmem:[#allocation8 + $0x88] sm:$0xff]
        %v501 = vld [vmem:[#allocation8 + $0x90] sm:$0xff]
        %v502 = vld [vmem:[#allocation8 + $0x98] sm:$0xff]
        %v503 = vld [vmem:[#allocation8 + $0xa0] sm:$0xff]
        %v504 = vld [vmem:[#allocation8 + $0xa8] sm:$0xff]
        %v505 = vld [vmem:[#allocation8 + $0xb0] sm:$0xff]
        %v506 = vld [vmem:[#allocation8 + $0xb8] sm:$0xff]
        %v507 = vld [vmem:[#allocation8 + $0xc0] sm:$0xff]
        %v508 = vld [vmem:[#allocation8 + $0xc8] sm:$0xff]
        %v509 = vld [vmem:[#allocation8 + $0xd0] sm:$0xff]
        %v510 = vld [vmem:[#allocation8 + $0xd8] sm:$0xff]
        %v511 = vld [vmem:[#allocation8 + $0xe0] sm:$0xff]
        %v512 = vld [vmem:[#allocation8 + $0xe8] sm:$0xff]
        %v513 = vld [vmem:[#allocation8 + $0xf0] sm:$0xff]
        %v514 = vld [vmem:[#allocation8 + $0xf8] sm:$0xff]
        %v515 = vld [vmem:[#allocation8 + $0x100] sm:$0xff]
        %v516 = vld [vmem:[#allocation8 + $0x108] sm:$0xff]
        %v517 = vld [vmem:[#allocation8 + $0x110] sm:$0xff]
        %v518 = vld [vmem:[#allocation8 + $0x118] sm:$0xff]
        %v519 = vld [vmem:[#allocation8 + $0x120] sm:$0xff]
        %v520 = vld [vmem:[#allocation8 + $0x128] sm:$0xff]
        %v521 = vld [vmem:[#allocation8 + $0x130] sm:$0xff]
        %v522 = vld [vmem:[#allocation8 + $0x138] sm:$0xff]
        %v523 = vld [vmem:[#allocation8 + $0x140] sm:$0xff]
        %v524 = vld [vmem:[#allocation8 + $0x148] sm:$0xff]
        %v525 = vld [vmem:[#allocation8 + $0x150] sm:$0xff]
        %v526 = vld [vmem:[#allocation8 + $0x158] sm:$0xff]
        %v527 = vld [vmem:[#allocation8 + $0x160] sm:$0xff]
        %v528 = vld [vmem:[#allocation8 + $0x168] sm:$0xff]
        %v529 = vld [vmem:[#allocation8 + $0x170] sm:$0xff]
        %v530 = vld [vmem:[#allocation8 + $0x178] sm:$0xff]
        %v531 = vld [vmem:[#allocation8 + $0x180] sm:$0xff]
        %v532 = vld [vmem:[#allocation8 + $0x188] sm:$0xff]
        %v533 = vld [vmem:[#allocation8 + $0x190] sm:$0xff]
        %v534 = vld [vmem:[#allocation8 + $0x198] sm:$0xff]
        %v535 = vld [vmem:[#allocation8 + $0x1a0] sm:$0xff]
        %v536 = vld [vmem:[#allocation8 + $0x1a8] sm:$0xff]
        %v537 = vld [vmem:[#allocation8 + $0x1b0] sm:$0xff]
        %v538 = vld [vmem:[#allocation8 + $0x1b8] sm:$0xff]
        %v539 = vld [vmem:[#allocation8 + $0x1c0] sm:$0xff]
        %v540 = vld [vmem:[#allocation8 + $0x1c8] sm:$0xff]
        %v541 = vld [vmem:[#allocation8 + $0x1d0] sm:$0xff]
        %v542 = vld [vmem:[#allocation8 + $0x1d8] sm:$0xff]
        %v543 = vld [vmem:[#allocation8 + $0x1e0] sm:$0xff]
        %v544 = vld [vmem:[#allocation8 + $0x1e8] sm:$0xff]
        %v545 = vld [vmem:[#allocation8 + $0x1f0] sm:$0xff]
        %v546 = vld [vmem:[#allocation8 + $0x1f8] sm:$0xff]
        %v547 = vld [vmem:[#allocation8 + $0x200] sm:$0xff]
        %v548 = vld [vmem:[#allocation8 + $0x208] sm:$0xff]
        %v549 = vld [vmem:[#allocation8 + $0x210] sm:$0xff]
        %v550 = vld [vmem:[#allocation8 + $0x218] sm:$0xff]
        %v551 = vld [vmem:[#allocation8 + $0x220] sm:$0xff]
        %v552 = vld [vmem:[#allocation8 + $0x228] sm:$0xff]
        %v553 = vld [vmem:[#allocation8 + $0x230] sm:$0xff]
        %v554 = vld [vmem:[#allocation8 + $0x238] sm:$0xff]
        %v555 = vld [vmem:[#allocation8 + $0x240] sm:$0xff]
        %v556 = vld [vmem:[#allocation8 + $0x248] sm:$0xff]
        %v557 = vld [vmem:[#allocation8 + $0x250] sm:$0xff]
        %v558 = vld [vmem:[#allocation8 + $0x258] sm:$0xff]
        %v559 = vld [vmem:[#allocation8 + $0x260] sm:$0xff]
        %v560 = vld [vmem:[#allocation8 + $0x268] sm:$0xff]
        %v561 = vld [vmem:[#allocation8 + $0x270] sm:$0xff]
        %v562 = vld [vmem:[#allocation8 + $0x278] sm:$0xff]
        %v563 = vld [vmem:[#allocation8 + $0x280] sm:$0xff]
        %v564 = vld [vmem:[#allocation8 + $0x288] sm:$0xff]
        %v565 = vld [vmem:[#allocation8 + $0x290] sm:$0xff]
        %v566 = vld [vmem:[#allocation8 + $0x298] sm:$0xff]
        %v567 = vld [vmem:[#allocation8 + $0x2a0] sm:$0xff]
        %v568 = vld [vmem:[#allocation8 + $0x2a8] sm:$0xff]
        %v569 = vld [vmem:[#allocation8 + $0x2b0] sm:$0xff]
        %v570 = vld [vmem:[#allocation8 + $0x2b8] sm:$0xff]
        %v571 = vld [vmem:[#allocation8 + $0x2c0] sm:$0xff]
        %v572 = vld [vmem:[#allocation8 + $0x2c8] sm:$0xff]
        %v573 = vld [vmem:[#allocation8 + $0x2d0] sm:$0xff]
        %v574 = vld [vmem:[#allocation8 + $0x2d8] sm:$0xff]
        %v575 = vld [vmem:[#allocation8 + $0x2e0] sm:$0xff]
        %v576 = vld [vmem:[#allocation8 + $0x2e8] sm:$0xff]
        %v577 = vld [vmem:[#allocation8 + $0x2f0] sm:$0xff]
        %v578 = vld [vmem:[#allocation8 + $0x2f8] sm:$0xff]
        %v579 = vld [vmem:[#allocation8 + $0x300] sm:$0xff]
        %v580 = vld [vmem:[#allocation8 + $0x308] sm:$0xff]
        %v581 = vld [vmem:[#allocation8 + $0x310] sm:$0xff]
        %v582 = vld [vmem:[#allocation8 + $0x318] sm:$0xff]
        %v583 = vld [vmem:[#allocation8 + $0x320] sm:$0xff]
        %v584 = vld [vmem:[#allocation8 + $0x328] sm:$0xff]
        %v585 = vld [vmem:[#allocation8 + $0x330] sm:$0xff]
        %v586 = vld [vmem:[#allocation8 + $0x338] sm:$0xff]
        %v587 = vld [vmem:[#allocation8 + $0x340] sm:$0xff]
        %v588 = vld [vmem:[#allocation8 + $0x348] sm:$0xff]
        %v589 = vld [vmem:[#allocation8 + $0x350] sm:$0xff]
        %v590 = vld [vmem:[#allocation8 + $0x358] sm:$0xff]
        %v591 = vld [vmem:[#allocation8 + $0x360] sm:$0xff]
        %v592 = vld [vmem:[#allocation8 + $0x368] sm:$0xff]
        %v593 = vld [vmem:[#allocation8 + $0x370] sm:$0xff]
        %v594 = vld [vmem:[#allocation8 + $0x378] sm:$0xff]
        %v595 = vld [vmem:[#allocation8 + $0x380] sm:$0xff]
        %v596 = vld [vmem:[#allocation8 + $0x388] sm:$0xff]
        %v597 = vld [vmem:[#allocation8 + $0x390] sm:$0xff]
        %v598 = vld [vmem:[#allocation8 + $0x398] sm:$0xff]
        %v599 = vld [vmem:[#allocation8 + $0x3a0] sm:$0xff]
        %v600 = vld [vmem:[#allocation8 + $0x3a8] sm:$0xff]
        %v601 = vld [vmem:[#allocation8 + $0x3b0] sm:$0xff]
        %v602 = vld [vmem:[#allocation8 + $0x3b8] sm:$0xff]
        %v603 = vld [vmem:[#allocation8 + $0x3c0] sm:$0xff]
        %v604 = vld [vmem:[#allocation8 + $0x3c8] sm:$0xff]
        %v605 = vld [vmem:[#allocation8 + $0x3d0] sm:$0xff]
        %v606 = vld [vmem:[#allocation8 + $0x3d8] sm:$0xff]
        %v607 = vld [vmem:[#allocation8 + $0x3e0] sm:$0xff]
        %v608 = vld [vmem:[#allocation8 + $0x3e8] sm:$0xff]
        %v609 = vld [vmem:[#allocation8 + $0x3f0] sm:$0xff]
        %v610 = vld [vmem:[#allocation8 + $0x3f8] sm:$0xff]
        %v739 = vunpack.c.l.b16 %v483
        %v740 = vunpack.c.h.b16 %v483
        %v741 = vunpack.c.l.b16 %v484
        %v742 = vunpack.c.h.b16 %v484
        %v743 = vunpack.c.l.b16 %v485
        %v744 = vunpack.c.h.b16 %v485
        %v745 = vunpack.c.l.b16 %v486
        %v746 = vunpack.c.h.b16 %v486
        %v747 = vunpack.c.l.b16 %v487
        %v748 = vunpack.c.h.b16 %v487
        %v749 = vunpack.c.l.b16 %v488
        %v750 = vunpack.c.h.b16 %v488
        %v751 = vunpack.c.l.b16 %v489
        %v752 = vunpack.c.h.b16 %v489
        %v753 = vunpack.c.l.b16 %v490
        %v754 = vunpack.c.h.b16 %v490
        %v755 = vunpack.c.l.b16 %v491
        %v756 = vunpack.c.h.b16 %v491
        %v757 = vunpack.c.l.b16 %v492
        %v758 = vunpack.c.h.b16 %v492
        %v759 = vunpack.c.l.b16 %v493
        %v760 = vunpack.c.h.b16 %v493
        %v761 = vunpack.c.l.b16 %v494
        %v762 = vunpack.c.h.b16 %v494
        %v763 = vunpack.c.l.b16 %v495
        %v764 = vunpack.c.h.b16 %v495
        %v765 = vunpack.c.l.b16 %v496
        %v766 = vunpack.c.h.b16 %v496
        %v767 = vunpack.c.l.b16 %v497
        %v768 = vunpack.c.h.b16 %v497
        %v769 = vunpack.c.l.b16 %v498
        %v770 = vunpack.c.h.b16 %v498
        %v771 = vunpack.c.l.b16 %v499
        %v772 = vunpack.c.h.b16 %v499
        %v773 = vunpack.c.l.b16 %v500
        %v774 = vunpack.c.h.b16 %v500
        %v775 = vunpack.c.l.b16 %v501
        %v776 = vunpack.c.h.b16 %v501
        %v777 = vunpack.c.l.b16 %v502
        %v778 = vunpack.c.h.b16 %v502
        %v779 = vunpack.c.l.b16 %v503
        %v780 = vunpack.c.h.b16 %v503
        %v781 = vunpack.c.l.b16 %v504
        %v782 = vunpack.c.h.b16 %v504
        %v783 = vunpack.c.l.b16 %v505
        %v784 = vunpack.c.h.b16 %v505
        %v785 = vunpack.c.l.b16 %v506
        %v786 = vunpack.c.h.b16 %v506
        %v787 = vunpack.c.l.b16 %v507
        %v788 = vunpack.c.h.b16 %v507
        %v789 = vunpack.c.l.b16 %v508
        %v790 = vunpack.c.h.b16 %v508
        %v791 = vunpack.c.l.b16 %v509
        %v792 = vunpack.c.h.b16 %v509
        %v793 = vunpack.c.l.b16 %v510
        %v794 = vunpack.c.h.b16 %v510
        %v795 = vunpack.c.l.b16 %v511
        %v796 = vunpack.c.h.b16 %v511
        %v797 = vunpack.c.l.b16 %v512
        %v798 = vunpack.c.h.b16 %v512
        %v799 = vunpack.c.l.b16 %v513
        %v800 = vunpack.c.h.b16 %v513
        %v801 = vunpack.c.l.b16 %v514
        %v802 = vunpack.c.h.b16 %v514
        %v803 = vunpack.c.l.b16 %v515
        %v804 = vunpack.c.h.b16 %v515
        %v805 = vunpack.c.l.b16 %v516
        %v806 = vunpack.c.h.b16 %v516
        %v807 = vunpack.c.l.b16 %v517
        %v808 = vunpack.c.h.b16 %v517
        %v809 = vunpack.c.l.b16 %v518
        %v810 = vunpack.c.h.b16 %v518
        %v811 = vunpack.c.l.b16 %v519
        %v812 = vunpack.c.h.b16 %v519
        %v813 = vunpack.c.l.b16 %v520
        %v814 = vunpack.c.h.b16 %v520
        %v815 = vunpack.c.l.b16 %v521
        %v816 = vunpack.c.h.b16 %v521
        %v817 = vunpack.c.l.b16 %v522
        %v818 = vunpack.c.h.b16 %v522
        %v819 = vunpack.c.l.b16 %v523
        %v820 = vunpack.c.h.b16 %v523
        %v821 = vunpack.c.l.b16 %v524
        %v822 = vunpack.c.h.b16 %v524
        %v823 = vunpack.c.l.b16 %v525
        %v824 = vunpack.c.h.b16 %v525
        %v825 = vunpack.c.l.b16 %v526
        %v826 = vunpack.c.h.b16 %v526
        %v827 = vunpack.c.l.b16 %v527
        %v828 = vunpack.c.h.b16 %v527
        %v829 = vunpack.c.l.b16 %v528
        %v830 = vunpack.c.h.b16 %v528
        %v831 = vunpack.c.l.b16 %v529
        %v832 = vunpack.c.h.b16 %v529
        %v833 = vunpack.c.l.b16 %v530
        %v834 = vunpack.c.h.b16 %v530
        %v835 = vunpack.c.l.b16 %v531
        %v836 = vunpack.c.h.b16 %v531
        %v837 = vunpack.c.l.b16 %v532
        %v838 = vunpack.c.h.b16 %v532
        %v839 = vunpack.c.l.b16 %v533
        %v840 = vunpack.c.h.b16 %v533
        %v841 = vunpack.c.l.b16 %v534
        %v842 = vunpack.c.h.b16 %v534
        %v843 = vunpack.c.l.b16 %v535
        %v844 = vunpack.c.h.b16 %v535
        %v845 = vunpack.c.l.b16 %v536
        %v846 = vunpack.c.h.b16 %v536
        %v847 = vunpack.c.l.b16 %v537
        %v848 = vunpack.c.h.b16 %v537
        %v849 = vunpack.c.l.b16 %v538
        %v850 = vunpack.c.h.b16 %v538
        %v851 = vunpack.c.l.b16 %v539
        %v852 = vunpack.c.h.b16 %v539
        %v853 = vunpack.c.l.b16 %v540
        %v854 = vunpack.c.h.b16 %v540
        %v855 = vunpack.c.l.b16 %v541
        %v856 = vunpack.c.h.b16 %v541
        %v857 = vunpack.c.l.b16 %v542
        %v858 = vunpack.c.h.b16 %v542
        %v859 = vunpack.c.l.b16 %v543
        %v860 = vunpack.c.h.b16 %v543
        %v861 = vunpack.c.l.b16 %v544
        %v862 = vunpack.c.h.b16 %v544
        %v863 = vunpack.c.l.b16 %v545
        %v864 = vunpack.c.h.b16 %v545
        %v865 = vunpack.c.l.b16 %v546
        %v866 = vunpack.c.h.b16 %v546
        %v867 = vunpack.c.l.b16 %v547
        %v868 = vunpack.c.h.b16 %v547
        %v869 = vunpack.c.l.b16 %v548
        %v870 = vunpack.c.h.b16 %v548
        %v871 = vunpack.c.l.b16 %v549
        %v872 = vunpack.c.h.b16 %v549
        %v873 = vunpack.c.l.b16 %v550
        %v874 = vunpack.c.h.b16 %v550
        %v875 = vunpack.c.l.b16 %v551
        %v876 = vunpack.c.h.b16 %v551
        %v877 = vunpack.c.l.b16 %v552
        %v878 = vunpack.c.h.b16 %v552
        %v879 = vunpack.c.l.b16 %v553
        %v880 = vunpack.c.h.b16 %v553
        %v881 = vunpack.c.l.b16 %v554
        %v882 = vunpack.c.h.b16 %v554
        %v883 = vunpack.c.l.b16 %v555
        %v884 = vunpack.c.h.b16 %v555
        %v885 = vunpack.c.l.b16 %v556
        %v886 = vunpack.c.h.b16 %v556
        %v887 = vunpack.c.l.b16 %v557
        %v888 = vunpack.c.h.b16 %v557
        %v889 = vunpack.c.l.b16 %v558
        %v890 = vunpack.c.h.b16 %v558
        %v891 = vunpack.c.l.b16 %v559
        %v892 = vunpack.c.h.b16 %v559
        %v893 = vunpack.c.l.b16 %v560
        %v894 = vunpack.c.h.b16 %v560
        %v895 = vunpack.c.l.b16 %v561
        %v896 = vunpack.c.h.b16 %v561
        %v897 = vunpack.c.l.b16 %v562
        %v898 = vunpack.c.h.b16 %v562
        %v899 = vunpack.c.l.b16 %v563
        %v900 = vunpack.c.h.b16 %v563
        %v901 = vunpack.c.l.b16 %v564
        %v902 = vunpack.c.h.b16 %v564
        %v903 = vunpack.c.l.b16 %v565
        %v904 = vunpack.c.h.b16 %v565
        %v905 = vunpack.c.l.b16 %v566
        %v906 = vunpack.c.h.b16 %v566
        %v907 = vunpack.c.l.b16 %v567
        %v908 = vunpack.c.h.b16 %v567
        %v909 = vunpack.c.l.b16 %v568
        %v910 = vunpack.c.h.b16 %v568
        %v911 = vunpack.c.l.b16 %v569
        %v912 = vunpack.c.h.b16 %v569
        %v913 = vunpack.c.l.b16 %v570
        %v914 = vunpack.c.h.b16 %v570
        %v915 = vunpack.c.l.b16 %v571
        %v916 = vunpack.c.h.b16 %v571
        %v917 = vunpack.c.l.b16 %v572
        %v918 = vunpack.c.h.b16 %v572
        %v919 = vunpack.c.l.b16 %v573
        %v920 = vunpack.c.h.b16 %v573
        %v921 = vunpack.c.l.b16 %v574
        %v922 = vunpack.c.h.b16 %v574
        %v923 = vunpack.c.l.b16 %v575
        %v924 = vunpack.c.h.b16 %v575
        %v925 = vunpack.c.l.b16 %v576
        %v926 = vunpack.c.h.b16 %v576
        %v927 = vunpack.c.l.b16 %v577
        %v928 = vunpack.c.h.b16 %v577
        %v929 = vunpack.c.l.b16 %v578
        %v930 = vunpack.c.h.b16 %v578
        %v931 = vunpack.c.l.b16 %v579
        %v932 = vunpack.c.h.b16 %v579
        %v933 = vunpack.c.l.b16 %v580
        %v934 = vunpack.c.h.b16 %v580
        %v935 = vunpack.c.l.b16 %v581
        %v936 = vunpack.c.h.b16 %v581
        %v937 = vunpack.c.l.b16 %v582
        %v938 = vunpack.c.h.b16 %v582
        %v939 = vunpack.c.l.b16 %v583
        %v940 = vunpack.c.h.b16 %v583
        %v941 = vunpack.c.l.b16 %v584
        %v942 = vunpack.c.h.b16 %v584
        %v943 = vunpack.c.l.b16 %v585
        %v944 = vunpack.c.h.b16 %v585
        %v945 = vunpack.c.l.b16 %v586
        %v946 = vunpack.c.h.b16 %v586
        %v947 = vunpack.c.l.b16 %v587
        %v948 = vunpack.c.h.b16 %v587
        %v949 = vunpack.c.l.b16 %v588
        %v950 = vunpack.c.h.b16 %v588
        %v951 = vunpack.c.l.b16 %v589
        %v952 = vunpack.c.h.b16 %v589
        %v953 = vunpack.c.l.b16 %v590
        %v954 = vunpack.c.h.b16 %v590
        %v955 = vunpack.c.l.b16 %v591
        %v956 = vunpack.c.h.b16 %v591
        %v957 = vunpack.c.l.b16 %v592
        %v958 = vunpack.c.h.b16 %v592
        %v959 = vunpack.c.l.b16 %v593
        %v960 = vunpack.c.h.b16 %v593
        %v961 = vunpack.c.l.b16 %v594
        %v962 = vunpack.c.h.b16 %v594
        %v963 = vunpack.c.l.b16 %v595
        %v964 = vunpack.c.h.b16 %v595
        %v965 = vunpack.c.l.b16 %v596
        %v966 = vunpack.c.h.b16 %v596
        %v967 = vunpack.c.l.b16 %v597
        %v968 = vunpack.c.h.b16 %v597
        %v969 = vunpack.c.l.b16 %v598
        %v970 = vunpack.c.h.b16 %v598
        %v971 = vunpack.c.l.b16 %v599
        %v972 = vunpack.c.h.b16 %v599
        %v973 = vunpack.c.l.b16 %v600
        %v974 = vunpack.c.h.b16 %v600
        %v975 = vunpack.c.l.b16 %v601
        %v976 = vunpack.c.h.b16 %v601
        %v977 = vunpack.c.l.b16 %v602
        %v978 = vunpack.c.h.b16 %v602
        %v979 = vunpack.c.l.b16 %v603
        %v980 = vunpack.c.h.b16 %v603
        %v981 = vunpack.c.l.b16 %v604
        %v982 = vunpack.c.h.b16 %v604
        %v983 = vunpack.c.l.b16 %v605
        %v984 = vunpack.c.h.b16 %v605
        %v985 = vunpack.c.l.b16 %v606
        %v986 = vunpack.c.h.b16 %v606
        %v987 = vunpack.c.l.b16 %v607
        %v988 = vunpack.c.h.b16 %v607
        %v989 = vunpack.c.l.b16 %v608
        %v990 = vunpack.c.h.b16 %v608
        %v991 = vunpack.c.l.b16 %v609
        %v992 = vunpack.c.h.b16 %v609
        %v993 = vunpack.c.l.b16 %v610
        %v994 = vunpack.c.h.b16 %v610
        %v995 = vpack.c.b16 %v743, %v739
        %v996 = vpack.c.b16 %v744, %v740
        %v997 = vpack.c.b16 %v745, %v741
        %v998 = vpack.c.b16 %v746, %v742
        %v999 = vpack.c.b16 %v751, %v747
        %v1000 = vpack.c.b16 %v752, %v748
        %v1001 = vpack.c.b16 %v753, %v749
        %v1002 = vpack.c.b16 %v754, %v750
        %v1003 = vpack.c.b16 %v759, %v755
        %v1004 = vpack.c.b16 %v760, %v756
        %v1005 = vpack.c.b16 %v761, %v757
        %v1006 = vpack.c.b16 %v762, %v758
        %v1007 = vpack.c.b16 %v767, %v763
        %v1008 = vpack.c.b16 %v768, %v764
        %v1009 = vpack.c.b16 %v769, %v765
        %v1010 = vpack.c.b16 %v770, %v766
        %v1011 = vpack.c.b16 %v775, %v771
        %v1012 = vpack.c.b16 %v776, %v772
        %v1013 = vpack.c.b16 %v777, %v773
        %v1014 = vpack.c.b16 %v778, %v774
        %v1015 = vpack.c.b16 %v783, %v779
        %v1016 = vpack.c.b16 %v784, %v780
        %v1017 = vpack.c.b16 %v785, %v781
        %v1018 = vpack.c.b16 %v786, %v782
        %v1019 = vpack.c.b16 %v791, %v787
        %v1020 = vpack.c.b16 %v792, %v788
        %v1021 = vpack.c.b16 %v793, %v789
        %v1022 = vpack.c.b16 %v794, %v790
        %v1023 = vpack.c.b16 %v799, %v795
        %v1024 = vpack.c.b16 %v800, %v796
        %v1025 = vpack.c.b16 %v801, %v797
        %v1026 = vpack.c.b16 %v802, %v798
        %v1027 = vpack.c.b16 %v807, %v803
        %v1028 = vpack.c.b16 %v808, %v804
        %v1029 = vpack.c.b16 %v809, %v805
        %v1030 = vpack.c.b16 %v810, %v806
        %v1031 = vpack.c.b16 %v815, %v811
        %v1032 = vpack.c.b16 %v816, %v812
        %v1033 = vpack.c.b16 %v817, %v813
        %v1034 = vpack.c.b16 %v818, %v814
        %v1035 = vpack.c.b16 %v823, %v819
        %v1036 = vpack.c.b16 %v824, %v820
        %v1037 = vpack.c.b16 %v825, %v821
        %v1038 = vpack.c.b16 %v826, %v822
        %v1039 = vpack.c.b16 %v831, %v827
        %v1040 = vpack.c.b16 %v832, %v828
        %v1041 = vpack.c.b16 %v833, %v829
        %v1042 = vpack.c.b16 %v834, %v830
        %v1043 = vpack.c.b16 %v839, %v835
        %v1044 = vpack.c.b16 %v840, %v836
        %v1045 = vpack.c.b16 %v841, %v837
        %v1046 = vpack.c.b16 %v842, %v838
        %v1047 = vpack.c.b16 %v847, %v843
        %v1048 = vpack.c.b16 %v848, %v844
        %v1049 = vpack.c.b16 %v849, %v845
        %v1050 = vpack.c.b16 %v850, %v846
        %v1051 = vpack.c.b16 %v855, %v851
        %v1052 = vpack.c.b16 %v856, %v852
        %v1053 = vpack.c.b16 %v857, %v853
        %v1054 = vpack.c.b16 %v858, %v854
        %v1055 = vpack.c.b16 %v863, %v859
        %v1056 = vpack.c.b16 %v864, %v860
        %v1057 = vpack.c.b16 %v865, %v861
        %v1058 = vpack.c.b16 %v866, %v862
        %v1059 = vpack.c.b16 %v871, %v867
        %v1060 = vpack.c.b16 %v872, %v868
        %v1061 = vpack.c.b16 %v873, %v869
        %v1062 = vpack.c.b16 %v874, %v870
        %v1063 = vpack.c.b16 %v879, %v875
        %v1064 = vpack.c.b16 %v880, %v876
        %v1065 = vpack.c.b16 %v881, %v877
        %v1066 = vpack.c.b16 %v882, %v878
        %v1067 = vpack.c.b16 %v887, %v883
        %v1068 = vpack.c.b16 %v888, %v884
        %v1069 = vpack.c.b16 %v889, %v885
        %v1070 = vpack.c.b16 %v890, %v886
        %v1071 = vpack.c.b16 %v895, %v891
        %v1072 = vpack.c.b16 %v896, %v892
        %v1073 = vpack.c.b16 %v897, %v893
        %v1074 = vpack.c.b16 %v898, %v894
        %v1075 = vpack.c.b16 %v903, %v899
        %v1076 = vpack.c.b16 %v904, %v900
        %v1077 = vpack.c.b16 %v905, %v901
        %v1078 = vpack.c.b16 %v906, %v902
        %v1079 = vpack.c.b16 %v911, %v907
        %v1080 = vpack.c.b16 %v912, %v908
        %v1081 = vpack.c.b16 %v913, %v909
        %v1082 = vpack.c.b16 %v914, %v910
        %v1083 = vpack.c.b16 %v919, %v915
        %v1084 = vpack.c.b16 %v920, %v916
        %v1085 = vpack.c.b16 %v921, %v917
        %v1086 = vpack.c.b16 %v922, %v918
        %v1087 = vpack.c.b16 %v927, %v923
        %v1088 = vpack.c.b16 %v928, %v924
        %v1089 = vpack.c.b16 %v929, %v925
        %v1090 = vpack.c.b16 %v930, %v926
        %v1091 = vpack.c.b16 %v935, %v931
        %v1092 = vpack.c.b16 %v936, %v932
        %v1093 = vpack.c.b16 %v937, %v933
        %v1094 = vpack.c.b16 %v938, %v934
        %v1095 = vpack.c.b16 %v943, %v939
        %v1096 = vpack.c.b16 %v944, %v940
        %v1097 = vpack.c.b16 %v945, %v941
        %v1098 = vpack.c.b16 %v946, %v942
        %v1099 = vpack.c.b16 %v951, %v947
        %v1100 = vpack.c.b16 %v952, %v948
        %v1101 = vpack.c.b16 %v953, %v949
        %v1102 = vpack.c.b16 %v954, %v950
        %v1103 = vpack.c.b16 %v959, %v955
        %v1104 = vpack.c.b16 %v960, %v956
        %v1105 = vpack.c.b16 %v961, %v957
        %v1106 = vpack.c.b16 %v962, %v958
        %v1107 = vpack.c.b16 %v967, %v963
        %v1108 = vpack.c.b16 %v968, %v964
        %v1109 = vpack.c.b16 %v969, %v965
        %v1110 = vpack.c.b16 %v970, %v966
        %v1111 = vpack.c.b16 %v975, %v971
        %v1112 = vpack.c.b16 %v976, %v972
        %v1113 = vpack.c.b16 %v977, %v973
        %v1114 = vpack.c.b16 %v978, %v974
        %v1115 = vpack.c.b16 %v983, %v979
        %v1116 = vpack.c.b16 %v984, %v980
        %v1117 = vpack.c.b16 %v985, %v981
        %v1118 = vpack.c.b16 %v986, %v982
        %v1119 = vpack.c.b16 %v991, %v987
        %v1120 = vpack.c.b16 %v992, %v988
        %v1121 = vpack.c.b16 %v993, %v989
        %v1122 = vpack.c.b16 %v994, %v990
        %1251 = vmatprep.subr.bf16.mxu0 %v1024
        %1252 = vmatpush1.bf16.msra.mxu0 %v1023
        %1253 = vmatprep.subr.bf16.mxu0 %v1020
        %1254 = vmatpush1.bf16.msra.mxu0 %v1019
        %1255 = vmatprep.subr.bf16.mxu0 %v1016
        %1256 = vmatpush1.bf16.msra.mxu0 %v1015
        %1257 = vmatprep.subr.bf16.mxu0 %v1012
        %1258 = vmatpush1.bf16.msra.mxu0 %v1011
        %1259 = vmatprep.subr.bf16.mxu0 %v1008
        %1260 = vmatpush1.bf16.msra.mxu0 %v1007
        %1261 = vmatprep.subr.bf16.mxu0 %v1004
        %1262 = vmatpush1.bf16.msra.mxu0 %v1003
        %1263 = vmatprep.subr.bf16.mxu0 %v1000
        %1264 = vmatpush1.bf16.msra.mxu0 %v999
        %1265 = vmatprep.subr.bf16.mxu0 %v996
        %1266 = vmatpush1.bf16.msra.mxu0 %v995
        %1267 = vmatprep.subr.bf16.mxu0 %v1056
        %1268 = vmatpush2.bf16.msra.mxu0 %v1055
        %1269 = vmatprep.subr.bf16.mxu0 %v1052
        %1270 = vmatpush2.bf16.msra.mxu0 %v1051
        %1271 = vmatprep.subr.bf16.mxu0 %v1048
        %1272 = vmatpush2.bf16.msra.mxu0 %v1047
        %1273 = vmatprep.subr.bf16.mxu0 %v1044
        %1274 = vmatpush2.bf16.msra.mxu0 %v1043
        %1275 = vmatprep.subr.bf16.mxu0 %v1040
        %1276 = vmatpush2.bf16.msra.mxu0 %v1039
        %1277 = vmatprep.subr.bf16.mxu0 %v1036
        %1278 = vmatpush2.bf16.msra.mxu0 %v1035
        %1279 = vmatprep.subr.bf16.mxu0 %v1032
        %1280 = vmatpush2.bf16.msra.mxu0 %v1031
        %1281 = vmatprep.subr.bf16.mxu0 %v1028
        %1282 = vmatpush2.bf16.msra.mxu0 %v1027
        %1283 = vmatprep.mubr.bf16.mxu0 %v464
        %1284 = vmatmul.mubr.bf16.gmra.mxu0 %v463
        %v1285 = vpop.f32.mrf.mxu0
        %v1286 = vadd.f32 0.0, %v1285
        %v1287 = vpop.f32.mrf.mxu0
        %v1288 = vadd.f32 0.0, %v1287
        %v1289 = vpop.f32.mrf.mxu0
        %v1290 = vpop.f32.mrf.mxu0
        %1291 = vdwg.mxu0
        %1292 = vmatprep.subr.bf16.mxu0 %v1088
        %1293 = vmatpush1.bf16.msra.mxu0 %v1087
        %1294 = vmatprep.subr.bf16.mxu0 %v1084
        %1295 = vmatpush1.bf16.msra.mxu0 %v1083
        %1296 = vmatprep.subr.bf16.mxu0 %v1080
        %1297 = vmatpush1.bf16.msra.mxu0 %v1079
        %1298 = vmatprep.subr.bf16.mxu0 %v1076
        %1299 = vmatpush1.bf16.msra.mxu0 %v1075
        %1300 = vmatprep.subr.bf16.mxu0 %v1072
        %1301 = vmatpush1.bf16.msra.mxu0 %v1071
        %1302 = vmatprep.subr.bf16.mxu0 %v1068
        %1303 = vmatpush1.bf16.msra.mxu0 %v1067
        %1304 = vmatprep.subr.bf16.mxu0 %v1064
        %1305 = vmatpush1.bf16.msra.mxu0 %v1063
        %1306 = vmatprep.subr.bf16.mxu0 %v1060
        %1307 = vmatpush1.bf16.msra.mxu0 %v1059
        %1308 = vmatprep.subr.bf16.mxu0 %v1120
        %1309 = vmatpush2.bf16.msra.mxu0 %v1119
        %1310 = vmatprep.subr.bf16.mxu0 %v1116
        %1311 = vmatpush2.bf16.msra.mxu0 %v1115
        %1312 = vmatprep.subr.bf16.mxu0 %v1112
        %1313 = vmatpush2.bf16.msra.mxu0 %v1111
        %1314 = vmatprep.subr.bf16.mxu0 %v1108
        %1315 = vmatpush2.bf16.msra.mxu0 %v1107
        %1316 = vmatprep.subr.bf16.mxu0 %v1104
        %1317 = vmatpush2.bf16.msra.mxu0 %v1103
        %1318 = vmatprep.subr.bf16.mxu0 %v1100
        %1319 = vmatpush2.bf16.msra.mxu0 %v1099
        %1320 = vmatprep.subr.bf16.mxu0 %v1096
        %1321 = vmatpush2.bf16.msra.mxu0 %v1095
        %1322 = vmatprep.subr.bf16.mxu0 %v1092
        %1323 = vmatpush2.bf16.msra.mxu0 %v1091
        %1324 = vmatprep.mubr.bf16.mxu0 %v466
        %1325 = vmatmul.mubr.bf16.gmra.mxu0 %v465
        %v1326 = vpop.f32.mrf.mxu0
        %v1327 = vadd.f32 %v1286, %v1326
        %v1328 = vpop.f32.mrf.mxu0
        %v1329 = vadd.f32 %v1288, %v1328
        %v1330 = vpop.f32.mrf.mxu0
        %v1331 = vpop.f32.mrf.mxu0
        %1332 = vdwg.mxu0
        %1333 = vmatprep.subr.bf16.mxu0 %v1026
        %1334 = vmatpush1.bf16.msra.mxu0 %v1025
        %1335 = vmatprep.subr.bf16.mxu0 %v1022
        %1336 = vmatpush1.bf16.msra.mxu0 %v1021
        %1337 = vmatprep.subr.bf16.mxu0 %v1018
        %1338 = vmatpush1.bf16.msra.mxu0 %v1017
        %1339 = vmatprep.subr.bf16.mxu0 %v1014
        %1340 = vmatpush1.bf16.msra.mxu0 %v1013
        %1341 = vmatprep.subr.bf16.mxu0 %v1010
        %1342 = vmatpush1.bf16.msra.mxu0 %v1009
        %1343 = vmatprep.subr.bf16.mxu0 %v1006
        %1344 = vmatpush1.bf16.msra.mxu0 %v1005
        %1345 = vmatprep.subr.bf16.mxu0 %v1002
        %1346 = vmatpush1.bf16.msra.mxu0 %v1001
        %1347 = vmatprep.subr.bf16.mxu0 %v998
        %1348 = vmatpush1.bf16.msra.mxu0 %v997
        %1349 = vmatprep.subr.bf16.mxu0 %v1058
        %1350 = vmatpush2.bf16.msra.mxu0 %v1057
        %1351 = vmatprep.subr.bf16.mxu0 %v1054
        %1352 = vmatpush2.bf16.msra.mxu0 %v1053
        %1353 = vmatprep.subr.bf16.mxu0 %v1050
        %1354 = vmatpush2.bf16.msra.mxu0 %v1049
        %1355 = vmatprep.subr.bf16.mxu0 %v1046
        %1356 = vmatpush2.bf16.msra.mxu0 %v1045
        %1357 = vmatprep.subr.bf16.mxu0 %v1042
        %1358 = vmatpush2.bf16.msra.mxu0 %v1041
        %1359 = vmatprep.subr.bf16.mxu0 %v1038
        %1360 = vmatpush2.bf16.msra.mxu0 %v1037
        %1361 = vmatprep.subr.bf16.mxu0 %v1034
        %1362 = vmatpush2.bf16.msra.mxu0 %v1033
        %1363 = vmatprep.subr.bf16.mxu0 %v1030
        %1364 = vmatpush2.bf16.msra.mxu0 %v1029
        %1365 = vmatprep.mubr.bf16.mxu0 %v464
        %1366 = vmatmul.mubr.bf16.gmra.mxu0 %v463
        %v1367 = vpop.f32.mrf.mxu0
        %v1368 = vadd.f32 0.0, %v1367
        %v1369 = vpop.f32.mrf.mxu0
        %v1370 = vadd.f32 0.0, %v1369
        %v1371 = vpop.f32.mrf.mxu0
        %v1372 = vpop.f32.mrf.mxu0
        %1373 = vdwg.mxu0
        %1374 = vmatprep.subr.bf16.mxu0 %v1090
        %1375 = vmatpush1.bf16.msra.mxu0 %v1089
        %1376 = vmatprep.subr.bf16.mxu0 %v1086
        %1377 = vmatpush1.bf16.msra.mxu0 %v1085
        %1378 = vmatprep.subr.bf16.mxu0 %v1082
        %1379 = vmatpush1.bf16.msra.mxu0 %v1081
        %1380 = vmatprep.subr.bf16.mxu0 %v1078
        %1381 = vmatpush1.bf16.msra.mxu0 %v1077
        %1382 = vmatprep.subr.bf16.mxu0 %v1074
        %1383 = vmatpush1.bf16.msra.mxu0 %v1073
        %1384 = vmatprep.subr.bf16.mxu0 %v1070
        %1385 = vmatpush1.bf16.msra.mxu0 %v1069
        %1386 = vmatprep.subr.bf16.mxu0 %v1066
        %1387 = vmatpush1.bf16.msra.mxu0 %v1065
        %1388 = vmatprep.subr.bf16.mxu0 %v1062
        %1389 = vmatpush1.bf16.msra.mxu0 %v1061
        %1390 = vmatprep.subr.bf16.mxu0 %v1122
        %1391 = vmatpush2.bf16.msra.mxu0 %v1121
        %1392 = vmatprep.subr.bf16.mxu0 %v1118
        %1393 = vmatpush2.bf16.msra.mxu0 %v1117
        %1394 = vmatprep.subr.bf16.mxu0 %v1114
        %1395 = vmatpush2.bf16.msra.mxu0 %v1113
        %1396 = vmatprep.subr.bf16.mxu0 %v1110
        %1397 = vmatpush2.bf16.msra.mxu0 %v1109
        %1398 = vmatprep.subr.bf16.mxu0 %v1106
        %1399 = vmatpush2.bf16.msra.mxu0 %v1105
        %1400 = vmatprep.subr.bf16.mxu0 %v1102
        %1401 = vmatpush2.bf16.msra.mxu0 %v1101
        %1402 = vmatprep.subr.bf16.mxu0 %v1098
        %1403 = vmatpush2.bf16.msra.mxu0 %v1097
        %1404 = vmatprep.subr.bf16.mxu0 %v1094
        %1405 = vmatpush2.bf16.msra.mxu0 %v1093
        %1406 = vmatprep.mubr.bf16.mxu0 %v466
        %1407 = vmatmul.mubr.bf16.gmra.mxu0 %v465
        %v1408 = vpop.f32.mrf.mxu0
        %v1409 = vadd.f32 %v1368, %v1408
        %v1410 = vpop.f32.mrf.mxu0
        %v1411 = vadd.f32 %v1370, %v1410
        %v1412 = vpop.f32.mrf.mxu0
        %v1413 = vpop.f32.mrf.mxu0
        %1414 = vdwg.mxu0
        %s1415 = scalar_lea.vmem [#allocation8], 1024
        %v1416 = vld [vmem:[%s1415] sm:$0xff]
        %v1417 = vld [vmem:[%s1415 + $0x8] sm:$0xff]
        %v1418 = vld [vmem:[%s1415 + $0x10] sm:$0xff]
        %v1419 = vld [vmem:[%s1415 + $0x18] sm:$0xff]
        %v1420 = vld [vmem:[%s1415 + $0x20] sm:$0xff]
        %v1421 = vld [vmem:[%s1415 + $0x28] sm:$0xff]
        %v1422 = vld [vmem:[%s1415 + $0x30] sm:$0xff]
        %v1423 = vld [vmem:[%s1415 + $0x38] sm:$0xff]
        %v1424 = vld [vmem:[%s1415 + $0x40] sm:$0xff]
        %v1425 = vld [vmem:[%s1415 + $0x48] sm:$0xff]
        %v1426 = vld [vmem:[%s1415 + $0x50] sm:$0xff]
        %v1427 = vld [vmem:[%s1415 + $0x58] sm:$0xff]
        %v1428 = vld [vmem:[%s1415 + $0x60] sm:$0xff]
        %v1429 = vld [vmem:[%s1415 + $0x68] sm:$0xff]
        %v1430 = vld [vmem:[%s1415 + $0x70] sm:$0xff]
        %v1431 = vld [vmem:[%s1415 + $0x78] sm:$0xff]
        %v1432 = vld [vmem:[%s1415 + $0x80] sm:$0xff]
        %v1433 = vld [vmem:[%s1415 + $0x88] sm:$0xff]
        %v1434 = vld [vmem:[%s1415 + $0x90] sm:$0xff]
        %v1435 = vld [vmem:[%s1415 + $0x98] sm:$0xff]
        %v1436 = vld [vmem:[%s1415 + $0xa0] sm:$0xff]
        %v1437 = vld [vmem:[%s1415 + $0xa8] sm:$0xff]
        %v1438 = vld [vmem:[%s1415 + $0xb0] sm:$0xff]
        %v1439 = vld [vmem:[%s1415 + $0xb8] sm:$0xff]
        %v1440 = vld [vmem:[%s1415 + $0xc0] sm:$0xff]
        %v1441 = vld [vmem:[%s1415 + $0xc8] sm:$0xff]
        %v1442 = vld [vmem:[%s1415 + $0xd0] sm:$0xff]
        %v1443 = vld [vmem:[%s1415 + $0xd8] sm:$0xff]
        %v1444 = vld [vmem:[%s1415 + $0xe0] sm:$0xff]
        %v1445 = vld [vmem:[%s1415 + $0xe8] sm:$0xff]
        %v1446 = vld [vmem:[%s1415 + $0xf0] sm:$0xff]
        %v1447 = vld [vmem:[%s1415 + $0xf8] sm:$0xff]
        %v1448 = vld [vmem:[%s1415 + $0x100] sm:$0xff]
        %v1449 = vld [vmem:[%s1415 + $0x108] sm:$0xff]
        %v1450 = vld [vmem:[%s1415 + $0x110] sm:$0xff]
        %v1451 = vld [vmem:[%s1415 + $0x118] sm:$0xff]
        %v1452 = vld [vmem:[%s1415 + $0x120] sm:$0xff]
        %v1453 = vld [vmem:[%s1415 + $0x128] sm:$0xff]
        %v1454 = vld [vmem:[%s1415 + $0x130] sm:$0xff]
        %v1455 = vld [vmem:[%s1415 + $0x138] sm:$0xff]
        %v1456 = vld [vmem:[%s1415 + $0x140] sm:$0xff]
        %v1457 = vld [vmem:[%s1415 + $0x148] sm:$0xff]
        %v1458 = vld [vmem:[%s1415 + $0x150] sm:$0xff]
        %v1459 = vld [vmem:[%s1415 + $0x158] sm:$0xff]
        %v1460 = vld [vmem:[%s1415 + $0x160] sm:$0xff]
        %v1461 = vld [vmem:[%s1415 + $0x168] sm:$0xff]
        %v1462 = vld [vmem:[%s1415 + $0x170] sm:$0xff]
        %v1463 = vld [vmem:[%s1415 + $0x178] sm:$0xff]
        %v1464 = vld [vmem:[%s1415 + $0x180] sm:$0xff]
        %v1465 = vld [vmem:[%s1415 + $0x188] sm:$0xff]
        %v1466 = vld [vmem:[%s1415 + $0x190] sm:$0xff]
        %v1467 = vld [vmem:[%s1415 + $0x198] sm:$0xff]
        %v1468 = vld [vmem:[%s1415 + $0x1a0] sm:$0xff]
        %v1469 = vld [vmem:[%s1415 + $0x1a8] sm:$0xff]
        %v1470 = vld [vmem:[%s1415 + $0x1b0] sm:$0xff]
        %v1471 = vld [vmem:[%s1415 + $0x1b8] sm:$0xff]
        %v1472 = vld [vmem:[%s1415 + $0x1c0] sm:$0xff]
        %v1473 = vld [vmem:[%s1415 + $0x1c8] sm:$0xff]
        %v1474 = vld [vmem:[%s1415 + $0x1d0] sm:$0xff]
        %v1475 = vld [vmem:[%s1415 + $0x1d8] sm:$0xff]
        %v1476 = vld [vmem:[%s1415 + $0x1e0] sm:$0xff]
        %v1477 = vld [vmem:[%s1415 + $0x1e8] sm:$0xff]
        %v1478 = vld [vmem:[%s1415 + $0x1f0] sm:$0xff]
        %v1479 = vld [vmem:[%s1415 + $0x1f8] sm:$0xff]
        %v1480 = vld [vmem:[%s1415 + $0x200] sm:$0xff]
        %v1481 = vld [vmem:[%s1415 + $0x208] sm:$0xff]
        %v1482 = vld [vmem:[%s1415 + $0x210] sm:$0xff]
        %v1483 = vld [vmem:[%s1415 + $0x218] sm:$0xff]
        %v1484 = vld [vmem:[%s1415 + $0x220] sm:$0xff]
        %v1485 = vld [vmem:[%s1415 + $0x228] sm:$0xff]
        %v1486 = vld [vmem:[%s1415 + $0x230] sm:$0xff]
        %v1487 = vld [vmem:[%s1415 + $0x238] sm:$0xff]
        %v1488 = vld [vmem:[%s1415 + $0x240] sm:$0xff]
        %v1489 = vld [vmem:[%s1415 + $0x248] sm:$0xff]
        %v1490 = vld [vmem:[%s1415 + $0x250] sm:$0xff]
        %v1491 = vld [vmem:[%s1415 + $0x258] sm:$0xff]
        %v1492 = vld [vmem:[%s1415 + $0x260] sm:$0xff]
        %v1493 = vld [vmem:[%s1415 + $0x268] sm:$0xff]
        %v1494 = vld [vmem:[%s1415 + $0x270] sm:$0xff]
        %v1495 = vld [vmem:[%s1415 + $0x278] sm:$0xff]
        %v1496 = vld [vmem:[%s1415 + $0x280] sm:$0xff]
        %v1497 = vld [vmem:[%s1415 + $0x288] sm:$0xff]
        %v1498 = vld [vmem:[%s1415 + $0x290] sm:$0xff]
        %v1499 = vld [vmem:[%s1415 + $0x298] sm:$0xff]
        %v1500 = vld [vmem:[%s1415 + $0x2a0] sm:$0xff]
        %v1501 = vld [vmem:[%s1415 + $0x2a8] sm:$0xff]
        %v1502 = vld [vmem:[%s1415 + $0x2b0] sm:$0xff]
        %v1503 = vld [vmem:[%s1415 + $0x2b8] sm:$0xff]
        %v1504 = vld [vmem:[%s1415 + $0x2c0] sm:$0xff]
        %v1505 = vld [vmem:[%s1415 + $0x2c8] sm:$0xff]
        %v1506 = vld [vmem:[%s1415 + $0x2d0] sm:$0xff]
        %v1507 = vld [vmem:[%s1415 + $0x2d8] sm:$0xff]
        %v1508 = vld [vmem:[%s1415 + $0x2e0] sm:$0xff]
        %v1509 = vld [vmem:[%s1415 + $0x2e8] sm:$0xff]
        %v1510 = vld [vmem:[%s1415 + $0x2f0] sm:$0xff]
        %v1511 = vld [vmem:[%s1415 + $0x2f8] sm:$0xff]
        %v1512 = vld [vmem:[%s1415 + $0x300] sm:$0xff]
        %v1513 = vld [vmem:[%s1415 + $0x308] sm:$0xff]
        %v1514 = vld [vmem:[%s1415 + $0x310] sm:$0xff]
        %v1515 = vld [vmem:[%s1415 + $0x318] sm:$0xff]
        %v1516 = vld [vmem:[%s1415 + $0x320] sm:$0xff]
        %v1517 = vld [vmem:[%s1415 + $0x328] sm:$0xff]
        %v1518 = vld [vmem:[%s1415 + $0x330] sm:$0xff]
        %v1519 = vld [vmem:[%s1415 + $0x338] sm:$0xff]
        %v1520 = vld [vmem:[%s1415 + $0x340] sm:$0xff]
        %v1521 = vld [vmem:[%s1415 + $0x348] sm:$0xff]
        %v1522 = vld [vmem:[%s1415 + $0x350] sm:$0xff]
        %v1523 = vld [vmem:[%s1415 + $0x358] sm:$0xff]
        %v1524 = vld [vmem:[%s1415 + $0x360] sm:$0xff]
        %v1525 = vld [vmem:[%s1415 + $0x368] sm:$0xff]
        %v1526 = vld [vmem:[%s1415 + $0x370] sm:$0xff]
        %v1527 = vld [vmem:[%s1415 + $0x378] sm:$0xff]
        %v1528 = vld [vmem:[%s1415 + $0x380] sm:$0xff]
        %v1529 = vld [vmem:[%s1415 + $0x388] sm:$0xff]
        %v1530 = vld [vmem:[%s1415 + $0x390] sm:$0xff]
        %v1531 = vld [vmem:[%s1415 + $0x398] sm:$0xff]
        %v1532 = vld [vmem:[%s1415 + $0x3a0] sm:$0xff]
        %v1533 = vld [vmem:[%s1415 + $0x3a8] sm:$0xff]
        %v1534 = vld [vmem:[%s1415 + $0x3b0] sm:$0xff]
        %v1535 = vld [vmem:[%s1415 + $0x3b8] sm:$0xff]
        %v1536 = vld [vmem:[%s1415 + $0x3c0] sm:$0xff]
        %v1537 = vld [vmem:[%s1415 + $0x3c8] sm:$0xff]
        %v1538 = vld [vmem:[%s1415 + $0x3d0] sm:$0xff]
        %v1539 = vld [vmem:[%s1415 + $0x3d8] sm:$0xff]
        %v1540 = vld [vmem:[%s1415 + $0x3e0] sm:$0xff]
        %v1541 = vld [vmem:[%s1415 + $0x3e8] sm:$0xff]
        %v1542 = vld [vmem:[%s1415 + $0x3f0] sm:$0xff]
        %v1543 = vld [vmem:[%s1415 + $0x3f8] sm:$0xff]
        %v1672 = vunpack.c.l.b16 %v1416
        %v1673 = vunpack.c.h.b16 %v1416
        %v1674 = vunpack.c.l.b16 %v1417
        %v1675 = vunpack.c.h.b16 %v1417
        %v1676 = vunpack.c.l.b16 %v1418
        %v1677 = vunpack.c.h.b16 %v1418
        %v1678 = vunpack.c.l.b16 %v1419
        %v1679 = vunpack.c.h.b16 %v1419
        %v1680 = vunpack.c.l.b16 %v1420
        %v1681 = vunpack.c.h.b16 %v1420
        %v1682 = vunpack.c.l.b16 %v1421
        %v1683 = vunpack.c.h.b16 %v1421
        %v1684 = vunpack.c.l.b16 %v1422
        %v1685 = vunpack.c.h.b16 %v1422
        %v1686 = vunpack.c.l.b16 %v1423
        %v1687 = vunpack.c.h.b16 %v1423
        %v1688 = vunpack.c.l.b16 %v1424
        %v1689 = vunpack.c.h.b16 %v1424
        %v1690 = vunpack.c.l.b16 %v1425
        %v1691 = vunpack.c.h.b16 %v1425
        %v1692 = vunpack.c.l.b16 %v1426
        %v1693 = vunpack.c.h.b16 %v1426
        %v1694 = vunpack.c.l.b16 %v1427
        %v1695 = vunpack.c.h.b16 %v1427
        %v1696 = vunpack.c.l.b16 %v1428
        %v1697 = vunpack.c.h.b16 %v1428
        %v1698 = vunpack.c.l.b16 %v1429
        %v1699 = vunpack.c.h.b16 %v1429
        %v1700 = vunpack.c.l.b16 %v1430
        %v1701 = vunpack.c.h.b16 %v1430
        %v1702 = vunpack.c.l.b16 %v1431
        %v1703 = vunpack.c.h.b16 %v1431
        %v1704 = vunpack.c.l.b16 %v1432
        %v1705 = vunpack.c.h.b16 %v1432
        %v1706 = vunpack.c.l.b16 %v1433
        %v1707 = vunpack.c.h.b16 %v1433
        %v1708 = vunpack.c.l.b16 %v1434
        %v1709 = vunpack.c.h.b16 %v1434
        %v1710 = vunpack.c.l.b16 %v1435
        %v1711 = vunpack.c.h.b16 %v1435
        %v1712 = vunpack.c.l.b16 %v1436
        %v1713 = vunpack.c.h.b16 %v1436
        %v1714 = vunpack.c.l.b16 %v1437
        %v1715 = vunpack.c.h.b16 %v1437
        %v1716 = vunpack.c.l.b16 %v1438
        %v1717 = vunpack.c.h.b16 %v1438
        %v1718 = vunpack.c.l.b16 %v1439
        %v1719 = vunpack.c.h.b16 %v1439
        %v1720 = vunpack.c.l.b16 %v1440
        %v1721 = vunpack.c.h.b16 %v1440
        %v1722 = vunpack.c.l.b16 %v1441
        %v1723 = vunpack.c.h.b16 %v1441
        %v1724 = vunpack.c.l.b16 %v1442
        %v1725 = vunpack.c.h.b16 %v1442
        %v1726 = vunpack.c.l.b16 %v1443
        %v1727 = vunpack.c.h.b16 %v1443
        %v1728 = vunpack.c.l.b16 %v1444
        %v1729 = vunpack.c.h.b16 %v1444
        %v1730 = vunpack.c.l.b16 %v1445
        %v1731 = vunpack.c.h.b16 %v1445
        %v1732 = vunpack.c.l.b16 %v1446
        %v1733 = vunpack.c.h.b16 %v1446
        %v1734 = vunpack.c.l.b16 %v1447
        %v1735 = vunpack.c.h.b16 %v1447
        %v1736 = vunpack.c.l.b16 %v1448
        %v1737 = vunpack.c.h.b16 %v1448
        %v1738 = vunpack.c.l.b16 %v1449
        %v1739 = vunpack.c.h.b16 %v1449
        %v1740 = vunpack.c.l.b16 %v1450
        %v1741 = vunpack.c.h.b16 %v1450
        %v1742 = vunpack.c.l.b16 %v1451
        %v1743 = vunpack.c.h.b16 %v1451
        %v1744 = vunpack.c.l.b16 %v1452
        %v1745 = vunpack.c.h.b16 %v1452
        %v1746 = vunpack.c.l.b16 %v1453
        %v1747 = vunpack.c.h.b16 %v1453
        %v1748 = vunpack.c.l.b16 %v1454
        %v1749 = vunpack.c.h.b16 %v1454
        %v1750 = vunpack.c.l.b16 %v1455
        %v1751 = vunpack.c.h.b16 %v1455
        %v1752 = vunpack.c.l.b16 %v1456
        %v1753 = vunpack.c.h.b16 %v1456
        %v1754 = vunpack.c.l.b16 %v1457
        %v1755 = vunpack.c.h.b16 %v1457
        %v1756 = vunpack.c.l.b16 %v1458
        %v1757 = vunpack.c.h.b16 %v1458
        %v1758 = vunpack.c.l.b16 %v1459
        %v1759 = vunpack.c.h.b16 %v1459
        %v1760 = vunpack.c.l.b16 %v1460
        %v1761 = vunpack.c.h.b16 %v1460
        %v1762 = vunpack.c.l.b16 %v1461
        %v1763 = vunpack.c.h.b16 %v1461
        %v1764 = vunpack.c.l.b16 %v1462
        %v1765 = vunpack.c.h.b16 %v1462
        %v1766 = vunpack.c.l.b16 %v1463
        %v1767 = vunpack.c.h.b16 %v1463
        %v1768 = vunpack.c.l.b16 %v1464
        %v1769 = vunpack.c.h.b16 %v1464
        %v1770 = vunpack.c.l.b16 %v1465
        %v1771 = vunpack.c.h.b16 %v1465
        %v1772 = vunpack.c.l.b16 %v1466
        %v1773 = vunpack.c.h.b16 %v1466
        %v1774 = vunpack.c.l.b16 %v1467
        %v1775 = vunpack.c.h.b16 %v1467
        %v1776 = vunpack.c.l.b16 %v1468
        %v1777 = vunpack.c.h.b16 %v1468
        %v1778 = vunpack.c.l.b16 %v1469
        %v1779 = vunpack.c.h.b16 %v1469
        %v1780 = vunpack.c.l.b16 %v1470
        %v1781 = vunpack.c.h.b16 %v1470
        %v1782 = vunpack.c.l.b16 %v1471
        %v1783 = vunpack.c.h.b16 %v1471
        %v1784 = vunpack.c.l.b16 %v1472
        %v1785 = vunpack.c.h.b16 %v1472
        %v1786 = vunpack.c.l.b16 %v1473
        %v1787 = vunpack.c.h.b16 %v1473
        %v1788 = vunpack.c.l.b16 %v1474
        %v1789 = vunpack.c.h.b16 %v1474
        %v1790 = vunpack.c.l.b16 %v1475
        %v1791 = vunpack.c.h.b16 %v1475
        %v1792 = vunpack.c.l.b16 %v1476
        %v1793 = vunpack.c.h.b16 %v1476
        %v1794 = vunpack.c.l.b16 %v1477
        %v1795 = vunpack.c.h.b16 %v1477
        %v1796 = vunpack.c.l.b16 %v1478
        %v1797 = vunpack.c.h.b16 %v1478
        %v1798 = vunpack.c.l.b16 %v1479
        %v1799 = vunpack.c.h.b16 %v1479
        %v1800 = vunpack.c.l.b16 %v1480
        %v1801 = vunpack.c.h.b16 %v1480
        %v1802 = vunpack.c.l.b16 %v1481
        %v1803 = vunpack.c.h.b16 %v1481
        %v1804 = vunpack.c.l.b16 %v1482
        %v1805 = vunpack.c.h.b16 %v1482
        %v1806 = vunpack.c.l.b16 %v1483
        %v1807 = vunpack.c.h.b16 %v1483
        %v1808 = vunpack.c.l.b16 %v1484
        %v1809 = vunpack.c.h.b16 %v1484
        %v1810 = vunpack.c.l.b16 %v1485
        %v1811 = vunpack.c.h.b16 %v1485
        %v1812 = vunpack.c.l.b16 %v1486
        %v1813 = vunpack.c.h.b16 %v1486
        %v1814 = vunpack.c.l.b16 %v1487
        %v1815 = vunpack.c.h.b16 %v1487
        %v1816 = vunpack.c.l.b16 %v1488
        %v1817 = vunpack.c.h.b16 %v1488
        %v1818 = vunpack.c.l.b16 %v1489
        %v1819 = vunpack.c.h.b16 %v1489
        %v1820 = vunpack.c.l.b16 %v1490
        %v1821 = vunpack.c.h.b16 %v1490
        %v1822 = vunpack.c.l.b16 %v1491
        %v1823 = vunpack.c.h.b16 %v1491
        %v1824 = vunpack.c.l.b16 %v1492
        %v1825 = vunpack.c.h.b16 %v1492
        %v1826 = vunpack.c.l.b16 %v1493
        %v1827 = vunpack.c.h.b16 %v1493
        %v1828 = vunpack.c.l.b16 %v1494
        %v1829 = vunpack.c.h.b16 %v1494
        %v1830 = vunpack.c.l.b16 %v1495
        %v1831 = vunpack.c.h.b16 %v1495
        %v1832 = vunpack.c.l.b16 %v1496
        %v1833 = vunpack.c.h.b16 %v1496
        %v1834 = vunpack.c.l.b16 %v1497
        %v1835 = vunpack.c.h.b16 %v1497
        %v1836 = vunpack.c.l.b16 %v1498
        %v1837 = vunpack.c.h.b16 %v1498
        %v1838 = vunpack.c.l.b16 %v1499
        %v1839 = vunpack.c.h.b16 %v1499
        %v1840 = vunpack.c.l.b16 %v1500
        %v1841 = vunpack.c.h.b16 %v1500
        %v1842 = vunpack.c.l.b16 %v1501
        %v1843 = vunpack.c.h.b16 %v1501
        %v1844 = vunpack.c.l.b16 %v1502
        %v1845 = vunpack.c.h.b16 %v1502
        %v1846 = vunpack.c.l.b16 %v1503
        %v1847 = vunpack.c.h.b16 %v1503
        %v1848 = vunpack.c.l.b16 %v1504
        %v1849 = vunpack.c.h.b16 %v1504
        %v1850 = vunpack.c.l.b16 %v1505
        %v1851 = vunpack.c.h.b16 %v1505
        %v1852 = vunpack.c.l.b16 %v1506
        %v1853 = vunpack.c.h.b16 %v1506
        %v1854 = vunpack.c.l.b16 %v1507
        %v1855 = vunpack.c.h.b16 %v1507
        %v1856 = vunpack.c.l.b16 %v1508
        %v1857 = vunpack.c.h.b16 %v1508
        %v1858 = vunpack.c.l.b16 %v1509
        %v1859 = vunpack.c.h.b16 %v1509
        %v1860 = vunpack.c.l.b16 %v1510
        %v1861 = vunpack.c.h.b16 %v1510
        %v1862 = vunpack.c.l.b16 %v1511
        %v1863 = vunpack.c.h.b16 %v1511
        %v1864 = vunpack.c.l.b16 %v1512
        %v1865 = vunpack.c.h.b16 %v1512
        %v1866 = vunpack.c.l.b16 %v1513
        %v1867 = vunpack.c.h.b16 %v1513
        %v1868 = vunpack.c.l.b16 %v1514
        %v1869 = vunpack.c.h.b16 %v1514
        %v1870 = vunpack.c.l.b16 %v1515
        %v1871 = vunpack.c.h.b16 %v1515
        %v1872 = vunpack.c.l.b16 %v1516
        %v1873 = vunpack.c.h.b16 %v1516
        %v1874 = vunpack.c.l.b16 %v1517
        %v1875 = vunpack.c.h.b16 %v1517
        %v1876 = vunpack.c.l.b16 %v1518
        %v1877 = vunpack.c.h.b16 %v1518
        %v1878 = vunpack.c.l.b16 %v1519
        %v1879 = vunpack.c.h.b16 %v1519
        %v1880 = vunpack.c.l.b16 %v1520
        %v1881 = vunpack.c.h.b16 %v1520
        %v1882 = vunpack.c.l.b16 %v1521
        %v1883 = vunpack.c.h.b16 %v1521
        %v1884 = vunpack.c.l.b16 %v1522
        %v1885 = vunpack.c.h.b16 %v1522
        %v1886 = vunpack.c.l.b16 %v1523
        %v1887 = vunpack.c.h.b16 %v1523
        %v1888 = vunpack.c.l.b16 %v1524
        %v1889 = vunpack.c.h.b16 %v1524
        %v1890 = vunpack.c.l.b16 %v1525
        %v1891 = vunpack.c.h.b16 %v1525
        %v1892 = vunpack.c.l.b16 %v1526
        %v1893 = vunpack.c.h.b16 %v1526
        %v1894 = vunpack.c.l.b16 %v1527
        %v1895 = vunpack.c.h.b16 %v1527
        %v1896 = vunpack.c.l.b16 %v1528
        %v1897 = vunpack.c.h.b16 %v1528
        %v1898 = vunpack.c.l.b16 %v1529
        %v1899 = vunpack.c.h.b16 %v1529
        %v1900 = vunpack.c.l.b16 %v1530
        %v1901 = vunpack.c.h.b16 %v1530
        %v1902 = vunpack.c.l.b16 %v1531
        %v1903 = vunpack.c.h.b16 %v1531
        %v1904 = vunpack.c.l.b16 %v1532
        %v1905 = vunpack.c.h.b16 %v1532
        %v1906 = vunpack.c.l.b16 %v1533
        %v1907 = vunpack.c.h.b16 %v1533
        %v1908 = vunpack.c.l.b16 %v1534
        %v1909 = vunpack.c.h.b16 %v1534
        %v1910 = vunpack.c.l.b16 %v1535
        %v1911 = vunpack.c.h.b16 %v1535
        %v1912 = vunpack.c.l.b16 %v1536
        %v1913 = vunpack.c.h.b16 %v1536
        %v1914 = vunpack.c.l.b16 %v1537
        %v1915 = vunpack.c.h.b16 %v1537
        %v1916 = vunpack.c.l.b16 %v1538
        %v1917 = vunpack.c.h.b16 %v1538
        %v1918 = vunpack.c.l.b16 %v1539
        %v1919 = vunpack.c.h.b16 %v1539
        %v1920 = vunpack.c.l.b16 %v1540
        %v1921 = vunpack.c.h.b16 %v1540
        %v1922 = vunpack.c.l.b16 %v1541
        %v1923 = vunpack.c.h.b16 %v1541
        %v1924 = vunpack.c.l.b16 %v1542
        %v1925 = vunpack.c.h.b16 %v1542
        %v1926 = vunpack.c.l.b16 %v1543
        %v1927 = vunpack.c.h.b16 %v1543
        %v1928 = vpack.c.b16 %v1676, %v1672
        %v1929 = vpack.c.b16 %v1677, %v1673
        %v1930 = vpack.c.b16 %v1678, %v1674
        %v1931 = vpack.c.b16 %v1679, %v1675
        %v1932 = vpack.c.b16 %v1684, %v1680
        %v1933 = vpack.c.b16 %v1685, %v1681
        %v1934 = vpack.c.b16 %v1686, %v1682
        %v1935 = vpack.c.b16 %v1687, %v1683
        %v1936 = vpack.c.b16 %v1692, %v1688
        %v1937 = vpack.c.b16 %v1693, %v1689
        %v1938 = vpack.c.b16 %v1694, %v1690
        %v1939 = vpack.c.b16 %v1695, %v1691
        %v1940 = vpack.c.b16 %v1700, %v1696
        %v1941 = vpack.c.b16 %v1701, %v1697
        %v1942 = vpack.c.b16 %v1702, %v1698
        %v1943 = vpack.c.b16 %v1703, %v1699
        %v1944 = vpack.c.b16 %v1708, %v1704
        %v1945 = vpack.c.b16 %v1709, %v1705
        %v1946 = vpack.c.b16 %v1710, %v1706
        %v1947 = vpack.c.b16 %v1711, %v1707
        %v1948 = vpack.c.b16 %v1716, %v1712
        %v1949 = vpack.c.b16 %v1717, %v1713
        %v1950 = vpack.c.b16 %v1718, %v1714
        %v1951 = vpack.c.b16 %v1719, %v1715
        %v1952 = vpack.c.b16 %v1724, %v1720
        %v1953 = vpack.c.b16 %v1725, %v1721
        %v1954 = vpack.c.b16 %v1726, %v1722
        %v1955 = vpack.c.b16 %v1727, %v1723
        %v1956 = vpack.c.b16 %v1732, %v1728
        %v1957 = vpack.c.b16 %v1733, %v1729
        %v1958 = vpack.c.b16 %v1734, %v1730
        %v1959 = vpack.c.b16 %v1735, %v1731
        %v1960 = vpack.c.b16 %v1740, %v1736
        %v1961 = vpack.c.b16 %v1741, %v1737
        %v1962 = vpack.c.b16 %v1742, %v1738
        %v1963 = vpack.c.b16 %v1743, %v1739
        %v1964 = vpack.c.b16 %v1748, %v1744
        %v1965 = vpack.c.b16 %v1749, %v1745
        %v1966 = vpack.c.b16 %v1750, %v1746
        %v1967 = vpack.c.b16 %v1751, %v1747
        %v1968 = vpack.c.b16 %v1756, %v1752
        %v1969 = vpack.c.b16 %v1757, %v1753
        %v1970 = vpack.c.b16 %v1758, %v1754
        %v1971 = vpack.c.b16 %v1759, %v1755
        %v1972 = vpack.c.b16 %v1764, %v1760
        %v1973 = vpack.c.b16 %v1765, %v1761
        %v1974 = vpack.c.b16 %v1766, %v1762
        %v1975 = vpack.c.b16 %v1767, %v1763
        %v1976 = vpack.c.b16 %v1772, %v1768
        %v1977 = vpack.c.b16 %v1773, %v1769
        %v1978 = vpack.c.b16 %v1774, %v1770
        %v1979 = vpack.c.b16 %v1775, %v1771
        %v1980 = vpack.c.b16 %v1780, %v1776
        %v1981 = vpack.c.b16 %v1781, %v1777
        %v1982 = vpack.c.b16 %v1782, %v1778
        %v1983 = vpack.c.b16 %v1783, %v1779
        %v1984 = vpack.c.b16 %v1788, %v1784
        %v1985 = vpack.c.b16 %v1789, %v1785
        %v1986 = vpack.c.b16 %v1790, %v1786
        %v1987 = vpack.c.b16 %v1791, %v1787
        %v1988 = vpack.c.b16 %v1796, %v1792
        %v1989 = vpack.c.b16 %v1797, %v1793
        %v1990 = vpack.c.b16 %v1798, %v1794
        %v1991 = vpack.c.b16 %v1799, %v1795
        %v1992 = vpack.c.b16 %v1804, %v1800
        %v1993 = vpack.c.b16 %v1805, %v1801
        %v1994 = vpack.c.b16 %v1806, %v1802
        %v1995 = vpack.c.b16 %v1807, %v1803
        %v1996 = vpack.c.b16 %v1812, %v1808
        %v1997 = vpack.c.b16 %v1813, %v1809
        %v1998 = vpack.c.b16 %v1814, %v1810
        %v1999 = vpack.c.b16 %v1815, %v1811
        %v2000 = vpack.c.b16 %v1820, %v1816
        %v2001 = vpack.c.b16 %v1821, %v1817
        %v2002 = vpack.c.b16 %v1822, %v1818
        %v2003 = vpack.c.b16 %v1823, %v1819
        %v2004 = vpack.c.b16 %v1828, %v1824
        %v2005 = vpack.c.b16 %v1829, %v1825
        %v2006 = vpack.c.b16 %v1830, %v1826
        %v2007 = vpack.c.b16 %v1831, %v1827
        %v2008 = vpack.c.b16 %v1836, %v1832
        %v2009 = vpack.c.b16 %v1837, %v1833
        %v2010 = vpack.c.b16 %v1838, %v1834
        %v2011 = vpack.c.b16 %v1839, %v1835
        %v2012 = vpack.c.b16 %v1844, %v1840
        %v2013 = vpack.c.b16 %v1845, %v1841
        %v2014 = vpack.c.b16 %v1846, %v1842
        %v2015 = vpack.c.b16 %v1847, %v1843
        %v2016 = vpack.c.b16 %v1852, %v1848
        %v2017 = vpack.c.b16 %v1853, %v1849
        %v2018 = vpack.c.b16 %v1854, %v1850
        %v2019 = vpack.c.b16 %v1855, %v1851
        %v2020 = vpack.c.b16 %v1860, %v1856
        %v2021 = vpack.c.b16 %v1861, %v1857
        %v2022 = vpack.c.b16 %v1862, %v1858
        %v2023 = vpack.c.b16 %v1863, %v1859
        %v2024 = vpack.c.b16 %v1868, %v1864
        %v2025 = vpack.c.b16 %v1869, %v1865
        %v2026 = vpack.c.b16 %v1870, %v1866
        %v2027 = vpack.c.b16 %v1871, %v1867
        %v2028 = vpack.c.b16 %v1876, %v1872
        %v2029 = vpack.c.b16 %v1877, %v1873
        %v2030 = vpack.c.b16 %v1878, %v1874
        %v2031 = vpack.c.b16 %v1879, %v1875
        %v2032 = vpack.c.b16 %v1884, %v1880
        %v2033 = vpack.c.b16 %v1885, %v1881
        %v2034 = vpack.c.b16 %v1886, %v1882
        %v2035 = vpack.c.b16 %v1887, %v1883
        %v2036 = vpack.c.b16 %v1892, %v1888
        %v2037 = vpack.c.b16 %v1893, %v1889
        %v2038 = vpack.c.b16 %v1894, %v1890
        %v2039 = vpack.c.b16 %v1895, %v1891
        %v2040 = vpack.c.b16 %v1900, %v1896
        %v2041 = vpack.c.b16 %v1901, %v1897
        %v2042 = vpack.c.b16 %v1902, %v1898
        %v2043 = vpack.c.b16 %v1903, %v1899
        %v2044 = vpack.c.b16 %v1908, %v1904
        %v2045 = vpack.c.b16 %v1909, %v1905
        %v2046 = vpack.c.b16 %v1910, %v1906
        %v2047 = vpack.c.b16 %v1911, %v1907
        %v2048 = vpack.c.b16 %v1916, %v1912
        %v2049 = vpack.c.b16 %v1917, %v1913
        %v2050 = vpack.c.b16 %v1918, %v1914
        %v2051 = vpack.c.b16 %v1919, %v1915
        %v2052 = vpack.c.b16 %v1924, %v1920
        %v2053 = vpack.c.b16 %v1925, %v1921
        %v2054 = vpack.c.b16 %v1926, %v1922
        %v2055 = vpack.c.b16 %v1927, %v1923
        %2184 = vmatprep.subr.bf16.mxu0 %v1957
        %2185 = vmatpush1.bf16.msra.mxu0 %v1956
        %2186 = vmatprep.subr.bf16.mxu0 %v1953
        %2187 = vmatpush1.bf16.msra.mxu0 %v1952
        %2188 = vmatprep.subr.bf16.mxu0 %v1949
        %2189 = vmatpush1.bf16.msra.mxu0 %v1948
        %2190 = vmatprep.subr.bf16.mxu0 %v1945
        %2191 = vmatpush1.bf16.msra.mxu0 %v1944
        %2192 = vmatprep.subr.bf16.mxu0 %v1941
        %2193 = vmatpush1.bf16.msra.mxu0 %v1940
        %2194 = vmatprep.subr.bf16.mxu0 %v1937
        %2195 = vmatpush1.bf16.msra.mxu0 %v1936
        %2196 = vmatprep.subr.bf16.mxu0 %v1933
        %2197 = vmatpush1.bf16.msra.mxu0 %v1932
        %2198 = vmatprep.subr.bf16.mxu0 %v1929
        %2199 = vmatpush1.bf16.msra.mxu0 %v1928
        %2200 = vmatprep.subr.bf16.mxu0 %v1989
        %2201 = vmatpush2.bf16.msra.mxu0 %v1988
        %2202 = vmatprep.subr.bf16.mxu0 %v1985
        %2203 = vmatpush2.bf16.msra.mxu0 %v1984
        %2204 = vmatprep.subr.bf16.mxu0 %v1981
        %2205 = vmatpush2.bf16.msra.mxu0 %v1980
        %2206 = vmatprep.subr.bf16.mxu0 %v1977
        %2207 = vmatpush2.bf16.msra.mxu0 %v1976
        %2208 = vmatprep.subr.bf16.mxu0 %v1973
        %2209 = vmatpush2.bf16.msra.mxu0 %v1972
        %2210 = vmatprep.subr.bf16.mxu0 %v1969
        %2211 = vmatpush2.bf16.msra.mxu0 %v1968
        %2212 = vmatprep.subr.bf16.mxu0 %v1965
        %2213 = vmatpush2.bf16.msra.mxu0 %v1964
        %2214 = vmatprep.subr.bf16.mxu0 %v1961
        %2215 = vmatpush2.bf16.msra.mxu0 %v1960
        %2216 = vmatprep.mubr.bf16.mxu0 %v472
        %2217 = vmatmul.mubr.bf16.gmra.mxu0 %v471
        %v2218 = vpop.f32.mrf.mxu0
        %v2219 = vadd.f32 0.0, %v2218
        %v2220 = vpop.f32.mrf.mxu0
        %v2221 = vadd.f32 0.0, %v2220
        %v2222 = vpop.f32.mrf.mxu0
        %v2223 = vpop.f32.mrf.mxu0
        %2224 = vdwg.mxu0
        %2225 = vmatprep.subr.bf16.mxu0 %v2021
        %2226 = vmatpush1.bf16.msra.mxu0 %v2020
        %2227 = vmatprep.subr.bf16.mxu0 %v2017
        %2228 = vmatpush1.bf16.msra.mxu0 %v2016
        %2229 = vmatprep.subr.bf16.mxu0 %v2013
        %2230 = vmatpush1.bf16.msra.mxu0 %v2012
        %2231 = vmatprep.subr.bf16.mxu0 %v2009
        %2232 = vmatpush1.bf16.msra.mxu0 %v2008
        %2233 = vmatprep.subr.bf16.mxu0 %v2005
        %2234 = vmatpush1.bf16.msra.mxu0 %v2004
        %2235 = vmatprep.subr.bf16.mxu0 %v2001
        %2236 = vmatpush1.bf16.msra.mxu0 %v2000
        %2237 = vmatprep.subr.bf16.mxu0 %v1997
        %2238 = vmatpush1.bf16.msra.mxu0 %v1996
        %2239 = vmatprep.subr.bf16.mxu0 %v1993
        %2240 = vmatpush1.bf16.msra.mxu0 %v1992
        %2241 = vmatprep.subr.bf16.mxu0 %v2053
        %2242 = vmatpush2.bf16.msra.mxu0 %v2052
        %2243 = vmatprep.subr.bf16.mxu0 %v2049
        %2244 = vmatpush2.bf16.msra.mxu0 %v2048
        %2245 = vmatprep.subr.bf16.mxu0 %v2045
        %2246 = vmatpush2.bf16.msra.mxu0 %v2044
        %2247 = vmatprep.subr.bf16.mxu0 %v2041
        %2248 = vmatpush2.bf16.msra.mxu0 %v2040
        %2249 = vmatprep.subr.bf16.mxu0 %v2037
        %2250 = vmatpush2.bf16.msra.mxu0 %v2036
        %2251 = vmatprep.subr.bf16.mxu0 %v2033
        %2252 = vmatpush2.bf16.msra.mxu0 %v2032
        %2253 = vmatprep.subr.bf16.mxu0 %v2029
        %2254 = vmatpush2.bf16.msra.mxu0 %v2028
        %2255 = vmatprep.subr.bf16.mxu0 %v2025
        %2256 = vmatpush2.bf16.msra.mxu0 %v2024
        %2257 = vmatprep.mubr.bf16.mxu0 %v474
        %2258 = vmatmul.mubr.bf16.gmra.mxu0 %v473
        %v2259 = vpop.f32.mrf.mxu0
        %v2260 = vadd.f32 %v2219, %v2259
        %v2261 = vpop.f32.mrf.mxu0
        %v2262 = vadd.f32 %v2221, %v2261
        %v2263 = vpop.f32.mrf.mxu0
        %v2264 = vpop.f32.mrf.mxu0
        %2265 = vdwg.mxu0
        %2266 = vmatprep.subr.bf16.mxu0 %v1959
        %2267 = vmatpush1.bf16.msra.mxu0 %v1958
        %2268 = vmatprep.subr.bf16.mxu0 %v1955
        %2269 = vmatpush1.bf16.msra.mxu0 %v1954
        %2270 = vmatprep.subr.bf16.mxu0 %v1951
        %2271 = vmatpush1.bf16.msra.mxu0 %v1950
        %2272 = vmatprep.subr.bf16.mxu0 %v1947
        %2273 = vmatpush1.bf16.msra.mxu0 %v1946
        %2274 = vmatprep.subr.bf16.mxu0 %v1943
        %2275 = vmatpush1.bf16.msra.mxu0 %v1942
        %2276 = vmatprep.subr.bf16.mxu0 %v1939
        %2277 = vmatpush1.bf16.msra.mxu0 %v1938
        %2278 = vmatprep.subr.bf16.mxu0 %v1935
        %2279 = vmatpush1.bf16.msra.mxu0 %v1934
        %2280 = vmatprep.subr.bf16.mxu0 %v1931
        %2281 = vmatpush1.bf16.msra.mxu0 %v1930
        %2282 = vmatprep.subr.bf16.mxu0 %v1991
        %2283 = vmatpush2.bf16.msra.mxu0 %v1990
        %2284 = vmatprep.subr.bf16.mxu0 %v1987
        %2285 = vmatpush2.bf16.msra.mxu0 %v1986
        %2286 = vmatprep.subr.bf16.mxu0 %v1983
        %2287 = vmatpush2.bf16.msra.mxu0 %v1982
        %2288 = vmatprep.subr.bf16.mxu0 %v1979
        %2289 = vmatpush2.bf16.msra.mxu0 %v1978
        %2290 = vmatprep.subr.bf16.mxu0 %v1975
        %2291 = vmatpush2.bf16.msra.mxu0 %v1974
        %2292 = vmatprep.subr.bf16.mxu0 %v1971
        %2293 = vmatpush2.bf16.msra.mxu0 %v1970
        %2294 = vmatprep.subr.bf16.mxu0 %v1967
        %2295 = vmatpush2.bf16.msra.mxu0 %v1966
        %2296 = vmatprep.subr.bf16.mxu0 %v1963
        %2297 = vmatpush2.bf16.msra.mxu0 %v1962
        %2298 = vmatprep.mubr.bf16.mxu0 %v472
        %2299 = vmatmul.mubr.bf16.gmra.mxu0 %v471
        %v2300 = vpop.f32.mrf.mxu0
        %v2301 = vadd.f32 0.0, %v2300
        %v2302 = vpop.f32.mrf.mxu0
        %v2303 = vadd.f32 0.0, %v2302
        %v2304 = vpop.f32.mrf.mxu0
        %v2305 = vpop.f32.mrf.mxu0
        %2306 = vdwg.mxu0
        %2307 = vmatprep.subr.bf16.mxu0 %v2023
        %2308 = vmatpush1.bf16.msra.mxu0 %v2022
        %2309 = vmatprep.subr.bf16.mxu0 %v2019
        %2310 = vmatpush1.bf16.msra.mxu0 %v2018
        %2311 = vmatprep.subr.bf16.mxu0 %v2015
        %2312 = vmatpush1.bf16.msra.mxu0 %v2014
        %2313 = vmatprep.subr.bf16.mxu0 %v2011
        %2314 = vmatpush1.bf16.msra.mxu0 %v2010
        %2315 = vmatprep.subr.bf16.mxu0 %v2007
        %2316 = vmatpush1.bf16.msra.mxu0 %v2006
        %2317 = vmatprep.subr.bf16.mxu0 %v2003
        %2318 = vmatpush1.bf16.msra.mxu0 %v2002
        %2319 = vmatprep.subr.bf16.mxu0 %v1999
        %2320 = vmatpush1.bf16.msra.mxu0 %v1998
        %2321 = vmatprep.subr.bf16.mxu0 %v1995
        %2322 = vmatpush1.bf16.msra.mxu0 %v1994
        %2323 = vmatprep.subr.bf16.mxu0 %v2055
        %2324 = vmatpush2.bf16.msra.mxu0 %v2054
        %2325 = vmatprep.subr.bf16.mxu0 %v2051
        %2326 = vmatpush2.bf16.msra.mxu0 %v2050
        %2327 = vmatprep.subr.bf16.mxu0 %v2047
        %2328 = vmatpush2.bf16.msra.mxu0 %v2046
        %2329 = vmatprep.subr.bf16.mxu0 %v2043
        %2330 = vmatpush2.bf16.msra.mxu0 %v2042
        %2331 = vmatprep.subr.bf16.mxu0 %v2039
        %2332 = vmatpush2.bf16.msra.mxu0 %v2038
        %2333 = vmatprep.subr.bf16.mxu0 %v2035
        %2334 = vmatpush2.bf16.msra.mxu0 %v2034
        %2335 = vmatprep.subr.bf16.mxu0 %v2031
        %2336 = vmatpush2.bf16.msra.mxu0 %v2030
        %2337 = vmatprep.subr.bf16.mxu0 %v2027
        %2338 = vmatpush2.bf16.msra.mxu0 %v2026
        %2339 = vmatprep.mubr.bf16.mxu0 %v474
        %2340 = vmatmul.mubr.bf16.gmra.mxu0 %v473
        %v2341 = vpop.f32.mrf.mxu0
        %v2342 = vadd.f32 %v2301, %v2341
        %v2343 = vpop.f32.mrf.mxu0
        %v2344 = vadd.f32 %v2303, %v2343
        %v2345 = vpop.f32.mrf.mxu0
        %v2346 = vpop.f32.mrf.mxu0
        %2347 = vdwg.mxu0
        %s2348 = scalar_lea.vmem [#allocation8], 2048
        %v2349 = vld [vmem:[%s2348] sm:$0xff]
        %v2350 = vld [vmem:[%s2348 + $0x8] sm:$0xff]
        %v2351 = vld [vmem:[%s2348 + $0x10] sm:$0xff]
        %v2352 = vld [vmem:[%s2348 + $0x18] sm:$0xff]
        %v2353 = vld [vmem:[%s2348 + $0x20] sm:$0xff]
        %v2354 = vld [vmem:[%s2348 + $0x28] sm:$0xff]
        %v2355 = vld [vmem:[%s2348 + $0x30] sm:$0xff]
        %v2356 = vld [vmem:[%s2348 + $0x38] sm:$0xff]
        %v2357 = vld [vmem:[%s2348 + $0x40] sm:$0xff]
        %v2358 = vld [vmem:[%s2348 + $0x48] sm:$0xff]
        %v2359 = vld [vmem:[%s2348 + $0x50] sm:$0xff]
        %v2360 = vld [vmem:[%s2348 + $0x58] sm:$0xff]
        %v2361 = vld [vmem:[%s2348 + $0x60] sm:$0xff]
        %v2362 = vld [vmem:[%s2348 + $0x68] sm:$0xff]
        %v2363 = vld [vmem:[%s2348 + $0x70] sm:$0xff]
        %v2364 = vld [vmem:[%s2348 + $0x78] sm:$0xff]
        %v2365 = vld [vmem:[%s2348 + $0x80] sm:$0xff]
        %v2366 = vld [vmem:[%s2348 + $0x88] sm:$0xff]
        %v2367 = vld [vmem:[%s2348 + $0x90] sm:$0xff]
        %v2368 = vld [vmem:[%s2348 + $0x98] sm:$0xff]
        %v2369 = vld [vmem:[%s2348 + $0xa0] sm:$0xff]
        %v2370 = vld [vmem:[%s2348 + $0xa8] sm:$0xff]
        %v2371 = vld [vmem:[%s2348 + $0xb0] sm:$0xff]
        %v2372 = vld [vmem:[%s2348 + $0xb8] sm:$0xff]
        %v2373 = vld [vmem:[%s2348 + $0xc0] sm:$0xff]
        %v2374 = vld [vmem:[%s2348 + $0xc8] sm:$0xff]
        %v2375 = vld [vmem:[%s2348 + $0xd0] sm:$0xff]
        %v2376 = vld [vmem:[%s2348 + $0xd8] sm:$0xff]
        %v2377 = vld [vmem:[%s2348 + $0xe0] sm:$0xff]
        %v2378 = vld [vmem:[%s2348 + $0xe8] sm:$0xff]
        %v2379 = vld [vmem:[%s2348 + $0xf0] sm:$0xff]
        %v2380 = vld [vmem:[%s2348 + $0xf8] sm:$0xff]
        %v2381 = vld [vmem:[%s2348 + $0x100] sm:$0xff]
        %v2382 = vld [vmem:[%s2348 + $0x108] sm:$0xff]
        %v2383 = vld [vmem:[%s2348 + $0x110] sm:$0xff]
        %v2384 = vld [vmem:[%s2348 + $0x118] sm:$0xff]
        %v2385 = vld [vmem:[%s2348 + $0x120] sm:$0xff]
        %v2386 = vld [vmem:[%s2348 + $0x128] sm:$0xff]
        %v2387 = vld [vmem:[%s2348 + $0x130] sm:$0xff]
        %v2388 = vld [vmem:[%s2348 + $0x138] sm:$0xff]
        %v2389 = vld [vmem:[%s2348 + $0x140] sm:$0xff]
        %v2390 = vld [vmem:[%s2348 + $0x148] sm:$0xff]
        %v2391 = vld [vmem:[%s2348 + $0x150] sm:$0xff]
        %v2392 = vld [vmem:[%s2348 + $0x158] sm:$0xff]
        %v2393 = vld [vmem:[%s2348 + $0x160] sm:$0xff]
        %v2394 = vld [vmem:[%s2348 + $0x168] sm:$0xff]
        %v2395 = vld [vmem:[%s2348 + $0x170] sm:$0xff]
        %v2396 = vld [vmem:[%s2348 + $0x178] sm:$0xff]
        %v2397 = vld [vmem:[%s2348 + $0x180] sm:$0xff]
        %v2398 = vld [vmem:[%s2348 + $0x188] sm:$0xff]
        %v2399 = vld [vmem:[%s2348 + $0x190] sm:$0xff]
        %v2400 = vld [vmem:[%s2348 + $0x198] sm:$0xff]
        %v2401 = vld [vmem:[%s2348 + $0x1a0] sm:$0xff]
        %v2402 = vld [vmem:[%s2348 + $0x1a8] sm:$0xff]
        %v2403 = vld [vmem:[%s2348 + $0x1b0] sm:$0xff]
        %v2404 = vld [vmem:[%s2348 + $0x1b8] sm:$0xff]
        %v2405 = vld [vmem:[%s2348 + $0x1c0] sm:$0xff]
        %v2406 = vld [vmem:[%s2348 + $0x1c8] sm:$0xff]
        %v2407 = vld [vmem:[%s2348 + $0x1d0] sm:$0xff]
        %v2408 = vld [vmem:[%s2348 + $0x1d8] sm:$0xff]
        %v2409 = vld [vmem:[%s2348 + $0x1e0] sm:$0xff]
        %v2410 = vld [vmem:[%s2348 + $0x1e8] sm:$0xff]
        %v2411 = vld [vmem:[%s2348 + $0x1f0] sm:$0xff]
        %v2412 = vld [vmem:[%s2348 + $0x1f8] sm:$0xff]
        %v2413 = vld [vmem:[%s2348 + $0x200] sm:$0xff]
        %v2414 = vld [vmem:[%s2348 + $0x208] sm:$0xff]
        %v2415 = vld [vmem:[%s2348 + $0x210] sm:$0xff]
        %v2416 = vld [vmem:[%s2348 + $0x218] sm:$0xff]
        %v2417 = vld [vmem:[%s2348 + $0x220] sm:$0xff]
        %v2418 = vld [vmem:[%s2348 + $0x228] sm:$0xff]
        %v2419 = vld [vmem:[%s2348 + $0x230] sm:$0xff]
        %v2420 = vld [vmem:[%s2348 + $0x238] sm:$0xff]
        %v2421 = vld [vmem:[%s2348 + $0x240] sm:$0xff]
        %v2422 = vld [vmem:[%s2348 + $0x248] sm:$0xff]
        %v2423 = vld [vmem:[%s2348 + $0x250] sm:$0xff]
        %v2424 = vld [vmem:[%s2348 + $0x258] sm:$0xff]
        %v2425 = vld [vmem:[%s2348 + $0x260] sm:$0xff]
        %v2426 = vld [vmem:[%s2348 + $0x268] sm:$0xff]
        %v2427 = vld [vmem:[%s2348 + $0x270] sm:$0xff]
        %v2428 = vld [vmem:[%s2348 + $0x278] sm:$0xff]
        %v2429 = vld [vmem:[%s2348 + $0x280] sm:$0xff]
        %v2430 = vld [vmem:[%s2348 + $0x288] sm:$0xff]
        %v2431 = vld [vmem:[%s2348 + $0x290] sm:$0xff]
        %v2432 = vld [vmem:[%s2348 + $0x298] sm:$0xff]
        %v2433 = vld [vmem:[%s2348 + $0x2a0] sm:$0xff]
        %v2434 = vld [vmem:[%s2348 + $0x2a8] sm:$0xff]
        %v2435 = vld [vmem:[%s2348 + $0x2b0] sm:$0xff]
        %v2436 = vld [vmem:[%s2348 + $0x2b8] sm:$0xff]
        %v2437 = vld [vmem:[%s2348 + $0x2c0] sm:$0xff]
        %v2438 = vld [vmem:[%s2348 + $0x2c8] sm:$0xff]
        %v2439 = vld [vmem:[%s2348 + $0x2d0] sm:$0xff]
        %v2440 = vld [vmem:[%s2348 + $0x2d8] sm:$0xff]
        %v2441 = vld [vmem:[%s2348 + $0x2e0] sm:$0xff]
        %v2442 = vld [vmem:[%s2348 + $0x2e8] sm:$0xff]
        %v2443 = vld [vmem:[%s2348 + $0x2f0] sm:$0xff]
        %v2444 = vld [vmem:[%s2348 + $0x2f8] sm:$0xff]
        %v2445 = vld [vmem:[%s2348 + $0x300] sm:$0xff]
        %v2446 = vld [vmem:[%s2348 + $0x308] sm:$0xff]
        %v2447 = vld [vmem:[%s2348 + $0x310] sm:$0xff]
        %v2448 = vld [vmem:[%s2348 + $0x318] sm:$0xff]
        %v2449 = vld [vmem:[%s2348 + $0x320] sm:$0xff]
        %v2450 = vld [vmem:[%s2348 + $0x328] sm:$0xff]
        %v2451 = vld [vmem:[%s2348 + $0x330] sm:$0xff]
        %v2452 = vld [vmem:[%s2348 + $0x338] sm:$0xff]
        %v2453 = vld [vmem:[%s2348 + $0x340] sm:$0xff]
        %v2454 = vld [vmem:[%s2348 + $0x348] sm:$0xff]
        %v2455 = vld [vmem:[%s2348 + $0x350] sm:$0xff]
        %v2456 = vld [vmem:[%s2348 + $0x358] sm:$0xff]
        %v2457 = vld [vmem:[%s2348 + $0x360] sm:$0xff]
        %v2458 = vld [vmem:[%s2348 + $0x368] sm:$0xff]
        %v2459 = vld [vmem:[%s2348 + $0x370] sm:$0xff]
        %v2460 = vld [vmem:[%s2348 + $0x378] sm:$0xff]
        %v2461 = vld [vmem:[%s2348 + $0x380] sm:$0xff]
        %v2462 = vld [vmem:[%s2348 + $0x388] sm:$0xff]
        %v2463 = vld [vmem:[%s2348 + $0x390] sm:$0xff]
        %v2464 = vld [vmem:[%s2348 + $0x398] sm:$0xff]
        %v2465 = vld [vmem:[%s2348 + $0x3a0] sm:$0xff]
        %v2466 = vld [vmem:[%s2348 + $0x3a8] sm:$0xff]
        %v2467 = vld [vmem:[%s2348 + $0x3b0] sm:$0xff]
        %v2468 = vld [vmem:[%s2348 + $0x3b8] sm:$0xff]
        %v2469 = vld [vmem:[%s2348 + $0x3c0] sm:$0xff]
        %v2470 = vld [vmem:[%s2348 + $0x3c8] sm:$0xff]
        %v2471 = vld [vmem:[%s2348 + $0x3d0] sm:$0xff]
        %v2472 = vld [vmem:[%s2348 + $0x3d8] sm:$0xff]
        %v2473 = vld [vmem:[%s2348 + $0x3e0] sm:$0xff]
        %v2474 = vld [vmem:[%s2348 + $0x3e8] sm:$0xff]
        %v2475 = vld [vmem:[%s2348 + $0x3f0] sm:$0xff]
        %v2476 = vld [vmem:[%s2348 + $0x3f8] sm:$0xff]
        %v2605 = vunpack.c.l.b16 %v2349
        %v2606 = vunpack.c.h.b16 %v2349
        %v2607 = vunpack.c.l.b16 %v2350
        %v2608 = vunpack.c.h.b16 %v2350
        %v2609 = vunpack.c.l.b16 %v2351
        %v2610 = vunpack.c.h.b16 %v2351
        %v2611 = vunpack.c.l.b16 %v2352
        %v2612 = vunpack.c.h.b16 %v2352
        %v2613 = vunpack.c.l.b16 %v2353
        %v2614 = vunpack.c.h.b16 %v2353
        %v2615 = vunpack.c.l.b16 %v2354
        %v2616 = vunpack.c.h.b16 %v2354
        %v2617 = vunpack.c.l.b16 %v2355
        %v2618 = vunpack.c.h.b16 %v2355
        %v2619 = vunpack.c.l.b16 %v2356
        %v2620 = vunpack.c.h.b16 %v2356
        %v2621 = vunpack.c.l.b16 %v2357
        %v2622 = vunpack.c.h.b16 %v2357
        %v2623 = vunpack.c.l.b16 %v2358
        %v2624 = vunpack.c.h.b16 %v2358
        %v2625 = vunpack.c.l.b16 %v2359
        %v2626 = vunpack.c.h.b16 %v2359
        %v2627 = vunpack.c.l.b16 %v2360
        %v2628 = vunpack.c.h.b16 %v2360
        %v2629 = vunpack.c.l.b16 %v2361
        %v2630 = vunpack.c.h.b16 %v2361
        %v2631 = vunpack.c.l.b16 %v2362
        %v2632 = vunpack.c.h.b16 %v2362
        %v2633 = vunpack.c.l.b16 %v2363
        %v2634 = vunpack.c.h.b16 %v2363
        %v2635 = vunpack.c.l.b16 %v2364
        %v2636 = vunpack.c.h.b16 %v2364
        %v2637 = vunpack.c.l.b16 %v2365
        %v2638 = vunpack.c.h.b16 %v2365
        %v2639 = vunpack.c.l.b16 %v2366
        %v2640 = vunpack.c.h.b16 %v2366
        %v2641 = vunpack.c.l.b16 %v2367
        %v2642 = vunpack.c.h.b16 %v2367
        %v2643 = vunpack.c.l.b16 %v2368
        %v2644 = vunpack.c.h.b16 %v2368
        %v2645 = vunpack.c.l.b16 %v2369
        %v2646 = vunpack.c.h.b16 %v2369
        %v2647 = vunpack.c.l.b16 %v2370
        %v2648 = vunpack.c.h.b16 %v2370
        %v2649 = vunpack.c.l.b16 %v2371
        %v2650 = vunpack.c.h.b16 %v2371
        %v2651 = vunpack.c.l.b16 %v2372
        %v2652 = vunpack.c.h.b16 %v2372
        %v2653 = vunpack.c.l.b16 %v2373
        %v2654 = vunpack.c.h.b16 %v2373
        %v2655 = vunpack.c.l.b16 %v2374
        %v2656 = vunpack.c.h.b16 %v2374
        %v2657 = vunpack.c.l.b16 %v2375
        %v2658 = vunpack.c.h.b16 %v2375
        %v2659 = vunpack.c.l.b16 %v2376
        %v2660 = vunpack.c.h.b16 %v2376
        %v2661 = vunpack.c.l.b16 %v2377
        %v2662 = vunpack.c.h.b16 %v2377
        %v2663 = vunpack.c.l.b16 %v2378
        %v2664 = vunpack.c.h.b16 %v2378
        %v2665 = vunpack.c.l.b16 %v2379
        %v2666 = vunpack.c.h.b16 %v2379
        %v2667 = vunpack.c.l.b16 %v2380
        %v2668 = vunpack.c.h.b16 %v2380
        %v2669 = vunpack.c.l.b16 %v2381
        %v2670 = vunpack.c.h.b16 %v2381
        %v2671 = vunpack.c.l.b16 %v2382
        %v2672 = vunpack.c.h.b16 %v2382
        %v2673 = vunpack.c.l.b16 %v2383
        %v2674 = vunpack.c.h.b16 %v2383
        %v2675 = vunpack.c.l.b16 %v2384
        %v2676 = vunpack.c.h.b16 %v2384
        %v2677 = vunpack.c.l.b16 %v2385
        %v2678 = vunpack.c.h.b16 %v2385
        %v2679 = vunpack.c.l.b16 %v2386
        %v2680 = vunpack.c.h.b16 %v2386
        %v2681 = vunpack.c.l.b16 %v2387
        %v2682 = vunpack.c.h.b16 %v2387
        %v2683 = vunpack.c.l.b16 %v2388
        %v2684 = vunpack.c.h.b16 %v2388
        %v2685 = vunpack.c.l.b16 %v2389
        %v2686 = vunpack.c.h.b16 %v2389
        %v2687 = vunpack.c.l.b16 %v2390
        %v2688 = vunpack.c.h.b16 %v2390
        %v2689 = vunpack.c.l.b16 %v2391
        %v2690 = vunpack.c.h.b16 %v2391
        %v2691 = vunpack.c.l.b16 %v2392
        %v2692 = vunpack.c.h.b16 %v2392
        %v2693 = vunpack.c.l.b16 %v2393
        %v2694 = vunpack.c.h.b16 %v2393
        %v2695 = vunpack.c.l.b16 %v2394
        %v2696 = vunpack.c.h.b16 %v2394
        %v2697 = vunpack.c.l.b16 %v2395
        %v2698 = vunpack.c.h.b16 %v2395
        %v2699 = vunpack.c.l.b16 %v2396
        %v2700 = vunpack.c.h.b16 %v2396
        %v2701 = vunpack.c.l.b16 %v2397
        %v2702 = vunpack.c.h.b16 %v2397
        %v2703 = vunpack.c.l.b16 %v2398
        %v2704 = vunpack.c.h.b16 %v2398
        %v2705 = vunpack.c.l.b16 %v2399
        %v2706 = vunpack.c.h.b16 %v2399
        %v2707 = vunpack.c.l.b16 %v2400
        %v2708 = vunpack.c.h.b16 %v2400
        %v2709 = vunpack.c.l.b16 %v2401
        %v2710 = vunpack.c.h.b16 %v2401
        %v2711 = vunpack.c.l.b16 %v2402
        %v2712 = vunpack.c.h.b16 %v2402
        %v2713 = vunpack.c.l.b16 %v2403
        %v2714 = vunpack.c.h.b16 %v2403
        %v2715 = vunpack.c.l.b16 %v2404
        %v2716 = vunpack.c.h.b16 %v2404
        %v2717 = vunpack.c.l.b16 %v2405
        %v2718 = vunpack.c.h.b16 %v2405
        %v2719 = vunpack.c.l.b16 %v2406
        %v2720 = vunpack.c.h.b16 %v2406
        %v2721 = vunpack.c.l.b16 %v2407
        %v2722 = vunpack.c.h.b16 %v2407
        %v2723 = vunpack.c.l.b16 %v2408
        %v2724 = vunpack.c.h.b16 %v2408
        %v2725 = vunpack.c.l.b16 %v2409
        %v2726 = vunpack.c.h.b16 %v2409
        %v2727 = vunpack.c.l.b16 %v2410
        %v2728 = vunpack.c.h.b16 %v2410
        %v2729 = vunpack.c.l.b16 %v2411
        %v2730 = vunpack.c.h.b16 %v2411
        %v2731 = vunpack.c.l.b16 %v2412
        %v2732 = vunpack.c.h.b16 %v2412
        %v2733 = vunpack.c.l.b16 %v2413
        %v2734 = vunpack.c.h.b16 %v2413
        %v2735 = vunpack.c.l.b16 %v2414
        %v2736 = vunpack.c.h.b16 %v2414
        %v2737 = vunpack.c.l.b16 %v2415
        %v2738 = vunpack.c.h.b16 %v2415
        %v2739 = vunpack.c.l.b16 %v2416
        %v2740 = vunpack.c.h.b16 %v2416
        %v2741 = vunpack.c.l.b16 %v2417
        %v2742 = vunpack.c.h.b16 %v2417
        %v2743 = vunpack.c.l.b16 %v2418
        %v2744 = vunpack.c.h.b16 %v2418
        %v2745 = vunpack.c.l.b16 %v2419
        %v2746 = vunpack.c.h.b16 %v2419
        %v2747 = vunpack.c.l.b16 %v2420
        %v2748 = vunpack.c.h.b16 %v2420
        %v2749 = vunpack.c.l.b16 %v2421
        %v2750 = vunpack.c.h.b16 %v2421
        %v2751 = vunpack.c.l.b16 %v2422
        %v2752 = vunpack.c.h.b16 %v2422
        %v2753 = vunpack.c.l.b16 %v2423
        %v2754 = vunpack.c.h.b16 %v2423
        %v2755 = vunpack.c.l.b16 %v2424
        %v2756 = vunpack.c.h.b16 %v2424
        %v2757 = vunpack.c.l.b16 %v2425
        %v2758 = vunpack.c.h.b16 %v2425
        %v2759 = vunpack.c.l.b16 %v2426
        %v2760 = vunpack.c.h.b16 %v2426
        %v2761 = vunpack.c.l.b16 %v2427
        %v2762 = vunpack.c.h.b16 %v2427
        %v2763 = vunpack.c.l.b16 %v2428
        %v2764 = vunpack.c.h.b16 %v2428
        %v2765 = vunpack.c.l.b16 %v2429
        %v2766 = vunpack.c.h.b16 %v2429
        %v2767 = vunpack.c.l.b16 %v2430
        %v2768 = vunpack.c.h.b16 %v2430
        %v2769 = vunpack.c.l.b16 %v2431
        %v2770 = vunpack.c.h.b16 %v2431
        %v2771 = vunpack.c.l.b16 %v2432
        %v2772 = vunpack.c.h.b16 %v2432
        %v2773 = vunpack.c.l.b16 %v2433
        %v2774 = vunpack.c.h.b16 %v2433
        %v2775 = vunpack.c.l.b16 %v2434
        %v2776 = vunpack.c.h.b16 %v2434
        %v2777 = vunpack.c.l.b16 %v2435
        %v2778 = vunpack.c.h.b16 %v2435
        %v2779 = vunpack.c.l.b16 %v2436
        %v2780 = vunpack.c.h.b16 %v2436
        %v2781 = vunpack.c.l.b16 %v2437
        %v2782 = vunpack.c.h.b16 %v2437
        %v2783 = vunpack.c.l.b16 %v2438
        %v2784 = vunpack.c.h.b16 %v2438
        %v2785 = vunpack.c.l.b16 %v2439
        %v2786 = vunpack.c.h.b16 %v2439
        %v2787 = vunpack.c.l.b16 %v2440
        %v2788 = vunpack.c.h.b16 %v2440
        %v2789 = vunpack.c.l.b16 %v2441
        %v2790 = vunpack.c.h.b16 %v2441
        %v2791 = vunpack.c.l.b16 %v2442
        %v2792 = vunpack.c.h.b16 %v2442
        %v2793 = vunpack.c.l.b16 %v2443
        %v2794 = vunpack.c.h.b16 %v2443
        %v2795 = vunpack.c.l.b16 %v2444
        %v2796 = vunpack.c.h.b16 %v2444
        %v2797 = vunpack.c.l.b16 %v2445
        %v2798 = vunpack.c.h.b16 %v2445
        %v2799 = vunpack.c.l.b16 %v2446
        %v2800 = vunpack.c.h.b16 %v2446
        %v2801 = vunpack.c.l.b16 %v2447
        %v2802 = vunpack.c.h.b16 %v2447
        %v2803 = vunpack.c.l.b16 %v2448
        %v2804 = vunpack.c.h.b16 %v2448
        %v2805 = vunpack.c.l.b16 %v2449
        %v2806 = vunpack.c.h.b16 %v2449
        %v2807 = vunpack.c.l.b16 %v2450
        %v2808 = vunpack.c.h.b16 %v2450
        %v2809 = vunpack.c.l.b16 %v2451
        %v2810 = vunpack.c.h.b16 %v2451
        %v2811 = vunpack.c.l.b16 %v2452
        %v2812 = vunpack.c.h.b16 %v2452
        %v2813 = vunpack.c.l.b16 %v2453
        %v2814 = vunpack.c.h.b16 %v2453
        %v2815 = vunpack.c.l.b16 %v2454
        %v2816 = vunpack.c.h.b16 %v2454
        %v2817 = vunpack.c.l.b16 %v2455
        %v2818 = vunpack.c.h.b16 %v2455
        %v2819 = vunpack.c.l.b16 %v2456
        %v2820 = vunpack.c.h.b16 %v2456
        %v2821 = vunpack.c.l.b16 %v2457
        %v2822 = vunpack.c.h.b16 %v2457
        %v2823 = vunpack.c.l.b16 %v2458
        %v2824 = vunpack.c.h.b16 %v2458
        %v2825 = vunpack.c.l.b16 %v2459
        %v2826 = vunpack.c.h.b16 %v2459
        %v2827 = vunpack.c.l.b16 %v2460
        %v2828 = vunpack.c.h.b16 %v2460
        %v2829 = vunpack.c.l.b16 %v2461
        %v2830 = vunpack.c.h.b16 %v2461
        %v2831 = vunpack.c.l.b16 %v2462
        %v2832 = vunpack.c.h.b16 %v2462
        %v2833 = vunpack.c.l.b16 %v2463
        %v2834 = vunpack.c.h.b16 %v2463
        %v2835 = vunpack.c.l.b16 %v2464
        %v2836 = vunpack.c.h.b16 %v2464
        %v2837 = vunpack.c.l.b16 %v2465
        %v2838 = vunpack.c.h.b16 %v2465
        %v2839 = vunpack.c.l.b16 %v2466
        %v2840 = vunpack.c.h.b16 %v2466
        %v2841 = vunpack.c.l.b16 %v2467
        %v2842 = vunpack.c.h.b16 %v2467
        %v2843 = vunpack.c.l.b16 %v2468
        %v2844 = vunpack.c.h.b16 %v2468
        %v2845 = vunpack.c.l.b16 %v2469
        %v2846 = vunpack.c.h.b16 %v2469
        %v2847 = vunpack.c.l.b16 %v2470
        %v2848 = vunpack.c.h.b16 %v2470
        %v2849 = vunpack.c.l.b16 %v2471
        %v2850 = vunpack.c.h.b16 %v2471
        %v2851 = vunpack.c.l.b16 %v2472
        %v2852 = vunpack.c.h.b16 %v2472
        %v2853 = vunpack.c.l.b16 %v2473
        %v2854 = vunpack.c.h.b16 %v2473
        %v2855 = vunpack.c.l.b16 %v2474
        %v2856 = vunpack.c.h.b16 %v2474
        %v2857 = vunpack.c.l.b16 %v2475
        %v2858 = vunpack.c.h.b16 %v2475
        %v2859 = vunpack.c.l.b16 %v2476
        %v2860 = vunpack.c.h.b16 %v2476
        %v2861 = vpack.c.b16 %v2609, %v2605
        %v2862 = vpack.c.b16 %v2610, %v2606
        %v2863 = vpack.c.b16 %v2611, %v2607
        %v2864 = vpack.c.b16 %v2612, %v2608
        %v2865 = vpack.c.b16 %v2617, %v2613
        %v2866 = vpack.c.b16 %v2618, %v2614
        %v2867 = vpack.c.b16 %v2619, %v2615
        %v2868 = vpack.c.b16 %v2620, %v2616
        %v2869 = vpack.c.b16 %v2625, %v2621
        %v2870 = vpack.c.b16 %v2626, %v2622
        %v2871 = vpack.c.b16 %v2627, %v2623
        %v2872 = vpack.c.b16 %v2628, %v2624
        %v2873 = vpack.c.b16 %v2633, %v2629
        %v2874 = vpack.c.b16 %v2634, %v2630
        %v2875 = vpack.c.b16 %v2635, %v2631
        %v2876 = vpack.c.b16 %v2636, %v2632
        %v2877 = vpack.c.b16 %v2641, %v2637
        %v2878 = vpack.c.b16 %v2642, %v2638
        %v2879 = vpack.c.b16 %v2643, %v2639
        %v2880 = vpack.c.b16 %v2644, %v2640
        %v2881 = vpack.c.b16 %v2649, %v2645
        %v2882 = vpack.c.b16 %v2650, %v2646
        %v2883 = vpack.c.b16 %v2651, %v2647
        %v2884 = vpack.c.b16 %v2652, %v2648
        %v2885 = vpack.c.b16 %v2657, %v2653
        %v2886 = vpack.c.b16 %v2658, %v2654
        %v2887 = vpack.c.b16 %v2659, %v2655
        %v2888 = vpack.c.b16 %v2660, %v2656
        %v2889 = vpack.c.b16 %v2665, %v2661
        %v2890 = vpack.c.b16 %v2666, %v2662
        %v2891 = vpack.c.b16 %v2667, %v2663
        %v2892 = vpack.c.b16 %v2668, %v2664
        %v2893 = vpack.c.b16 %v2673, %v2669
        %v2894 = vpack.c.b16 %v2674, %v2670
        %v2895 = vpack.c.b16 %v2675, %v2671
        %v2896 = vpack.c.b16 %v2676, %v2672
        %v2897 = vpack.c.b16 %v2681, %v2677
        %v2898 = vpack.c.b16 %v2682, %v2678
        %v2899 = vpack.c.b16 %v2683, %v2679
        %v2900 = vpack.c.b16 %v2684, %v2680
        %v2901 = vpack.c.b16 %v2689, %v2685
        %v2902 = vpack.c.b16 %v2690, %v2686
        %v2903 = vpack.c.b16 %v2691, %v2687
        %v2904 = vpack.c.b16 %v2692, %v2688
        %v2905 = vpack.c.b16 %v2697, %v2693
        %v2906 = vpack.c.b16 %v2698, %v2694
        %v2907 = vpack.c.b16 %v2699, %v2695
        %v2908 = vpack.c.b16 %v2700, %v2696
        %v2909 = vpack.c.b16 %v2705, %v2701
        %v2910 = vpack.c.b16 %v2706, %v2702
        %v2911 = vpack.c.b16 %v2707, %v2703
        %v2912 = vpack.c.b16 %v2708, %v2704
        %v2913 = vpack.c.b16 %v2713, %v2709
        %v2914 = vpack.c.b16 %v2714, %v2710
        %v2915 = vpack.c.b16 %v2715, %v2711
        %v2916 = vpack.c.b16 %v2716, %v2712
        %v2917 = vpack.c.b16 %v2721, %v2717
        %v2918 = vpack.c.b16 %v2722, %v2718
        %v2919 = vpack.c.b16 %v2723, %v2719
        %v2920 = vpack.c.b16 %v2724, %v2720
        %v2921 = vpack.c.b16 %v2729, %v2725
        %v2922 = vpack.c.b16 %v2730, %v2726
        %v2923 = vpack.c.b16 %v2731, %v2727
        %v2924 = vpack.c.b16 %v2732, %v2728
        %v2925 = vpack.c.b16 %v2737, %v2733
        %v2926 = vpack.c.b16 %v2738, %v2734
        %v2927 = vpack.c.b16 %v2739, %v2735
        %v2928 = vpack.c.b16 %v2740, %v2736
        %v2929 = vpack.c.b16 %v2745, %v2741
        %v2930 = vpack.c.b16 %v2746, %v2742
        %v2931 = vpack.c.b16 %v2747, %v2743
        %v2932 = vpack.c.b16 %v2748, %v2744
        %v2933 = vpack.c.b16 %v2753, %v2749
        %v2934 = vpack.c.b16 %v2754, %v2750
        %v2935 = vpack.c.b16 %v2755, %v2751
        %v2936 = vpack.c.b16 %v2756, %v2752
        %v2937 = vpack.c.b16 %v2761, %v2757
        %v2938 = vpack.c.b16 %v2762, %v2758
        %v2939 = vpack.c.b16 %v2763, %v2759
        %v2940 = vpack.c.b16 %v2764, %v2760
        %v2941 = vpack.c.b16 %v2769, %v2765
        %v2942 = vpack.c.b16 %v2770, %v2766
        %v2943 = vpack.c.b16 %v2771, %v2767
        %v2944 = vpack.c.b16 %v2772, %v2768
        %v2945 = vpack.c.b16 %v2777, %v2773
        %v2946 = vpack.c.b16 %v2778, %v2774
        %v2947 = vpack.c.b16 %v2779, %v2775
        %v2948 = vpack.c.b16 %v2780, %v2776
        %v2949 = vpack.c.b16 %v2785, %v2781
        %v2950 = vpack.c.b16 %v2786, %v2782
        %v2951 = vpack.c.b16 %v2787, %v2783
        %v2952 = vpack.c.b16 %v2788, %v2784
        %v2953 = vpack.c.b16 %v2793, %v2789
        %v2954 = vpack.c.b16 %v2794, %v2790
        %v2955 = vpack.c.b16 %v2795, %v2791
        %v2956 = vpack.c.b16 %v2796, %v2792
        %v2957 = vpack.c.b16 %v2801, %v2797
        %v2958 = vpack.c.b16 %v2802, %v2798
        %v2959 = vpack.c.b16 %v2803, %v2799
        %v2960 = vpack.c.b16 %v2804, %v2800
        %v2961 = vpack.c.b16 %v2809, %v2805
        %v2962 = vpack.c.b16 %v2810, %v2806
        %v2963 = vpack.c.b16 %v2811, %v2807
        %v2964 = vpack.c.b16 %v2812, %v2808
        %v2965 = vpack.c.b16 %v2817, %v2813
        %v2966 = vpack.c.b16 %v2818, %v2814
        %v2967 = vpack.c.b16 %v2819, %v2815
        %v2968 = vpack.c.b16 %v2820, %v2816
        %v2969 = vpack.c.b16 %v2825, %v2821
        %v2970 = vpack.c.b16 %v2826, %v2822
        %v2971 = vpack.c.b16 %v2827, %v2823
        %v2972 = vpack.c.b16 %v2828, %v2824
        %v2973 = vpack.c.b16 %v2833, %v2829
        %v2974 = vpack.c.b16 %v2834, %v2830
        %v2975 = vpack.c.b16 %v2835, %v2831
        %v2976 = vpack.c.b16 %v2836, %v2832
        %v2977 = vpack.c.b16 %v2841, %v2837
        %v2978 = vpack.c.b16 %v2842, %v2838
        %v2979 = vpack.c.b16 %v2843, %v2839
        %v2980 = vpack.c.b16 %v2844, %v2840
        %v2981 = vpack.c.b16 %v2849, %v2845
        %v2982 = vpack.c.b16 %v2850, %v2846
        %v2983 = vpack.c.b16 %v2851, %v2847
        %v2984 = vpack.c.b16 %v2852, %v2848
        %v2985 = vpack.c.b16 %v2857, %v2853
        %v2986 = vpack.c.b16 %v2858, %v2854
        %v2987 = vpack.c.b16 %v2859, %v2855
        %v2988 = vpack.c.b16 %v2860, %v2856
        %3117 = vmatprep.subr.bf16.mxu0 %v2890
        %3118 = vmatpush1.bf16.msra.mxu0 %v2889
        %3119 = vmatprep.subr.bf16.mxu0 %v2886
        %3120 = vmatpush1.bf16.msra.mxu0 %v2885
        %3121 = vmatprep.subr.bf16.mxu0 %v2882
        %3122 = vmatpush1.bf16.msra.mxu0 %v2881
        %3123 = vmatprep.subr.bf16.mxu0 %v2878
        %3124 = vmatpush1.bf16.msra.mxu0 %v2877
        %3125 = vmatprep.subr.bf16.mxu0 %v2874
        %3126 = vmatpush1.bf16.msra.mxu0 %v2873
        %3127 = vmatprep.subr.bf16.mxu0 %v2870
        %3128 = vmatpush1.bf16.msra.mxu0 %v2869
        %3129 = vmatprep.subr.bf16.mxu0 %v2866
        %3130 = vmatpush1.bf16.msra.mxu0 %v2865
        %3131 = vmatprep.subr.bf16.mxu0 %v2862
        %3132 = vmatpush1.bf16.msra.mxu0 %v2861
        %3133 = vmatprep.subr.bf16.mxu0 %v2922
        %3134 = vmatpush2.bf16.msra.mxu0 %v2921
        %3135 = vmatprep.subr.bf16.mxu0 %v2918
        %3136 = vmatpush2.bf16.msra.mxu0 %v2917
        %3137 = vmatprep.subr.bf16.mxu0 %v2914
        %3138 = vmatpush2.bf16.msra.mxu0 %v2913
        %3139 = vmatprep.subr.bf16.mxu0 %v2910
        %3140 = vmatpush2.bf16.msra.mxu0 %v2909
        %3141 = vmatprep.subr.bf16.mxu0 %v2906
        %3142 = vmatpush2.bf16.msra.mxu0 %v2905
        %3143 = vmatprep.subr.bf16.mxu0 %v2902
        %3144 = vmatpush2.bf16.msra.mxu0 %v2901
        %3145 = vmatprep.subr.bf16.mxu0 %v2898
        %3146 = vmatpush2.bf16.msra.mxu0 %v2897
        %3147 = vmatprep.subr.bf16.mxu0 %v2894
        %3148 = vmatpush2.bf16.msra.mxu0 %v2893
        %3149 = vmatprep.mubr.bf16.mxu0 %v480
        %3150 = vmatmul.mubr.bf16.gmra.mxu0 %v479
        %v3151 = vpop.f32.mrf.mxu0
        %v3152 = vadd.f32 0.0, %v3151
        %v3153 = vpop.f32.mrf.mxu0
        %v3154 = vadd.f32 0.0, %v3153
        %v3155 = vpop.f32.mrf.mxu0
        %v3156 = vpop.f32.mrf.mxu0
        %3157 = vdwg.mxu0
        %3158 = vmatprep.subr.bf16.mxu0 %v2954
        %3159 = vmatpush1.bf16.msra.mxu0 %v2953
        %3160 = vmatprep.subr.bf16.mxu0 %v2950
        %3161 = vmatpush1.bf16.msra.mxu0 %v2949
        %3162 = vmatprep.subr.bf16.mxu0 %v2946
        %3163 = vmatpush1.bf16.msra.mxu0 %v2945
        %3164 = vmatprep.subr.bf16.mxu0 %v2942
        %3165 = vmatpush1.bf16.msra.mxu0 %v2941
        %3166 = vmatprep.subr.bf16.mxu0 %v2938
        %3167 = vmatpush1.bf16.msra.mxu0 %v2937
        %3168 = vmatprep.subr.bf16.mxu0 %v2934
        %3169 = vmatpush1.bf16.msra.mxu0 %v2933
        %3170 = vmatprep.subr.bf16.mxu0 %v2930
        %3171 = vmatpush1.bf16.msra.mxu0 %v2929
        %3172 = vmatprep.subr.bf16.mxu0 %v2926
        %3173 = vmatpush1.bf16.msra.mxu0 %v2925
        %3174 = vmatprep.subr.bf16.mxu0 %v2986
        %3175 = vmatpush2.bf16.msra.mxu0 %v2985
        %3176 = vmatprep.subr.bf16.mxu0 %v2982
        %3177 = vmatpush2.bf16.msra.mxu0 %v2981
        %3178 = vmatprep.subr.bf16.mxu0 %v2978
        %3179 = vmatpush2.bf16.msra.mxu0 %v2977
        %3180 = vmatprep.subr.bf16.mxu0 %v2974
        %3181 = vmatpush2.bf16.msra.mxu0 %v2973
        %3182 = vmatprep.subr.bf16.mxu0 %v2970
        %3183 = vmatpush2.bf16.msra.mxu0 %v2969
        %3184 = vmatprep.subr.bf16.mxu0 %v2966
        %3185 = vmatpush2.bf16.msra.mxu0 %v2965
        %3186 = vmatprep.subr.bf16.mxu0 %v2962
        %3187 = vmatpush2.bf16.msra.mxu0 %v2961
        %3188 = vmatprep.subr.bf16.mxu0 %v2958
        %3189 = vmatpush2.bf16.msra.mxu0 %v2957
        %3190 = vmatprep.mubr.bf16.mxu0 %v482
        %3191 = vmatmul.mubr.bf16.gmra.mxu0 %v481
        %v3192 = vpop.f32.mrf.mxu0
        %v3193 = vadd.f32 %v3152, %v3192
        %v3194 = vpop.f32.mrf.mxu0
        %v3195 = vadd.f32 %v3154, %v3194
        %v3196 = vpop.f32.mrf.mxu0
        %v3197 = vpop.f32.mrf.mxu0
        %3198 = vdwg.mxu0
        %3199 = vmatprep.subr.bf16.mxu0 %v2892
        %3200 = vmatpush1.bf16.msra.mxu0 %v2891
        %3201 = vmatprep.subr.bf16.mxu0 %v2888
        %3202 = vmatpush1.bf16.msra.mxu0 %v2887
        %3203 = vmatprep.subr.bf16.mxu0 %v2884
        %3204 = vmatpush1.bf16.msra.mxu0 %v2883
        %3205 = vmatprep.subr.bf16.mxu0 %v2880
        %3206 = vmatpush1.bf16.msra.mxu0 %v2879
        %3207 = vmatprep.subr.bf16.mxu0 %v2876
        %3208 = vmatpush1.bf16.msra.mxu0 %v2875
        %3209 = vmatprep.subr.bf16.mxu0 %v2872
        %3210 = vmatpush1.bf16.msra.mxu0 %v2871
        %3211 = vmatprep.subr.bf16.mxu0 %v2868
        %3212 = vmatpush1.bf16.msra.mxu0 %v2867
        %3213 = vmatprep.subr.bf16.mxu0 %v2864
        %3214 = vmatpush1.bf16.msra.mxu0 %v2863
        %3215 = vmatprep.subr.bf16.mxu0 %v2924
        %3216 = vmatpush2.bf16.msra.mxu0 %v2923
        %3217 = vmatprep.subr.bf16.mxu0 %v2920
        %3218 = vmatpush2.bf16.msra.mxu0 %v2919
        %3219 = vmatprep.subr.bf16.mxu0 %v2916
        %3220 = vmatpush2.bf16.msra.mxu0 %v2915
        %3221 = vmatprep.subr.bf16.mxu0 %v2912
        %3222 = vmatpush2.bf16.msra.mxu0 %v2911
        %3223 = vmatprep.subr.bf16.mxu0 %v2908
        %3224 = vmatpush2.bf16.msra.mxu0 %v2907
        %3225 = vmatprep.subr.bf16.mxu0 %v2904
        %3226 = vmatpush2.bf16.msra.mxu0 %v2903
        %3227 = vmatprep.subr.bf16.mxu0 %v2900
        %3228 = vmatpush2.bf16.msra.mxu0 %v2899
        %3229 = vmatprep.subr.bf16.mxu0 %v2896
        %3230 = vmatpush2.bf16.msra.mxu0 %v2895
        %3231 = vmatprep.mubr.bf16.mxu0 %v480
        %3232 = vmatmul.mubr.bf16.gmra.mxu0 %v479
        %v3233 = vpop.f32.mrf.mxu0
        %v3234 = vadd.f32 0.0, %v3233
        %v3235 = vpop.f32.mrf.mxu0
        %v3236 = vadd.f32 0.0, %v3235
        %v3237 = vpop.f32.mrf.mxu0
        %v3238 = vpop.f32.mrf.mxu0
        %3239 = vdwg.mxu0
        %3240 = vmatprep.subr.bf16.mxu0 %v2956
        %3241 = vmatpush1.bf16.msra.mxu0 %v2955
        %3242 = vmatprep.subr.bf16.mxu0 %v2952
        %3243 = vmatpush1.bf16.msra.mxu0 %v2951
        %3244 = vmatprep.subr.bf16.mxu0 %v2948
        %3245 = vmatpush1.bf16.msra.mxu0 %v2947
        %3246 = vmatprep.subr.bf16.mxu0 %v2944
        %3247 = vmatpush1.bf16.msra.mxu0 %v2943
        %3248 = vmatprep.subr.bf16.mxu0 %v2940
        %3249 = vmatpush1.bf16.msra.mxu0 %v2939
        %3250 = vmatprep.subr.bf16.mxu0 %v2936
        %3251 = vmatpush1.bf16.msra.mxu0 %v2935
        %3252 = vmatprep.subr.bf16.mxu0 %v2932
        %3253 = vmatpush1.bf16.msra.mxu0 %v2931
        %3254 = vmatprep.subr.bf16.mxu0 %v2928
        %3255 = vmatpush1.bf16.msra.mxu0 %v2927
        %3256 = vmatprep.subr.bf16.mxu0 %v2988
        %3257 = vmatpush2.bf16.msra.mxu0 %v2987
        %3258 = vmatprep.subr.bf16.mxu0 %v2984
        %3259 = vmatpush2.bf16.msra.mxu0 %v2983
        %3260 = vmatprep.subr.bf16.mxu0 %v2980
        %3261 = vmatpush2.bf16.msra.mxu0 %v2979
        %3262 = vmatprep.subr.bf16.mxu0 %v2976
        %3263 = vmatpush2.bf16.msra.mxu0 %v2975
        %3264 = vmatprep.subr.bf16.mxu0 %v2972
        %3265 = vmatpush2.bf16.msra.mxu0 %v2971
        %3266 = vmatprep.subr.bf16.mxu0 %v2968
        %3267 = vmatpush2.bf16.msra.mxu0 %v2967
        %3268 = vmatprep.subr.bf16.mxu0 %v2964
        %3269 = vmatpush2.bf16.msra.mxu0 %v2963
        %3270 = vmatprep.subr.bf16.mxu0 %v2960
        %3271 = vmatpush2.bf16.msra.mxu0 %v2959
        %3272 = vmatprep.mubr.bf16.mxu0 %v482
        %3273 = vmatmul.mubr.bf16.gmra.mxu0 %v481
        %v3274 = vpop.f32.mrf.mxu0
        %v3275 = vadd.f32 %v3234, %v3274
        %v3276 = vpop.f32.mrf.mxu0
        %v3277 = vadd.f32 %v3236, %v3276
        %v3278 = vpop.f32.mrf.mxu0
        %v3279 = vpop.f32.mrf.mxu0
        %3280 = vdwg.mxu0
        %3282 = vrot.lane.b32.xlu0 %v1327, 64
        %v3283 = vpop.permute.xlu0 %3282
        %3286 = vrot.lane.b32.xlu0 %v1329, 64
        %v3287 = vpop.permute.xlu0 %3286
        %3290 = vrot.lane.b32.xlu0 %v1409, 64
        %v3291 = vpop.permute.xlu0 %3290
        %3294 = vrot.lane.b32.xlu0 %v1411, 64
        %v3295 = vpop.permute.xlu0 %3294
        %v3297 = vcombine.low %v1327, %v1329
        %v3298 = vcombine.high %v1327, %v1329
        %v3300 = vunpack.c.l.s4 1983009808
        %v3301 = vunpack.c.0.s8 %v3300
        %v3302 = vlaneseq
        %v3303 = vshrl.u32 %v3302, 7
        %v3304 = vsub.s32 %v3301, %v3303
        %v3305 = vrot.slane %v3297, %v3304
        %v3307 = vunpack.c.l.s4 1983009808
        %v3308 = vunpack.c.0.s8 %v3307
        %v3309 = vlaneseq
        %v3310 = vshrl.u32 %v3309, 7
        %v3311 = vsub.s32 %v3308, %v3310
        %v3312 = vrot.slane %v3298, %v3311
        %v3313 = vcombine.low %v3283, %v3287
        %v3314 = vcombine.high %v3283, %v3287
        %v3316 = vunpack.c.l.s4 1983009808
        %v3317 = vunpack.c.0.s8 %v3316
        %v3318 = vlaneseq
        %v3319 = vshrl.u32 %v3318, 7
        %v3320 = vsub.s32 %v3317, %v3319
        %v3321 = vrot.slane %v3313, %v3320
        %v3323 = vunpack.c.l.s4 1983009808
        %v3324 = vunpack.c.0.s8 %v3323
        %v3325 = vlaneseq
        %v3326 = vshrl.u32 %v3325, 7
        %v3327 = vsub.s32 %v3324, %v3326
        %v3328 = vrot.slane %v3314, %v3327
        %v3329 = vcombine.low %v1409, %v1411
        %v3330 = vcombine.high %v1409, %v1411
        %v3332 = vunpack.c.l.s4 1983009808
        %v3333 = vunpack.c.0.s8 %v3332
        %v3334 = vlaneseq
        %v3335 = vshrl.u32 %v3334, 7
        %v3336 = vsub.s32 %v3333, %v3335
        %v3337 = vrot.slane %v3329, %v3336
        %v3339 = vunpack.c.l.s4 1983009808
        %v3340 = vunpack.c.0.s8 %v3339
        %v3341 = vlaneseq
        %v3342 = vshrl.u32 %v3341, 7
        %v3343 = vsub.s32 %v3340, %v3342
        %v3344 = vrot.slane %v3330, %v3343
        %v3345 = vcombine.low %v3291, %v3295
        %v3346 = vcombine.high %v3291, %v3295
        %v3348 = vunpack.c.l.s4 1983009808
        %v3349 = vunpack.c.0.s8 %v3348
        %v3350 = vlaneseq
        %v3351 = vshrl.u32 %v3350, 7
        %v3352 = vsub.s32 %v3349, %v3351
        %v3353 = vrot.slane %v3345, %v3352
        %v3355 = vunpack.c.l.s4 1983009808
        %v3356 = vunpack.c.0.s8 %v3355
        %v3357 = vlaneseq
        %v3358 = vshrl.u32 %v3357, 7
        %v3359 = vsub.s32 %v3356, %v3358
        %v3360 = vrot.slane %v3346, %v3359
        %v3361 = vcombine.low %v3305, %v3321
        %v3362 = vcombine.high %v3305, %v3321
        %v3364 = vunpack.c.l.s4 1934713408
        %v3365 = vunpack.c.0.s8 %v3364
        %v3366 = vlaneseq
        %v3367 = vshrl.u32 %v3366, 7
        %v3368 = vsub.s32 %v3365, %v3367
        %v3369 = vrot.slane %v3361, %v3368
        %v3371 = vunpack.c.l.s4 1934713408
        %v3372 = vunpack.c.0.s8 %v3371
        %v3373 = vlaneseq
        %v3374 = vshrl.u32 %v3373, 7
        %v3375 = vsub.s32 %v3372, %v3374
        %v3376 = vrot.slane %v3362, %v3375
        %v3377 = vcombine.low %v3312, %v3328
        %v3378 = vcombine.high %v3312, %v3328
        %v3380 = vunpack.c.l.s4 1934713408
        %v3381 = vunpack.c.0.s8 %v3380
        %v3382 = vlaneseq
        %v3383 = vshrl.u32 %v3382, 7
        %v3384 = vsub.s32 %v3381, %v3383
        %v3385 = vrot.slane %v3377, %v3384
        %v3387 = vunpack.c.l.s4 1934713408
        %v3388 = vunpack.c.0.s8 %v3387
        %v3389 = vlaneseq
        %v3390 = vshrl.u32 %v3389, 7
        %v3391 = vsub.s32 %v3388, %v3390
        %v3392 = vrot.slane %v3378, %v3391
        %v3393 = vcombine.low %v3337, %v3353
        %v3394 = vcombine.high %v3337, %v3353
        %v3396 = vunpack.c.l.s4 1934713408
        %v3397 = vunpack.c.0.s8 %v3396
        %v3398 = vlaneseq
        %v3399 = vshrl.u32 %v3398, 7
        %v3400 = vsub.s32 %v3397, %v3399
        %v3401 = vrot.slane %v3393, %v3400
        %v3403 = vunpack.c.l.s4 1934713408
        %v3404 = vunpack.c.0.s8 %v3403
        %v3405 = vlaneseq
        %v3406 = vshrl.u32 %v3405, 7
        %v3407 = vsub.s32 %v3404, %v3406
        %v3408 = vrot.slane %v3394, %v3407
        %v3409 = vcombine.low %v3344, %v3360
        %v3410 = vcombine.high %v3344, %v3360
        %v3412 = vunpack.c.l.s4 1934713408
        %v3413 = vunpack.c.0.s8 %v3412
        %v3414 = vlaneseq
        %v3415 = vshrl.u32 %v3414, 7
        %v3416 = vsub.s32 %v3413, %v3415
        %v3417 = vrot.slane %v3409, %v3416
        %v3419 = vunpack.c.l.s4 1934713408
        %v3420 = vunpack.c.0.s8 %v3419
        %v3421 = vlaneseq
        %v3422 = vshrl.u32 %v3421, 7
        %v3423 = vsub.s32 %v3420, %v3422
        %v3424 = vrot.slane %v3410, %v3423
        %v3425 = vcombine.low %v3369, %v3401
        %v3426 = vcombine.high %v3369, %v3401
        %v3427 = vcombine.low %v3376, %v3408
        %v3428 = vcombine.high %v3376, %v3408
        %v3429 = vcombine.low %v3385, %v3417
        %v3430 = vcombine.high %v3385, %v3417
        %v3431 = vcombine.low %v3392, %v3424
        %v3432 = vcombine.high %v3392, %v3424
        %v3433 = vcombine.low %v3425, %v3427
        %v3434 = vcombine.high %v3425, %v3427
        %v3436 = vunpack.c.l.s4 1983009808
        %v3437 = vunpack.c.0.s8 %v3436
        %v3438 = vlaneseq
        %v3439 = vshrl.u32 %v3438, 7
        %v3440 = vsub.s32 %v3437, %v3439
        %v3441 = vrot.slane %v3433, %v3440
        %v3443 = vunpack.c.l.s4 1983009808
        %v3444 = vunpack.c.0.s8 %v3443
        %v3445 = vlaneseq
        %v3446 = vshrl.u32 %v3445, 7
        %v3447 = vsub.s32 %v3444, %v3446
        %v3448 = vrot.slane %v3434, %v3447
        %v3449 = vcombine.low %v3426, %v3428
        %v3450 = vcombine.high %v3426, %v3428
        %v3452 = vunpack.c.l.s4 1983009808
        %v3453 = vunpack.c.0.s8 %v3452
        %v3454 = vlaneseq
        %v3455 = vshrl.u32 %v3454, 7
        %v3456 = vsub.s32 %v3453, %v3455
        %v3457 = vrot.slane %v3449, %v3456
        %v3459 = vunpack.c.l.s4 1983009808
        %v3460 = vunpack.c.0.s8 %v3459
        %v3461 = vlaneseq
        %v3462 = vshrl.u32 %v3461, 7
        %v3463 = vsub.s32 %v3460, %v3462
        %v3464 = vrot.slane %v3450, %v3463
        %v3465 = vcombine.low %v3429, %v3431
        %v3466 = vcombine.high %v3429, %v3431
        %v3468 = vunpack.c.l.s4 1983009808
        %v3469 = vunpack.c.0.s8 %v3468
        %v3470 = vlaneseq
        %v3471 = vshrl.u32 %v3470, 7
        %v3472 = vsub.s32 %v3469, %v3471
        %v3473 = vrot.slane %v3465, %v3472
        %v3475 = vunpack.c.l.s4 1983009808
        %v3476 = vunpack.c.0.s8 %v3475
        %v3477 = vlaneseq
        %v3478 = vshrl.u32 %v3477, 7
        %v3479 = vsub.s32 %v3476, %v3478
        %v3480 = vrot.slane %v3466, %v3479
        %v3481 = vcombine.low %v3430, %v3432
        %v3482 = vcombine.high %v3430, %v3432
        %v3484 = vunpack.c.l.s4 1983009808
        %v3485 = vunpack.c.0.s8 %v3484
        %v3486 = vlaneseq
        %v3487 = vshrl.u32 %v3486, 7
        %v3488 = vsub.s32 %v3485, %v3487
        %v3489 = vrot.slane %v3481, %v3488
        %v3491 = vunpack.c.l.s4 1983009808
        %v3492 = vunpack.c.0.s8 %v3491
        %v3493 = vlaneseq
        %v3494 = vshrl.u32 %v3493, 7
        %v3495 = vsub.s32 %v3492, %v3494
        %v3496 = vrot.slane %v3482, %v3495
        %v3497 = vcombine.low %v3441, %v3457
        %v3498 = vcombine.high %v3441, %v3457
        %v3500 = vunpack.c.l.s4 1934713408
        %v3501 = vunpack.c.0.s8 %v3500
        %v3502 = vlaneseq
        %v3503 = vshrl.u32 %v3502, 7
        %v3504 = vsub.s32 %v3501, %v3503
        %v3505 = vrot.slane %v3497, %v3504
        %v3507 = vunpack.c.l.s4 1934713408
        %v3508 = vunpack.c.0.s8 %v3507
        %v3509 = vlaneseq
        %v3510 = vshrl.u32 %v3509, 7
        %v3511 = vsub.s32 %v3508, %v3510
        %v3512 = vrot.slane %v3498, %v3511
        %v3513 = vcombine.low %v3448, %v3464
        %v3514 = vcombine.high %v3448, %v3464
        %v3516 = vunpack.c.l.s4 1934713408
        %v3517 = vunpack.c.0.s8 %v3516
        %v3518 = vlaneseq
        %v3519 = vshrl.u32 %v3518, 7
        %v3520 = vsub.s32 %v3517, %v3519
        %v3521 = vrot.slane %v3513, %v3520
        %v3523 = vunpack.c.l.s4 1934713408
        %v3524 = vunpack.c.0.s8 %v3523
        %v3525 = vlaneseq
        %v3526 = vshrl.u32 %v3525, 7
        %v3527 = vsub.s32 %v3524, %v3526
        %v3528 = vrot.slane %v3514, %v3527
        %v3529 = vcombine.low %v3473, %v3489
        %v3530 = vcombine.high %v3473, %v3489
        %v3532 = vunpack.c.l.s4 1934713408
        %v3533 = vunpack.c.0.s8 %v3532
        %v3534 = vlaneseq
        %v3535 = vshrl.u32 %v3534, 7
        %v3536 = vsub.s32 %v3533, %v3535
        %v3537 = vrot.slane %v3529, %v3536
        %v3539 = vunpack.c.l.s4 1934713408
        %v3540 = vunpack.c.0.s8 %v3539
        %v3541 = vlaneseq
        %v3542 = vshrl.u32 %v3541, 7
        %v3543 = vsub.s32 %v3540, %v3542
        %v3544 = vrot.slane %v3530, %v3543
        %v3545 = vcombine.low %v3480, %v3496
        %v3546 = vcombine.high %v3480, %v3496
        %v3548 = vunpack.c.l.s4 1934713408
        %v3549 = vunpack.c.0.s8 %v3548
        %v3550 = vlaneseq
        %v3551 = vshrl.u32 %v3550, 7
        %v3552 = vsub.s32 %v3549, %v3551
        %v3553 = vrot.slane %v3545, %v3552
        %v3555 = vunpack.c.l.s4 1934713408
        %v3556 = vunpack.c.0.s8 %v3555
        %v3557 = vlaneseq
        %v3558 = vshrl.u32 %v3557, 7
        %v3559 = vsub.s32 %v3556, %v3558
        %v3560 = vrot.slane %v3546, %v3559
        %v3561 = vcombine.low %v3505, %v3537
        %v3562 = vcombine.high %v3505, %v3537
        %v3563 = vcombine.low %v3512, %v3544
        %v3564 = vcombine.high %v3512, %v3544
        %v3565 = vcombine.low %v3521, %v3553
        %v3566 = vcombine.high %v3521, %v3553
        %v3567 = vcombine.low %v3528, %v3560
        %v3568 = vcombine.high %v3528, %v3560
        %v3569 = vpack.c.bf16 %v3561, %v3561
        %v3570 = vpack.c.bf16 %v3562, %v3562
        %v3571 = vpack.c.bf16 %v3563, %v3563
        %v3572 = vpack.c.bf16 %v3564, %v3564
        %v3573 = vpack.c.bf16 %v3565, %v3565
        %v3574 = vpack.c.bf16 %v3566, %v3566
        %v3575 = vpack.c.bf16 %v3567, %v3567
        %v3576 = vpack.c.bf16 %v3568, %v3568
        %3578 = vrot.lane.b32.xlu0 %v2260, 64
        %v3579 = vpop.permute.xlu0 %3578
        %3582 = vrot.lane.b32.xlu0 %v2262, 64
        %v3583 = vpop.permute.xlu0 %3582
        %3586 = vrot.lane.b32.xlu0 %v2342, 64
        %v3587 = vpop.permute.xlu0 %3586
        %3590 = vrot.lane.b32.xlu0 %v2344, 64
        %v3591 = vpop.permute.xlu0 %3590
        %v3593 = vcombine.low %v2260, %v2262
        %v3594 = vcombine.high %v2260, %v2262
        %v3596 = vunpack.c.l.s4 1983009808
        %v3597 = vunpack.c.0.s8 %v3596
        %v3598 = vlaneseq
        %v3599 = vshrl.u32 %v3598, 7
        %v3600 = vsub.s32 %v3597, %v3599
        %v3601 = vrot.slane %v3593, %v3600
        %v3603 = vunpack.c.l.s4 1983009808
        %v3604 = vunpack.c.0.s8 %v3603
        %v3605 = vlaneseq
        %v3606 = vshrl.u32 %v3605, 7
        %v3607 = vsub.s32 %v3604, %v3606
        %v3608 = vrot.slane %v3594, %v3607
        %v3609 = vcombine.low %v3579, %v3583
        %v3610 = vcombine.high %v3579, %v3583
        %v3612 = vunpack.c.l.s4 1983009808
        %v3613 = vunpack.c.0.s8 %v3612
        %v3614 = vlaneseq
        %v3615 = vshrl.u32 %v3614, 7
        %v3616 = vsub.s32 %v3613, %v3615
        %v3617 = vrot.slane %v3609, %v3616
        %v3619 = vunpack.c.l.s4 1983009808
        %v3620 = vunpack.c.0.s8 %v3619
        %v3621 = vlaneseq
        %v3622 = vshrl.u32 %v3621, 7
        %v3623 = vsub.s32 %v3620, %v3622
        %v3624 = vrot.slane %v3610, %v3623
        %v3625 = vcombine.low %v2342, %v2344
        %v3626 = vcombine.high %v2342, %v2344
        %v3628 = vunpack.c.l.s4 1983009808
        %v3629 = vunpack.c.0.s8 %v3628
        %v3630 = vlaneseq
        %v3631 = vshrl.u32 %v3630, 7
        %v3632 = vsub.s32 %v3629, %v3631
        %v3633 = vrot.slane %v3625, %v3632
        %v3635 = vunpack.c.l.s4 1983009808
        %v3636 = vunpack.c.0.s8 %v3635
        %v3637 = vlaneseq
        %v3638 = vshrl.u32 %v3637, 7
        %v3639 = vsub.s32 %v3636, %v3638
        %v3640 = vrot.slane %v3626, %v3639
        %v3641 = vcombine.low %v3587, %v3591
        %v3642 = vcombine.high %v3587, %v3591
        %v3644 = vunpack.c.l.s4 1983009808
        %v3645 = vunpack.c.0.s8 %v3644
        %v3646 = vlaneseq
        %v3647 = vshrl.u32 %v3646, 7
        %v3648 = vsub.s32 %v3645, %v3647
        %v3649 = vrot.slane %v3641, %v3648
        %v3651 = vunpack.c.l.s4 1983009808
        %v3652 = vunpack.c.0.s8 %v3651
        %v3653 = vlaneseq
        %v3654 = vshrl.u32 %v3653, 7
        %v3655 = vsub.s32 %v3652, %v3654
        %v3656 = vrot.slane %v3642, %v3655
        %v3657 = vcombine.low %v3601, %v3617
        %v3658 = vcombine.high %v3601, %v3617
        %v3660 = vunpack.c.l.s4 1934713408
        %v3661 = vunpack.c.0.s8 %v3660
        %v3662 = vlaneseq
        %v3663 = vshrl.u32 %v3662, 7
        %v3664 = vsub.s32 %v3661, %v3663
        %v3665 = vrot.slane %v3657, %v3664
        %v3667 = vunpack.c.l.s4 1934713408
        %v3668 = vunpack.c.0.s8 %v3667
        %v3669 = vlaneseq
        %v3670 = vshrl.u32 %v3669, 7
        %v3671 = vsub.s32 %v3668, %v3670
        %v3672 = vrot.slane %v3658, %v3671
        %v3673 = vcombine.low %v3608, %v3624
        %v3674 = vcombine.high %v3608, %v3624
        %v3676 = vunpack.c.l.s4 1934713408
        %v3677 = vunpack.c.0.s8 %v3676
        %v3678 = vlaneseq
        %v3679 = vshrl.u32 %v3678, 7
        %v3680 = vsub.s32 %v3677, %v3679
        %v3681 = vrot.slane %v3673, %v3680
        %v3683 = vunpack.c.l.s4 1934713408
        %v3684 = vunpack.c.0.s8 %v3683
        %v3685 = vlaneseq
        %v3686 = vshrl.u32 %v3685, 7
        %v3687 = vsub.s32 %v3684, %v3686
        %v3688 = vrot.slane %v3674, %v3687
        %v3689 = vcombine.low %v3633, %v3649
        %v3690 = vcombine.high %v3633, %v3649
        %v3692 = vunpack.c.l.s4 1934713408
        %v3693 = vunpack.c.0.s8 %v3692
        %v3694 = vlaneseq
        %v3695 = vshrl.u32 %v3694, 7
        %v3696 = vsub.s32 %v3693, %v3695
        %v3697 = vrot.slane %v3689, %v3696
        %v3699 = vunpack.c.l.s4 1934713408
        %v3700 = vunpack.c.0.s8 %v3699
        %v3701 = vlaneseq
        %v3702 = vshrl.u32 %v3701, 7
        %v3703 = vsub.s32 %v3700, %v3702
        %v3704 = vrot.slane %v3690, %v3703
        %v3705 = vcombine.low %v3640, %v3656
        %v3706 = vcombine.high %v3640, %v3656
        %v3708 = vunpack.c.l.s4 1934713408
        %v3709 = vunpack.c.0.s8 %v3708
        %v3710 = vlaneseq
        %v3711 = vshrl.u32 %v3710, 7
        %v3712 = vsub.s32 %v3709, %v3711
        %v3713 = vrot.slane %v3705, %v3712
        %v3715 = vunpack.c.l.s4 1934713408
        %v3716 = vunpack.c.0.s8 %v3715
        %v3717 = vlaneseq
        %v3718 = vshrl.u32 %v3717, 7
        %v3719 = vsub.s32 %v3716, %v3718
        %v3720 = vrot.slane %v3706, %v3719
        %v3721 = vcombine.low %v3665, %v3697
        %v3722 = vcombine.high %v3665, %v3697
        %v3723 = vcombine.low %v3672, %v3704
        %v3724 = vcombine.high %v3672, %v3704
        %v3725 = vcombine.low %v3681, %v3713
        %v3726 = vcombine.high %v3681, %v3713
        %v3727 = vcombine.low %v3688, %v3720
        %v3728 = vcombine.high %v3688, %v3720
        %v3729 = vcombine.low %v3721, %v3723
        %v3730 = vcombine.high %v3721, %v3723
        %v3732 = vunpack.c.l.s4 1983009808
        %v3733 = vunpack.c.0.s8 %v3732
        %v3734 = vlaneseq
        %v3735 = vshrl.u32 %v3734, 7
        %v3736 = vsub.s32 %v3733, %v3735
        %v3737 = vrot.slane %v3729, %v3736
        %v3739 = vunpack.c.l.s4 1983009808
        %v3740 = vunpack.c.0.s8 %v3739
        %v3741 = vlaneseq
        %v3742 = vshrl.u32 %v3741, 7
        %v3743 = vsub.s32 %v3740, %v3742
        %v3744 = vrot.slane %v3730, %v3743
        %v3745 = vcombine.low %v3722, %v3724
        %v3746 = vcombine.high %v3722, %v3724
        %v3748 = vunpack.c.l.s4 1983009808
        %v3749 = vunpack.c.0.s8 %v3748
        %v3750 = vlaneseq
        %v3751 = vshrl.u32 %v3750, 7
        %v3752 = vsub.s32 %v3749, %v3751
        %v3753 = vrot.slane %v3745, %v3752
        %v3755 = vunpack.c.l.s4 1983009808
        %v3756 = vunpack.c.0.s8 %v3755
        %v3757 = vlaneseq
        %v3758 = vshrl.u32 %v3757, 7
        %v3759 = vsub.s32 %v3756, %v3758
        %v3760 = vrot.slane %v3746, %v3759
        %v3761 = vcombine.low %v3725, %v3727
        %v3762 = vcombine.high %v3725, %v3727
        %v3764 = vunpack.c.l.s4 1983009808
        %v3765 = vunpack.c.0.s8 %v3764
        %v3766 = vlaneseq
        %v3767 = vshrl.u32 %v3766, 7
        %v3768 = vsub.s32 %v3765, %v3767
        %v3769 = vrot.slane %v3761, %v3768
        %v3771 = vunpack.c.l.s4 1983009808
        %v3772 = vunpack.c.0.s8 %v3771
        %v3773 = vlaneseq
        %v3774 = vshrl.u32 %v3773, 7
        %v3775 = vsub.s32 %v3772, %v3774
        %v3776 = vrot.slane %v3762, %v3775
        %v3777 = vcombine.low %v3726, %v3728
        %v3778 = vcombine.high %v3726, %v3728
        %v3780 = vunpack.c.l.s4 1983009808
        %v3781 = vunpack.c.0.s8 %v3780
        %v3782 = vlaneseq
        %v3783 = vshrl.u32 %v3782, 7
        %v3784 = vsub.s32 %v3781, %v3783
        %v3785 = vrot.slane %v3777, %v3784
        %v3787 = vunpack.c.l.s4 1983009808
        %v3788 = vunpack.c.0.s8 %v3787
        %v3789 = vlaneseq
        %v3790 = vshrl.u32 %v3789, 7
        %v3791 = vsub.s32 %v3788, %v3790
        %v3792 = vrot.slane %v3778, %v3791
        %v3793 = vcombine.low %v3737, %v3753
        %v3794 = vcombine.high %v3737, %v3753
        %v3796 = vunpack.c.l.s4 1934713408
        %v3797 = vunpack.c.0.s8 %v3796
        %v3798 = vlaneseq
        %v3799 = vshrl.u32 %v3798, 7
        %v3800 = vsub.s32 %v3797, %v3799
        %v3801 = vrot.slane %v3793, %v3800
        %v3803 = vunpack.c.l.s4 1934713408
        %v3804 = vunpack.c.0.s8 %v3803
        %v3805 = vlaneseq
        %v3806 = vshrl.u32 %v3805, 7
        %v3807 = vsub.s32 %v3804, %v3806
        %v3808 = vrot.slane %v3794, %v3807
        %v3809 = vcombine.low %v3744, %v3760
        %v3810 = vcombine.high %v3744, %v3760
        %v3812 = vunpack.c.l.s4 1934713408
        %v3813 = vunpack.c.0.s8 %v3812
        %v3814 = vlaneseq
        %v3815 = vshrl.u32 %v3814, 7
        %v3816 = vsub.s32 %v3813, %v3815
        %v3817 = vrot.slane %v3809, %v3816
        %v3819 = vunpack.c.l.s4 1934713408
        %v3820 = vunpack.c.0.s8 %v3819
        %v3821 = vlaneseq
        %v3822 = vshrl.u32 %v3821, 7
        %v3823 = vsub.s32 %v3820, %v3822
        %v3824 = vrot.slane %v3810, %v3823
        %v3825 = vcombine.low %v3769, %v3785
        %v3826 = vcombine.high %v3769, %v3785
        %v3828 = vunpack.c.l.s4 1934713408
        %v3829 = vunpack.c.0.s8 %v3828
        %v3830 = vlaneseq
        %v3831 = vshrl.u32 %v3830, 7
        %v3832 = vsub.s32 %v3829, %v3831
        %v3833 = vrot.slane %v3825, %v3832
        %v3835 = vunpack.c.l.s4 1934713408
        %v3836 = vunpack.c.0.s8 %v3835
        %v3837 = vlaneseq
        %v3838 = vshrl.u32 %v3837, 7
        %v3839 = vsub.s32 %v3836, %v3838
        %v3840 = vrot.slane %v3826, %v3839
        %v3841 = vcombine.low %v3776, %v3792
        %v3842 = vcombine.high %v3776, %v3792
        %v3844 = vunpack.c.l.s4 1934713408
        %v3845 = vunpack.c.0.s8 %v3844
        %v3846 = vlaneseq
        %v3847 = vshrl.u32 %v3846, 7
        %v3848 = vsub.s32 %v3845, %v3847
        %v3849 = vrot.slane %v3841, %v3848
        %v3851 = vunpack.c.l.s4 1934713408
        %v3852 = vunpack.c.0.s8 %v3851
        %v3853 = vlaneseq
        %v3854 = vshrl.u32 %v3853, 7
        %v3855 = vsub.s32 %v3852, %v3854
        %v3856 = vrot.slane %v3842, %v3855
        %v3857 = vcombine.low %v3801, %v3833
        %v3858 = vcombine.high %v3801, %v3833
        %v3859 = vcombine.low %v3808, %v3840
        %v3860 = vcombine.high %v3808, %v3840
        %v3861 = vcombine.low %v3817, %v3849
        %v3862 = vcombine.high %v3817, %v3849
        %v3863 = vcombine.low %v3824, %v3856
        %v3864 = vcombine.high %v3824, %v3856
        %v3865 = vpack.c.bf16 %v3857, %v3857
        %v3866 = vpack.c.bf16 %v3858, %v3858
        %v3867 = vpack.c.bf16 %v3859, %v3859
        %v3868 = vpack.c.bf16 %v3860, %v3860
        %v3869 = vpack.c.bf16 %v3861, %v3861
        %v3870 = vpack.c.bf16 %v3862, %v3862
        %v3871 = vpack.c.bf16 %v3863, %v3863
        %v3872 = vpack.c.bf16 %v3864, %v3864
        %3874 = vrot.lane.b32.xlu0 %v3193, 64
        %v3875 = vpop.permute.xlu0 %3874
        %3878 = vrot.lane.b32.xlu0 %v3195, 64
        %v3879 = vpop.permute.xlu0 %3878
        %3882 = vrot.lane.b32.xlu0 %v3275, 64
        %v3883 = vpop.permute.xlu0 %3882
        %3886 = vrot.lane.b32.xlu0 %v3277, 64
        %v3887 = vpop.permute.xlu0 %3886
        %v3889 = vcombine.low %v3193, %v3195
        %v3890 = vcombine.high %v3193, %v3195
        %v3892 = vunpack.c.l.s4 1983009808
        %v3893 = vunpack.c.0.s8 %v3892
        %v3894 = vlaneseq
        %v3895 = vshrl.u32 %v3894, 7
        %v3896 = vsub.s32 %v3893, %v3895
        %v3897 = vrot.slane %v3889, %v3896
        %v3899 = vunpack.c.l.s4 1983009808
        %v3900 = vunpack.c.0.s8 %v3899
        %v3901 = vlaneseq
        %v3902 = vshrl.u32 %v3901, 7
        %v3903 = vsub.s32 %v3900, %v3902
        %v3904 = vrot.slane %v3890, %v3903
        %v3905 = vcombine.low %v3875, %v3879
        %v3906 = vcombine.high %v3875, %v3879
        %v3908 = vunpack.c.l.s4 1983009808
        %v3909 = vunpack.c.0.s8 %v3908
        %v3910 = vlaneseq
        %v3911 = vshrl.u32 %v3910, 7
        %v3912 = vsub.s32 %v3909, %v3911
        %v3913 = vrot.slane %v3905, %v3912
        %v3915 = vunpack.c.l.s4 1983009808
        %v3916 = vunpack.c.0.s8 %v3915
        %v3917 = vlaneseq
        %v3918 = vshrl.u32 %v3917, 7
        %v3919 = vsub.s32 %v3916, %v3918
        %v3920 = vrot.slane %v3906, %v3919
        %v3921 = vcombine.low %v3275, %v3277
        %v3922 = vcombine.high %v3275, %v3277
        %v3924 = vunpack.c.l.s4 1983009808
        %v3925 = vunpack.c.0.s8 %v3924
        %v3926 = vlaneseq
        %v3927 = vshrl.u32 %v3926, 7
        %v3928 = vsub.s32 %v3925, %v3927
        %v3929 = vrot.slane %v3921, %v3928
        %v3931 = vunpack.c.l.s4 1983009808
        %v3932 = vunpack.c.0.s8 %v3931
        %v3933 = vlaneseq
        %v3934 = vshrl.u32 %v3933, 7
        %v3935 = vsub.s32 %v3932, %v3934
        %v3936 = vrot.slane %v3922, %v3935
        %v3937 = vcombine.low %v3883, %v3887
        %v3938 = vcombine.high %v3883, %v3887
        %v3940 = vunpack.c.l.s4 1983009808
        %v3941 = vunpack.c.0.s8 %v3940
        %v3942 = vlaneseq
        %v3943 = vshrl.u32 %v3942, 7
        %v3944 = vsub.s32 %v3941, %v3943
        %v3945 = vrot.slane %v3937, %v3944
        %v3947 = vunpack.c.l.s4 1983009808
        %v3948 = vunpack.c.0.s8 %v3947
        %v3949 = vlaneseq
        %v3950 = vshrl.u32 %v3949, 7
        %v3951 = vsub.s32 %v3948, %v3950
        %v3952 = vrot.slane %v3938, %v3951
        %v3953 = vcombine.low %v3897, %v3913
        %v3954 = vcombine.high %v3897, %v3913
        %v3956 = vunpack.c.l.s4 1934713408
        %v3957 = vunpack.c.0.s8 %v3956
        %v3958 = vlaneseq
        %v3959 = vshrl.u32 %v3958, 7
        %v3960 = vsub.s32 %v3957, %v3959
        %v3961 = vrot.slane %v3953, %v3960
        %v3963 = vunpack.c.l.s4 1934713408
        %v3964 = vunpack.c.0.s8 %v3963
        %v3965 = vlaneseq
        %v3966 = vshrl.u32 %v3965, 7
        %v3967 = vsub.s32 %v3964, %v3966
        %v3968 = vrot.slane %v3954, %v3967
        %v3969 = vcombine.low %v3904, %v3920
        %v3970 = vcombine.high %v3904, %v3920
        %v3972 = vunpack.c.l.s4 1934713408
        %v3973 = vunpack.c.0.s8 %v3972
        %v3974 = vlaneseq
        %v3975 = vshrl.u32 %v3974, 7
        %v3976 = vsub.s32 %v3973, %v3975
        %v3977 = vrot.slane %v3969, %v3976
        %v3979 = vunpack.c.l.s4 1934713408
        %v3980 = vunpack.c.0.s8 %v3979
        %v3981 = vlaneseq
        %v3982 = vshrl.u32 %v3981, 7
        %v3983 = vsub.s32 %v3980, %v3982
        %v3984 = vrot.slane %v3970, %v3983
        %v3985 = vcombine.low %v3929, %v3945
        %v3986 = vcombine.high %v3929, %v3945
        %v3988 = vunpack.c.l.s4 1934713408
        %v3989 = vunpack.c.0.s8 %v3988
        %v3990 = vlaneseq
        %v3991 = vshrl.u32 %v3990, 7
        %v3992 = vsub.s32 %v3989, %v3991
        %v3993 = vrot.slane %v3985, %v3992
        %v3995 = vunpack.c.l.s4 1934713408
        %v3996 = vunpack.c.0.s8 %v3995
        %v3997 = vlaneseq
        %v3998 = vshrl.u32 %v3997, 7
        %v3999 = vsub.s32 %v3996, %v3998
        %v4000 = vrot.slane %v3986, %v3999
        %v4001 = vcombine.low %v3936, %v3952
        %v4002 = vcombine.high %v3936, %v3952
        %v4004 = vunpack.c.l.s4 1934713408
        %v4005 = vunpack.c.0.s8 %v4004
        %v4006 = vlaneseq
        %v4007 = vshrl.u32 %v4006, 7
        %v4008 = vsub.s32 %v4005, %v4007
        %v4009 = vrot.slane %v4001, %v4008
        %v4011 = vunpack.c.l.s4 1934713408
        %v4012 = vunpack.c.0.s8 %v4011
        %v4013 = vlaneseq
        %v4014 = vshrl.u32 %v4013, 7
        %v4015 = vsub.s32 %v4012, %v4014
        %v4016 = vrot.slane %v4002, %v4015
        %v4017 = vcombine.low %v3961, %v3993
        %v4018 = vcombine.high %v3961, %v3993
        %v4019 = vcombine.low %v3968, %v4000
        %v4020 = vcombine.high %v3968, %v4000
        %v4021 = vcombine.low %v3977, %v4009
        %v4022 = vcombine.high %v3977, %v4009
        %v4023 = vcombine.low %v3984, %v4016
        %v4024 = vcombine.high %v3984, %v4016
        %v4025 = vcombine.low %v4017, %v4019
        %v4026 = vcombine.high %v4017, %v4019
        %v4028 = vunpack.c.l.s4 1983009808
        %v4029 = vunpack.c.0.s8 %v4028
        %v4030 = vlaneseq
        %v4031 = vshrl.u32 %v4030, 7
        %v4032 = vsub.s32 %v4029, %v4031
        %v4033 = vrot.slane %v4025, %v4032
        %v4035 = vunpack.c.l.s4 1983009808
        %v4036 = vunpack.c.0.s8 %v4035
        %v4037 = vlaneseq
        %v4038 = vshrl.u32 %v4037, 7
        %v4039 = vsub.s32 %v4036, %v4038
        %v4040 = vrot.slane %v4026, %v4039
        %v4041 = vcombine.low %v4018, %v4020
        %v4042 = vcombine.high %v4018, %v4020
        %v4044 = vunpack.c.l.s4 1983009808
        %v4045 = vunpack.c.0.s8 %v4044
        %v4046 = vlaneseq
        %v4047 = vshrl.u32 %v4046, 7
        %v4048 = vsub.s32 %v4045, %v4047
        %v4049 = vrot.slane %v4041, %v4048
        %v4051 = vunpack.c.l.s4 1983009808
        %v4052 = vunpack.c.0.s8 %v4051
        %v4053 = vlaneseq
        %v4054 = vshrl.u32 %v4053, 7
        %v4055 = vsub.s32 %v4052, %v4054
        %v4056 = vrot.slane %v4042, %v4055
        %v4057 = vcombine.low %v4021, %v4023
        %v4058 = vcombine.high %v4021, %v4023
        %v4060 = vunpack.c.l.s4 1983009808
        %v4061 = vunpack.c.0.s8 %v4060
        %v4062 = vlaneseq
        %v4063 = vshrl.u32 %v4062, 7
        %v4064 = vsub.s32 %v4061, %v4063
        %v4065 = vrot.slane %v4057, %v4064
        %v4067 = vunpack.c.l.s4 1983009808
        %v4068 = vunpack.c.0.s8 %v4067
        %v4069 = vlaneseq
        %v4070 = vshrl.u32 %v4069, 7
        %v4071 = vsub.s32 %v4068, %v4070
        %v4072 = vrot.slane %v4058, %v4071
        %v4073 = vcombine.low %v4022, %v4024
        %v4074 = vcombine.high %v4022, %v4024
        %v4076 = vunpack.c.l.s4 1983009808
        %v4077 = vunpack.c.0.s8 %v4076
        %v4078 = vlaneseq
        %v4079 = vshrl.u32 %v4078, 7
        %v4080 = vsub.s32 %v4077, %v4079
        %v4081 = vrot.slane %v4073, %v4080
        %v4083 = vunpack.c.l.s4 1983009808
        %v4084 = vunpack.c.0.s8 %v4083
        %v4085 = vlaneseq
        %v4086 = vshrl.u32 %v4085, 7
        %v4087 = vsub.s32 %v4084, %v4086
        %v4088 = vrot.slane %v4074, %v4087
        %v4089 = vcombine.low %v4033, %v4049
        %v4090 = vcombine.high %v4033, %v4049
        %v4092 = vunpack.c.l.s4 1934713408
        %v4093 = vunpack.c.0.s8 %v4092
        %v4094 = vlaneseq
        %v4095 = vshrl.u32 %v4094, 7
        %v4096 = vsub.s32 %v4093, %v4095
        %v4097 = vrot.slane %v4089, %v4096
        %v4099 = vunpack.c.l.s4 1934713408
        %v4100 = vunpack.c.0.s8 %v4099
        %v4101 = vlaneseq
        %v4102 = vshrl.u32 %v4101, 7
        %v4103 = vsub.s32 %v4100, %v4102
        %v4104 = vrot.slane %v4090, %v4103
        %v4105 = vcombine.low %v4040, %v4056
        %v4106 = vcombine.high %v4040, %v4056
        %v4108 = vunpack.c.l.s4 1934713408
        %v4109 = vunpack.c.0.s8 %v4108
        %v4110 = vlaneseq
        %v4111 = vshrl.u32 %v4110, 7
        %v4112 = vsub.s32 %v4109, %v4111
        %v4113 = vrot.slane %v4105, %v4112
        %v4115 = vunpack.c.l.s4 1934713408
        %v4116 = vunpack.c.0.s8 %v4115
        %v4117 = vlaneseq
        %v4118 = vshrl.u32 %v4117, 7
        %v4119 = vsub.s32 %v4116, %v4118
        %v4120 = vrot.slane %v4106, %v4119
        %v4121 = vcombine.low %v4065, %v4081
        %v4122 = vcombine.high %v4065, %v4081
        %v4124 = vunpack.c.l.s4 1934713408
        %v4125 = vunpack.c.0.s8 %v4124
        %v4126 = vlaneseq
        %v4127 = vshrl.u32 %v4126, 7
        %v4128 = vsub.s32 %v4125, %v4127
        %v4129 = vrot.slane %v4121, %v4128
        %v4131 = vunpack.c.l.s4 1934713408
        %v4132 = vunpack.c.0.s8 %v4131
        %v4133 = vlaneseq
        %v4134 = vshrl.u32 %v4133, 7
        %v4135 = vsub.s32 %v4132, %v4134
        %v4136 = vrot.slane %v4122, %v4135
        %v4137 = vcombine.low %v4072, %v4088
        %v4138 = vcombine.high %v4072, %v4088
        %v4140 = vunpack.c.l.s4 1934713408
        %v4141 = vunpack.c.0.s8 %v4140
        %v4142 = vlaneseq
        %v4143 = vshrl.u32 %v4142, 7
        %v4144 = vsub.s32 %v4141, %v4143
        %v4145 = vrot.slane %v4137, %v4144
        %v4147 = vunpack.c.l.s4 1934713408
        %v4148 = vunpack.c.0.s8 %v4147
        %v4149 = vlaneseq
        %v4150 = vshrl.u32 %v4149, 7
        %v4151 = vsub.s32 %v4148, %v4150
        %v4152 = vrot.slane %v4138, %v4151
        %v4153 = vcombine.low %v4097, %v4129
        %v4154 = vcombine.high %v4097, %v4129
        %v4155 = vcombine.low %v4104, %v4136
        %v4156 = vcombine.high %v4104, %v4136
        %v4157 = vcombine.low %v4113, %v4145
        %v4158 = vcombine.high %v4113, %v4145
        %v4159 = vcombine.low %v4120, %v4152
        %v4160 = vcombine.high %v4120, %v4152
        %v4161 = vpack.c.bf16 %v4153, %v4153
        %v4162 = vpack.c.bf16 %v4154, %v4154
        %v4163 = vpack.c.bf16 %v4155, %v4155
        %v4164 = vpack.c.bf16 %v4156, %v4156
        %v4165 = vpack.c.bf16 %v4157, %v4157
        %v4166 = vpack.c.bf16 %v4158, %v4158
        %v4167 = vpack.c.bf16 %v4159, %v4159
        %v4168 = vpack.c.bf16 %v4160, %v4160
        %vm4169 = vcmask 523264
        %v4171 = vsel %vm4169, %v3569, 0
        %v4174 = vsel %vm4169, %v3865, 0
        %4176 = vmatprep.subr.bf16.mxu0 0
        %4177 = vmatpush1.bf16.xpose.msra.mxu0 0
        %4178 = vmatprep.subr.bf16.mxu0 0
        %4179 = vmatpush1.bf16.xpose.msra.mxu0 0
        %4180 = vmatprep.subr.bf16.mxu0 0
        %4181 = vmatpush1.bf16.xpose.msra.mxu0 0
        %4182 = vmatprep.subr.bf16.mxu0 0
        %4183 = vmatpush1.bf16.xpose.msra.mxu0 0
        %4184 = vmatprep.subr.bf16.mxu0 0
        %4185 = vmatpush1.bf16.xpose.msra.mxu0 0
        %4186 = vmatprep.subr.bf16.mxu0 0
        %4187 = vmatpush1.bf16.xpose.msra.mxu0 0
        %4188 = vmatprep.subr.bf16.mxu0 0
        %4189 = vmatpush1.bf16.xpose.msra.mxu0 0
        %4190 = vmatprep.subr.bf16.mxu0 0
        %4191 = vmatpush1.bf16.xpose.msra.mxu0 %v4174
        %4192 = vmatprep.subr.bf16.mxu0 0
        %4193 = vmatpush2.bf16.xpose.msra.mxu0 0
        %4194 = vmatprep.subr.bf16.mxu0 0
        %4195 = vmatpush2.bf16.xpose.msra.mxu0 0
        %4196 = vmatprep.subr.bf16.mxu0 0
        %4197 = vmatpush2.bf16.xpose.msra.mxu0 0
        %4198 = vmatprep.subr.bf16.mxu0 0
        %4199 = vmatpush2.bf16.xpose.msra.mxu0 0
        %4200 = vmatprep.subr.bf16.mxu0 0
        %4201 = vmatpush2.bf16.xpose.msra.mxu0 0
        %4202 = vmatprep.subr.bf16.mxu0 0
        %4203 = vmatpush2.bf16.xpose.msra.mxu0 0
        %4204 = vmatprep.subr.bf16.mxu0 0
        %4205 = vmatpush2.bf16.xpose.msra.mxu0 0
        %4206 = vmatprep.subr.bf16.mxu0 0
        %4207 = vmatpush2.bf16.xpose.msra.mxu0 0
        %4208 = vmatprep.mubr.bf16.mxu0 0
        %4209 = vmatmul.mubr.bf16.gmra.mxu0 %v4171
        %v4210 = vpop.f32.mrf.mxu0
        %v4211 = vadd.f32 0.0, %v4210
        %v4212 = vpop.f32.mrf.mxu0
        %v4213 = vpop.f32.mrf.mxu0
        %v4214 = vpop.f32.mrf.mxu0
        %4215 = vdwg.mxu0
        %v4217 = vsel %vm4169, %v3570, 0
        %v4220 = vsel %vm4169, %v3866, 0
        %4222 = vmatprep.subr.bf16.mxu0 0
        %4223 = vmatpush1.bf16.xpose.msra.mxu0 0
        %4224 = vmatprep.subr.bf16.mxu0 0
        %4225 = vmatpush1.bf16.xpose.msra.mxu0 0
        %4226 = vmatprep.subr.bf16.mxu0 0
        %4227 = vmatpush1.bf16.xpose.msra.mxu0 0
        %4228 = vmatprep.subr.bf16.mxu0 0
        %4229 = vmatpush1.bf16.xpose.msra.mxu0 0
        %4230 = vmatprep.subr.bf16.mxu0 0
        %4231 = vmatpush1.bf16.xpose.msra.mxu0 0
        %4232 = vmatprep.subr.bf16.mxu0 0
        %4233 = vmatpush1.bf16.xpose.msra.mxu0 0
        %4234 = vmatprep.subr.bf16.mxu0 0
        %4235 = vmatpush1.bf16.xpose.msra.mxu0 0
        %4236 = vmatprep.subr.bf16.mxu0 0
        %4237 = vmatpush1.bf16.xpose.msra.mxu0 %v4220
        %4238 = vmatprep.subr.bf16.mxu0 0
        %4239 = vmatpush2.bf16.xpose.msra.mxu0 0
        %4240 = vmatprep.subr.bf16.mxu0 0
        %4241 = vmatpush2.bf16.xpose.msra.mxu0 0
        %4242 = vmatprep.subr.bf16.mxu0 0
        %4243 = vmatpush2.bf16.xpose.msra.mxu0 0
        %4244 = vmatprep.subr.bf16.mxu0 0
        %4245 = vmatpush2.bf16.xpose.msra.mxu0 0
        %4246 = vmatprep.subr.bf16.mxu0 0
        %4247 = vmatpush2.bf16.xpose.msra.mxu0 0
        %4248 = vmatprep.subr.bf16.mxu0 0
        %4249 = vmatpush2.bf16.xpose.msra.mxu0 0
        %4250 = vmatprep.subr.bf16.mxu0 0
        %4251 = vmatpush2.bf16.xpose.msra.mxu0 0
        %4252 = vmatprep.subr.bf16.mxu0 0
        %4253 = vmatpush2.bf16.xpose.msra.mxu0 0
        %4254 = vmatprep.mubr.bf16.mxu0 0
        %4255 = vmatmul.mubr.bf16.gmra.mxu0 %v4217
        %v4256 = vpop.f32.mrf.mxu0
        %v4257 = vadd.f32 0.0, %v4256
        %v4258 = vpop.f32.mrf.mxu0
        %v4259 = vpop.f32.mrf.mxu0
        %v4260 = vpop.f32.mrf.mxu0
        %4261 = vdwg.mxu0
        %v4263 = vsel %vm4169, %v3571, 0
        %v4266 = vsel %vm4169, %v3867, 0
        %4268 = vmatprep.subr.bf16.mxu0 0
        %4269 = vmatpush1.bf16.xpose.msra.mxu0 0
        %4270 = vmatprep.subr.bf16.mxu0 0
        %4271 = vmatpush1.bf16.xpose.msra.mxu0 0
        %4272 = vmatprep.subr.bf16.mxu0 0
        %4273 = vmatpush1.bf16.xpose.msra.mxu0 0
        %4274 = vmatprep.subr.bf16.mxu0 0
        %4275 = vmatpush1.bf16.xpose.msra.mxu0 0
        %4276 = vmatprep.subr.bf16.mxu0 0
        %4277 = vmatpush1.bf16.xpose.msra.mxu0 0
        %4278 = vmatprep.subr.bf16.mxu0 0
        %4279 = vmatpush1.bf16.xpose.msra.mxu0 0
        %4280 = vmatprep.subr.bf16.mxu0 0
        %4281 = vmatpush1.bf16.xpose.msra.mxu0 0
        %4282 = vmatprep.subr.bf16.mxu0 0
        %4283 = vmatpush1.bf16.xpose.msra.mxu0 %v4266
        %4284 = vmatprep.subr.bf16.mxu0 0
        %4285 = vmatpush2.bf16.xpose.msra.mxu0 0
        %4286 = vmatprep.subr.bf16.mxu0 0
        %4287 = vmatpush2.bf16.xpose.msra.mxu0 0
        %4288 = vmatprep.subr.bf16.mxu0 0
        %4289 = vmatpush2.bf16.xpose.msra.mxu0 0
        %4290 = vmatprep.subr.bf16.mxu0 0
        %4291 = vmatpush2.bf16.xpose.msra.mxu0 0
        %4292 = vmatprep.subr.bf16.mxu0 0
        %4293 = vmatpush2.bf16.xpose.msra.mxu0 0
        %4294 = vmatprep.subr.bf16.mxu0 0
        %4295 = vmatpush2.bf16.xpose.msra.mxu0 0
        %4296 = vmatprep.subr.bf16.mxu0 0
        %4297 = vmatpush2.bf16.xpose.msra.mxu0 0
        %4298 = vmatprep.subr.bf16.mxu0 0
        %4299 = vmatpush2.bf16.xpose.msra.mxu0 0
        %4300 = vmatprep.mubr.bf16.mxu0 0
        %4301 = vmatmul.mubr.bf16.gmra.mxu0 %v4263
        %v4302 = vpop.f32.mrf.mxu0
        %v4303 = vadd.f32 0.0, %v4302
        %v4304 = vpop.f32.mrf.mxu0
        %v4305 = vpop.f32.mrf.mxu0
        %v4306 = vpop.f32.mrf.mxu0
        %4307 = vdwg.mxu0
        %v4309 = vsel %vm4169, %v3572, 0
        %v4312 = vsel %vm4169, %v3868, 0
        %4314 = vmatprep.subr.bf16.mxu0 0
        %4315 = vmatpush1.bf16.xpose.msra.mxu0 0
        %4316 = vmatprep.subr.bf16.mxu0 0
        %4317 = vmatpush1.bf16.xpose.msra.mxu0 0
        %4318 = vmatprep.subr.bf16.mxu0 0
        %4319 = vmatpush1.bf16.xpose.msra.mxu0 0
        %4320 = vmatprep.subr.bf16.mxu0 0
        %4321 = vmatpush1.bf16.xpose.msra.mxu0 0
        %4322 = vmatprep.subr.bf16.mxu0 0
        %4323 = vmatpush1.bf16.xpose.msra.mxu0 0
        %4324 = vmatprep.subr.bf16.mxu0 0
        %4325 = vmatpush1.bf16.xpose.msra.mxu0 0
        %4326 = vmatprep.subr.bf16.mxu0 0
        %4327 = vmatpush1.bf16.xpose.msra.mxu0 0
        %4328 = vmatprep.subr.bf16.mxu0 0
        %4329 = vmatpush1.bf16.xpose.msra.mxu0 %v4312
        %4330 = vmatprep.subr.bf16.mxu0 0
        %4331 = vmatpush2.bf16.xpose.msra.mxu0 0
        %4332 = vmatprep.subr.bf16.mxu0 0
        %4333 = vmatpush2.bf16.xpose.msra.mxu0 0
        %4334 = vmatprep.subr.bf16.mxu0 0
        %4335 = vmatpush2.bf16.xpose.msra.mxu0 0
        %4336 = vmatprep.subr.bf16.mxu0 0
        %4337 = vmatpush2.bf16.xpose.msra.mxu0 0
        %4338 = vmatprep.subr.bf16.mxu0 0
        %4339 = vmatpush2.bf16.xpose.msra.mxu0 0
        %4340 = vmatprep.subr.bf16.mxu0 0
        %4341 = vmatpush2.bf16.xpose.msra.mxu0 0
        %4342 = vmatprep.subr.bf16.mxu0 0
        %4343 = vmatpush2.bf16.xpose.msra.mxu0 0
        %4344 = vmatprep.subr.bf16.mxu0 0
        %4345 = vmatpush2.bf16.xpose.msra.mxu0 0
        %4346 = vmatprep.mubr.bf16.mxu0 0
        %4347 = vmatmul.mubr.bf16.gmra.mxu0 %v4309
        %v4348 = vpop.f32.mrf.mxu0
        %v4349 = vadd.f32 0.0, %v4348
        %v4350 = vpop.f32.mrf.mxu0
        %v4351 = vpop.f32.mrf.mxu0
        %v4352 = vpop.f32.mrf.mxu0
        %4353 = vdwg.mxu0
        %v4355 = vsel %vm4169, %v3573, 0
        %v4358 = vsel %vm4169, %v3869, 0
        %4360 = vmatprep.subr.bf16.mxu0 0
        %4361 = vmatpush1.bf16.xpose.msra.mxu0 0
        %4362 = vmatprep.subr.bf16.mxu0 0
        %4363 = vmatpush1.bf16.xpose.msra.mxu0 0
        %4364 = vmatprep.subr.bf16.mxu0 0
        %4365 = vmatpush1.bf16.xpose.msra.mxu0 0
        %4366 = vmatprep.subr.bf16.mxu0 0
        %4367 = vmatpush1.bf16.xpose.msra.mxu0 0
        %4368 = vmatprep.subr.bf16.mxu0 0
        %4369 = vmatpush1.bf16.xpose.msra.mxu0 0
        %4370 = vmatprep.subr.bf16.mxu0 0
        %4371 = vmatpush1.bf16.xpose.msra.mxu0 0
        %4372 = vmatprep.subr.bf16.mxu0 0
        %4373 = vmatpush1.bf16.xpose.msra.mxu0 0
        %4374 = vmatprep.subr.bf16.mxu0 0
        %4375 = vmatpush1.bf16.xpose.msra.mxu0 %v4358
        %4376 = vmatprep.subr.bf16.mxu0 0
        %4377 = vmatpush2.bf16.xpose.msra.mxu0 0
        %4378 = vmatprep.subr.bf16.mxu0 0
        %4379 = vmatpush2.bf16.xpose.msra.mxu0 0
        %4380 = vmatprep.subr.bf16.mxu0 0
        %4381 = vmatpush2.bf16.xpose.msra.mxu0 0
        %4382 = vmatprep.subr.bf16.mxu0 0
        %4383 = vmatpush2.bf16.xpose.msra.mxu0 0
        %4384 = vmatprep.subr.bf16.mxu0 0
        %4385 = vmatpush2.bf16.xpose.msra.mxu0 0
        %4386 = vmatprep.subr.bf16.mxu0 0
        %4387 = vmatpush2.bf16.xpose.msra.mxu0 0
        %4388 = vmatprep.subr.bf16.mxu0 0
        %4389 = vmatpush2.bf16.xpose.msra.mxu0 0
        %4390 = vmatprep.subr.bf16.mxu0 0
        %4391 = vmatpush2.bf16.xpose.msra.mxu0 0
        %4392 = vmatprep.mubr.bf16.mxu0 0
        %4393 = vmatmul.mubr.bf16.gmra.mxu0 %v4355
        %v4394 = vpop.f32.mrf.mxu0
        %v4395 = vadd.f32 0.0, %v4394
        %v4396 = vpop.f32.mrf.mxu0
        %v4397 = vpop.f32.mrf.mxu0
        %v4398 = vpop.f32.mrf.mxu0
        %4399 = vdwg.mxu0
        %v4401 = vsel %vm4169, %v3574, 0
        %v4404 = vsel %vm4169, %v3870, 0
        %4406 = vmatprep.subr.bf16.mxu0 0
        %4407 = vmatpush1.bf16.xpose.msra.mxu0 0
        %4408 = vmatprep.subr.bf16.mxu0 0
        %4409 = vmatpush1.bf16.xpose.msra.mxu0 0
        %4410 = vmatprep.subr.bf16.mxu0 0
        %4411 = vmatpush1.bf16.xpose.msra.mxu0 0
        %4412 = vmatprep.subr.bf16.mxu0 0
        %4413 = vmatpush1.bf16.xpose.msra.mxu0 0
        %4414 = vmatprep.subr.bf16.mxu0 0
        %4415 = vmatpush1.bf16.xpose.msra.mxu0 0
        %4416 = vmatprep.subr.bf16.mxu0 0
        %4417 = vmatpush1.bf16.xpose.msra.mxu0 0
        %4418 = vmatprep.subr.bf16.mxu0 0
        %4419 = vmatpush1.bf16.xpose.msra.mxu0 0
        %4420 = vmatprep.subr.bf16.mxu0 0
        %4421 = vmatpush1.bf16.xpose.msra.mxu0 %v4404
        %4422 = vmatprep.subr.bf16.mxu0 0
        %4423 = vmatpush2.bf16.xpose.msra.mxu0 0
        %4424 = vmatprep.subr.bf16.mxu0 0
        %4425 = vmatpush2.bf16.xpose.msra.mxu0 0
        %4426 = vmatprep.subr.bf16.mxu0 0
        %4427 = vmatpush2.bf16.xpose.msra.mxu0 0
        %4428 = vmatprep.subr.bf16.mxu0 0
        %4429 = vmatpush2.bf16.xpose.msra.mxu0 0
        %4430 = vmatprep.subr.bf16.mxu0 0
        %4431 = vmatpush2.bf16.xpose.msra.mxu0 0
        %4432 = vmatprep.subr.bf16.mxu0 0
        %4433 = vmatpush2.bf16.xpose.msra.mxu0 0
        %4434 = vmatprep.subr.bf16.mxu0 0
        %4435 = vmatpush2.bf16.xpose.msra.mxu0 0
        %4436 = vmatprep.subr.bf16.mxu0 0
        %4437 = vmatpush2.bf16.xpose.msra.mxu0 0
        %4438 = vmatprep.mubr.bf16.mxu0 0
        %4439 = vmatmul.mubr.bf16.gmra.mxu0 %v4401
        %v4440 = vpop.f32.mrf.mxu0
        %v4441 = vadd.f32 0.0, %v4440
        %v4442 = vpop.f32.mrf.mxu0
        %v4443 = vpop.f32.mrf.mxu0
        %v4444 = vpop.f32.mrf.mxu0
        %4445 = vdwg.mxu0
        %v4447 = vsel %vm4169, %v3575, 0
        %v4450 = vsel %vm4169, %v3871, 0
        %4452 = vmatprep.subr.bf16.mxu0 0
        %4453 = vmatpush1.bf16.xpose.msra.mxu0 0
        %4454 = vmatprep.subr.bf16.mxu0 0
        %4455 = vmatpush1.bf16.xpose.msra.mxu0 0
        %4456 = vmatprep.subr.bf16.mxu0 0
        %4457 = vmatpush1.bf16.xpose.msra.mxu0 0
        %4458 = vmatprep.subr.bf16.mxu0 0
        %4459 = vmatpush1.bf16.xpose.msra.mxu0 0
        %4460 = vmatprep.subr.bf16.mxu0 0
        %4461 = vmatpush1.bf16.xpose.msra.mxu0 0
        %4462 = vmatprep.subr.bf16.mxu0 0
        %4463 = vmatpush1.bf16.xpose.msra.mxu0 0
        %4464 = vmatprep.subr.bf16.mxu0 0
        %4465 = vmatpush1.bf16.xpose.msra.mxu0 0
        %4466 = vmatprep.subr.bf16.mxu0 0
        %4467 = vmatpush1.bf16.xpose.msra.mxu0 %v4450
        %4468 = vmatprep.subr.bf16.mxu0 0
        %4469 = vmatpush2.bf16.xpose.msra.mxu0 0
        %4470 = vmatprep.subr.bf16.mxu0 0
        %4471 = vmatpush2.bf16.xpose.msra.mxu0 0
        %4472 = vmatprep.subr.bf16.mxu0 0
        %4473 = vmatpush2.bf16.xpose.msra.mxu0 0
        %4474 = vmatprep.subr.bf16.mxu0 0
        %4475 = vmatpush2.bf16.xpose.msra.mxu0 0
        %4476 = vmatprep.subr.bf16.mxu0 0
        %4477 = vmatpush2.bf16.xpose.msra.mxu0 0
        %4478 = vmatprep.subr.bf16.mxu0 0
        %4479 = vmatpush2.bf16.xpose.msra.mxu0 0
        %4480 = vmatprep.subr.bf16.mxu0 0
        %4481 = vmatpush2.bf16.xpose.msra.mxu0 0
        %4482 = vmatprep.subr.bf16.mxu0 0
        %4483 = vmatpush2.bf16.xpose.msra.mxu0 0
        %4484 = vmatprep.mubr.bf16.mxu0 0
        %4485 = vmatmul.mubr.bf16.gmra.mxu0 %v4447
        %v4486 = vpop.f32.mrf.mxu0
        %v4487 = vadd.f32 0.0, %v4486
        %v4488 = vpop.f32.mrf.mxu0
        %v4489 = vpop.f32.mrf.mxu0
        %v4490 = vpop.f32.mrf.mxu0
        %4491 = vdwg.mxu0
        %v4493 = vsel %vm4169, %v3576, 0
        %v4496 = vsel %vm4169, %v3872, 0
        %4498 = vmatprep.subr.bf16.mxu0 0
        %4499 = vmatpush1.bf16.xpose.msra.mxu0 0
        %4500 = vmatprep.subr.bf16.mxu0 0
        %4501 = vmatpush1.bf16.xpose.msra.mxu0 0
        %4502 = vmatprep.subr.bf16.mxu0 0
        %4503 = vmatpush1.bf16.xpose.msra.mxu0 0
        %4504 = vmatprep.subr.bf16.mxu0 0
        %4505 = vmatpush1.bf16.xpose.msra.mxu0 0
        %4506 = vmatprep.subr.bf16.mxu0 0
        %4507 = vmatpush1.bf16.xpose.msra.mxu0 0
        %4508 = vmatprep.subr.bf16.mxu0 0
        %4509 = vmatpush1.bf16.xpose.msra.mxu0 0
        %4510 = vmatprep.subr.bf16.mxu0 0
        %4511 = vmatpush1.bf16.xpose.msra.mxu0 0
        %4512 = vmatprep.subr.bf16.mxu0 0
        %4513 = vmatpush1.bf16.xpose.msra.mxu0 %v4496
        %4514 = vmatprep.subr.bf16.mxu0 0
        %4515 = vmatpush2.bf16.xpose.msra.mxu0 0
        %4516 = vmatprep.subr.bf16.mxu0 0
        %4517 = vmatpush2.bf16.xpose.msra.mxu0 0
        %4518 = vmatprep.subr.bf16.mxu0 0
        %4519 = vmatpush2.bf16.xpose.msra.mxu0 0
        %4520 = vmatprep.subr.bf16.mxu0 0
        %4521 = vmatpush2.bf16.xpose.msra.mxu0 0
        %4522 = vmatprep.subr.bf16.mxu0 0
        %4523 = vmatpush2.bf16.xpose.msra.mxu0 0
        %4524 = vmatprep.subr.bf16.mxu0 0
        %4525 = vmatpush2.bf16.xpose.msra.mxu0 0
        %4526 = vmatprep.subr.bf16.mxu0 0
        %4527 = vmatpush2.bf16.xpose.msra.mxu0 0
        %4528 = vmatprep.subr.bf16.mxu0 0
        %4529 = vmatpush2.bf16.xpose.msra.mxu0 0
        %4530 = vmatprep.mubr.bf16.mxu0 0
        %4531 = vmatmul.mubr.bf16.gmra.mxu0 %v4493
        %v4532 = vpop.f32.mrf.mxu0
        %v4533 = vadd.f32 0.0, %v4532
        %v4534 = vpop.f32.mrf.mxu0
        %v4535 = vpop.f32.mrf.mxu0
        %v4536 = vpop.f32.mrf.mxu0
        %4537 = vdwg.mxu0
        %v4538 = vld [vmem:[%s455] sm:$0x3]
        %vm4539 = vnez %v4538
        %v4540 = vsel %vm4539, 16843009, 0
        %v4541 = vunpack.c.0.s8 %v4540
        %vm4542 = vcmp.ne.s32.totalorder %v4541, 0
        %v4543 = vsel %vm4542, 1, 0
        %vm4544 = vcmp.eq.s32.totalorder %v4543, 1
        %v4545 = vsel %vm4544, -1e+09, %v4211
        %v4546 = vsel %vm4544, -1e+09, %v4257
        %v4547 = vsel %vm4544, -1e+09, %v4303
        %v4548 = vsel %vm4544, -1e+09, %v4349
        %v4549 = vsel %vm4544, -1e+09, %v4395
        %v4550 = vsel %vm4544, -1e+09, %v4441
        %v4551 = vsel %vm4544, -1e+09, %v4487
        %v4552 = vsel %vm4544, -1e+09, %v4533
        %vm4553 = vcmask 64512
        %v4554 = vsel %vm4553, %v4545, -inf
        %4555 = vmax.xlane.f32.xlu0 %v4554
        %v4556 = vpop.xlane.xlu0 %4555
        %v4557 = vsel %vm4553, %v4546, -inf
        %4558 = vmax.xlane.f32.xlu0 %v4557
        %v4559 = vpop.xlane.xlu0 %4558
        %v4560 = vsel %vm4553, %v4547, -inf
        %4561 = vmax.xlane.f32.xlu0 %v4560
        %v4562 = vpop.xlane.xlu0 %4561
        %v4563 = vsel %vm4553, %v4548, -inf
        %4564 = vmax.xlane.f32.xlu0 %v4563
        %v4565 = vpop.xlane.xlu0 %4564
        %v4566 = vsel %vm4553, %v4549, -inf
        %4567 = vmax.xlane.f32.xlu0 %v4566
        %v4568 = vpop.xlane.xlu0 %4567
        %v4569 = vsel %vm4553, %v4550, -inf
        %4570 = vmax.xlane.f32.xlu0 %v4569
        %v4571 = vpop.xlane.xlu0 %4570
        %v4572 = vsel %vm4553, %v4551, -inf
        %4573 = vmax.xlane.f32.xlu0 %v4572
        %v4574 = vpop.xlane.xlu0 %4573
        %v4575 = vsel %vm4553, %v4552, -inf
        %4576 = vmax.xlane.f32.xlu0 %v4575
        %v4577 = vpop.xlane.xlu0 %4576
        %v4578 = vsub.f32 %v4545, %v4556
        %v4579 = vsub.f32 %v4546, %v4559
        %v4580 = vsub.f32 %v4547, %v4562
        %v4581 = vsub.f32 %v4548, %v4565
        %v4582 = vsub.f32 %v4549, %v4568
        %v4583 = vsub.f32 %v4550, %v4571
        %v4584 = vsub.f32 %v4551, %v4574
        %v4585 = vsub.f32 %v4552, %v4577
        %v4586 = vmul.f32 %v4578, 1.442695
        %v4587 = vpow.pop %v4586
        %v4588 = vmul.f32 %v4579, 1.442695
        %v4589 = vpow.pop %v4588
        %v4590 = vmul.f32 %v4580, 1.442695
        %v4591 = vpow.pop %v4590
        %v4592 = vmul.f32 %v4581, 1.442695
        %v4593 = vpow.pop %v4592
        %v4594 = vmul.f32 %v4582, 1.442695
        %v4595 = vpow.pop %v4594
        %v4596 = vmul.f32 %v4583, 1.442695
        %v4597 = vpow.pop %v4596
        %v4598 = vmul.f32 %v4584, 1.442695
        %v4599 = vpow.pop %v4598
        %v4600 = vmul.f32 %v4585, 1.442695
        %v4601 = vpow.pop %v4600
        %v4602 = vsel %vm4553, %v4587, 0.0
        %4603 = vadd.xlane.f32.xlu0 %v4602
        %v4604 = vpop.xlane.xlu0 %4603
        %v4605 = vsel %vm4553, %v4589, 0.0
        %4606 = vadd.xlane.f32.xlu0 %v4605
        %v4607 = vpop.xlane.xlu0 %4606
        %v4608 = vsel %vm4553, %v4591, 0.0
        %4609 = vadd.xlane.f32.xlu0 %v4608
        %v4610 = vpop.xlane.xlu0 %4609
        %v4611 = vsel %vm4553, %v4593, 0.0
        %4612 = vadd.xlane.f32.xlu0 %v4611
        %v4613 = vpop.xlane.xlu0 %4612
        %v4614 = vsel %vm4553, %v4595, 0.0
        %4615 = vadd.xlane.f32.xlu0 %v4614
        %v4616 = vpop.xlane.xlu0 %4615
        %v4617 = vsel %vm4553, %v4597, 0.0
        %4618 = vadd.xlane.f32.xlu0 %v4617
        %v4619 = vpop.xlane.xlu0 %4618
        %v4620 = vsel %vm4553, %v4599, 0.0
        %4621 = vadd.xlane.f32.xlu0 %v4620
        %v4622 = vpop.xlane.xlu0 %4621
        %v4623 = vsel %vm4553, %v4601, 0.0
        %4624 = vadd.xlane.f32.xlu0 %v4623
        %v4625 = vpop.xlane.xlu0 %4624
        %v4626 = vrcp.pop %v4604
        %v4627 = vmul.f32 %v4587, %v4626
        %v4628 = vrcp.pop %v4607
        %v4629 = vmul.f32 %v4589, %v4628
        %v4630 = vrcp.pop %v4610
        %v4631 = vmul.f32 %v4591, %v4630
        %v4632 = vrcp.pop %v4613
        %v4633 = vmul.f32 %v4593, %v4632
        %v4634 = vrcp.pop %v4616
        %v4635 = vmul.f32 %v4595, %v4634
        %v4636 = vrcp.pop %v4619
        %v4637 = vmul.f32 %v4597, %v4636
        %v4638 = vrcp.pop %v4622
        %v4639 = vmul.f32 %v4599, %v4638
        %v4640 = vrcp.pop %v4625
        %v4641 = vmul.f32 %v4601, %v4640
        %4642 = vst.msk [vmem:[%s448] sm:$0xff] %vm4553, %v4627
        %4643 = vst.msk [vmem:[%s448 + $0x8] sm:$0xff] %vm4553, %v4629
        %4644 = vst.msk [vmem:[%s448 + $0x10] sm:$0xff] %vm4553, %v4631
        %4645 = vst.msk [vmem:[%s448 + $0x18] sm:$0xff] %vm4553, %v4633
        %4646 = vst.msk [vmem:[%s448 + $0x20] sm:$0xff] %vm4553, %v4635
        %4647 = vst.msk [vmem:[%s448 + $0x28] sm:$0xff] %vm4553, %v4637
        %4648 = vst.msk [vmem:[%s448 + $0x30] sm:$0xff] %vm4553, %v4639
        %4649 = vst.msk [vmem:[%s448 + $0x38] sm:$0xff] %vm4553, %v4641
        %v4650 = vpack.c.bf16 %v4627, %v4627
        %v4651 = vpack.c.bf16 %v4629, %v4629
        %v4652 = vpack.c.bf16 %v4631, %v4631
        %v4653 = vpack.c.bf16 %v4633, %v4633
        %v4654 = vpack.c.bf16 %v4635, %v4635
        %v4655 = vpack.c.bf16 %v4637, %v4637
        %v4656 = vpack.c.bf16 %v4639, %v4639
        %v4657 = vpack.c.bf16 %v4641, %v4641
        %v4659 = vsel %vm4553, %v4650, 0
        %vm4661 = vcmask 1043456
        %v4663 = vsel %vm4661, %v4161, 0
        %4665 = vmatprep.subr.bf16.mxu0 0
        %4666 = vmatpush1.bf16.msra.mxu0 0
        %4667 = vmatprep.subr.bf16.mxu0 0
        %4668 = vmatpush1.bf16.msra.mxu0 0
        %4669 = vmatprep.subr.bf16.mxu0 0
        %4670 = vmatpush1.bf16.msra.mxu0 0
        %4671 = vmatprep.subr.bf16.mxu0 0
        %4672 = vmatpush1.bf16.msra.mxu0 0
        %4673 = vmatprep.subr.bf16.mxu0 0
        %4674 = vmatpush1.bf16.msra.mxu0 0
        %4675 = vmatprep.subr.bf16.mxu0 0
        %4676 = vmatpush1.bf16.msra.mxu0 0
        %4677 = vmatprep.subr.bf16.mxu0 0
        %4678 = vmatpush1.bf16.msra.mxu0 0
        %4679 = vmatprep.subr.bf16.mxu0 0
        %4680 = vmatpush1.bf16.msra.mxu0 %v4663
        %4681 = vmatprep.subr.bf16.mxu0 0
        %4682 = vmatpush2.bf16.msra.mxu0 0
        %4683 = vmatprep.subr.bf16.mxu0 0
        %4684 = vmatpush2.bf16.msra.mxu0 0
        %4685 = vmatprep.subr.bf16.mxu0 0
        %4686 = vmatpush2.bf16.msra.mxu0 0
        %4687 = vmatprep.subr.bf16.mxu0 0
        %4688 = vmatpush2.bf16.msra.mxu0 0
        %4689 = vmatprep.subr.bf16.mxu0 0
        %4690 = vmatpush2.bf16.msra.mxu0 0
        %4691 = vmatprep.subr.bf16.mxu0 0
        %4692 = vmatpush2.bf16.msra.mxu0 0
        %4693 = vmatprep.subr.bf16.mxu0 0
        %4694 = vmatpush2.bf16.msra.mxu0 0
        %4695 = vmatprep.subr.bf16.mxu0 0
        %4696 = vmatpush2.bf16.msra.mxu0 0
        %4697 = vmatprep.mubr.bf16.mxu0 0
        %4698 = vmatmul.mubr.bf16.gmra.mxu0 %v4659
        %v4699 = vpop.f32.mrf.mxu0
        %v4700 = vadd.f32 0.0, %v4699
        %v4701 = vpop.f32.mrf.mxu0
        %v4702 = vpop.f32.mrf.mxu0
        %v4703 = vpop.f32.mrf.mxu0
        %4704 = vdwg.mxu0
        %v4706 = vsel %vm4553, %v4651, 0
        %v4709 = vsel %vm4661, %v4162, 0
        %4711 = vmatprep.subr.bf16.mxu0 0
        %4712 = vmatpush1.bf16.msra.mxu0 0
        %4713 = vmatprep.subr.bf16.mxu0 0
        %4714 = vmatpush1.bf16.msra.mxu0 0
        %4715 = vmatprep.subr.bf16.mxu0 0
        %4716 = vmatpush1.bf16.msra.mxu0 0
        %4717 = vmatprep.subr.bf16.mxu0 0
        %4718 = vmatpush1.bf16.msra.mxu0 0
        %4719 = vmatprep.subr.bf16.mxu0 0
        %4720 = vmatpush1.bf16.msra.mxu0 0
        %4721 = vmatprep.subr.bf16.mxu0 0
        %4722 = vmatpush1.bf16.msra.mxu0 0
        %4723 = vmatprep.subr.bf16.mxu0 0
        %4724 = vmatpush1.bf16.msra.mxu0 0
        %4725 = vmatprep.subr.bf16.mxu0 0
        %4726 = vmatpush1.bf16.msra.mxu0 %v4709
        %4727 = vmatprep.subr.bf16.mxu0 0
        %4728 = vmatpush2.bf16.msra.mxu0 0
        %4729 = vmatprep.subr.bf16.mxu0 0
        %4730 = vmatpush2.bf16.msra.mxu0 0
        %4731 = vmatprep.subr.bf16.mxu0 0
        %4732 = vmatpush2.bf16.msra.mxu0 0
        %4733 = vmatprep.subr.bf16.mxu0 0
        %4734 = vmatpush2.bf16.msra.mxu0 0
        %4735 = vmatprep.subr.bf16.mxu0 0
        %4736 = vmatpush2.bf16.msra.mxu0 0
        %4737 = vmatprep.subr.bf16.mxu0 0
        %4738 = vmatpush2.bf16.msra.mxu0 0
        %4739 = vmatprep.subr.bf16.mxu0 0
        %4740 = vmatpush2.bf16.msra.mxu0 0
        %4741 = vmatprep.subr.bf16.mxu0 0
        %4742 = vmatpush2.bf16.msra.mxu0 0
        %4743 = vmatprep.mubr.bf16.mxu0 0
        %4744 = vmatmul.mubr.bf16.gmra.mxu0 %v4706
        %v4745 = vpop.f32.mrf.mxu0
        %v4746 = vadd.f32 0.0, %v4745
        %v4747 = vpop.f32.mrf.mxu0
        %v4748 = vpop.f32.mrf.mxu0
        %v4749 = vpop.f32.mrf.mxu0
        %4750 = vdwg.mxu0
        %v4752 = vsel %vm4553, %v4652, 0
        %v4755 = vsel %vm4661, %v4163, 0
        %4757 = vmatprep.subr.bf16.mxu0 0
        %4758 = vmatpush1.bf16.msra.mxu0 0
        %4759 = vmatprep.subr.bf16.mxu0 0
        %4760 = vmatpush1.bf16.msra.mxu0 0
        %4761 = vmatprep.subr.bf16.mxu0 0
        %4762 = vmatpush1.bf16.msra.mxu0 0
        %4763 = vmatprep.subr.bf16.mxu0 0
        %4764 = vmatpush1.bf16.msra.mxu0 0
        %4765 = vmatprep.subr.bf16.mxu0 0
        %4766 = vmatpush1.bf16.msra.mxu0 0
        %4767 = vmatprep.subr.bf16.mxu0 0
        %4768 = vmatpush1.bf16.msra.mxu0 0
        %4769 = vmatprep.subr.bf16.mxu0 0
        %4770 = vmatpush1.bf16.msra.mxu0 0
        %4771 = vmatprep.subr.bf16.mxu0 0
        %4772 = vmatpush1.bf16.msra.mxu0 %v4755
        %4773 = vmatprep.subr.bf16.mxu0 0
        %4774 = vmatpush2.bf16.msra.mxu0 0
        %4775 = vmatprep.subr.bf16.mxu0 0
        %4776 = vmatpush2.bf16.msra.mxu0 0
        %4777 = vmatprep.subr.bf16.mxu0 0
        %4778 = vmatpush2.bf16.msra.mxu0 0
        %4779 = vmatprep.subr.bf16.mxu0 0
        %4780 = vmatpush2.bf16.msra.mxu0 0
        %4781 = vmatprep.subr.bf16.mxu0 0
        %4782 = vmatpush2.bf16.msra.mxu0 0
        %4783 = vmatprep.subr.bf16.mxu0 0
        %4784 = vmatpush2.bf16.msra.mxu0 0
        %4785 = vmatprep.subr.bf16.mxu0 0
        %4786 = vmatpush2.bf16.msra.mxu0 0
        %4787 = vmatprep.subr.bf16.mxu0 0
        %4788 = vmatpush2.bf16.msra.mxu0 0
        %4789 = vmatprep.mubr.bf16.mxu0 0
        %4790 = vmatmul.mubr.bf16.gmra.mxu0 %v4752
        %v4791 = vpop.f32.mrf.mxu0
        %v4792 = vadd.f32 0.0, %v4791
        %v4793 = vpop.f32.mrf.mxu0
        %v4794 = vpop.f32.mrf.mxu0
        %v4795 = vpop.f32.mrf.mxu0
        %4796 = vdwg.mxu0
        %v4798 = vsel %vm4553, %v4653, 0
        %v4801 = vsel %vm4661, %v4164, 0
        %4803 = vmatprep.subr.bf16.mxu0 0
        %4804 = vmatpush1.bf16.msra.mxu0 0
        %4805 = vmatprep.subr.bf16.mxu0 0
        %4806 = vmatpush1.bf16.msra.mxu0 0
        %4807 = vmatprep.subr.bf16.mxu0 0
        %4808 = vmatpush1.bf16.msra.mxu0 0
        %4809 = vmatprep.subr.bf16.mxu0 0
        %4810 = vmatpush1.bf16.msra.mxu0 0
        %4811 = vmatprep.subr.bf16.mxu0 0
        %4812 = vmatpush1.bf16.msra.mxu0 0
        %4813 = vmatprep.subr.bf16.mxu0 0
        %4814 = vmatpush1.bf16.msra.mxu0 0
        %4815 = vmatprep.subr.bf16.mxu0 0
        %4816 = vmatpush1.bf16.msra.mxu0 0
        %4817 = vmatprep.subr.bf16.mxu0 0
        %4818 = vmatpush1.bf16.msra.mxu0 %v4801
        %4819 = vmatprep.subr.bf16.mxu0 0
        %4820 = vmatpush2.bf16.msra.mxu0 0
        %4821 = vmatprep.subr.bf16.mxu0 0
        %4822 = vmatpush2.bf16.msra.mxu0 0
        %4823 = vmatprep.subr.bf16.mxu0 0
        %4824 = vmatpush2.bf16.msra.mxu0 0
        %4825 = vmatprep.subr.bf16.mxu0 0
        %4826 = vmatpush2.bf16.msra.mxu0 0
        %4827 = vmatprep.subr.bf16.mxu0 0
        %4828 = vmatpush2.bf16.msra.mxu0 0
        %4829 = vmatprep.subr.bf16.mxu0 0
        %4830 = vmatpush2.bf16.msra.mxu0 0
        %4831 = vmatprep.subr.bf16.mxu0 0
        %4832 = vmatpush2.bf16.msra.mxu0 0
        %4833 = vmatprep.subr.bf16.mxu0 0
        %4834 = vmatpush2.bf16.msra.mxu0 0
        %4835 = vmatprep.mubr.bf16.mxu0 0
        %4836 = vmatmul.mubr.bf16.gmra.mxu0 %v4798
        %v4837 = vpop.f32.mrf.mxu0
        %v4838 = vadd.f32 0.0, %v4837
        %v4839 = vpop.f32.mrf.mxu0
        %v4840 = vpop.f32.mrf.mxu0
        %v4841 = vpop.f32.mrf.mxu0
        %4842 = vdwg.mxu0
        %v4844 = vsel %vm4553, %v4654, 0
        %v4847 = vsel %vm4661, %v4165, 0
        %4849 = vmatprep.subr.bf16.mxu0 0
        %4850 = vmatpush1.bf16.msra.mxu0 0
        %4851 = vmatprep.subr.bf16.mxu0 0
        %4852 = vmatpush1.bf16.msra.mxu0 0
        %4853 = vmatprep.subr.bf16.mxu0 0
        %4854 = vmatpush1.bf16.msra.mxu0 0
        %4855 = vmatprep.subr.bf16.mxu0 0
        %4856 = vmatpush1.bf16.msra.mxu0 0
        %4857 = vmatprep.subr.bf16.mxu0 0
        %4858 = vmatpush1.bf16.msra.mxu0 0
        %4859 = vmatprep.subr.bf16.mxu0 0
        %4860 = vmatpush1.bf16.msra.mxu0 0
        %4861 = vmatprep.subr.bf16.mxu0 0
        %4862 = vmatpush1.bf16.msra.mxu0 0
        %4863 = vmatprep.subr.bf16.mxu0 0
        %4864 = vmatpush1.bf16.msra.mxu0 %v4847
        %4865 = vmatprep.subr.bf16.mxu0 0
        %4866 = vmatpush2.bf16.msra.mxu0 0
        %4867 = vmatprep.subr.bf16.mxu0 0
        %4868 = vmatpush2.bf16.msra.mxu0 0
        %4869 = vmatprep.subr.bf16.mxu0 0
        %4870 = vmatpush2.bf16.msra.mxu0 0
        %4871 = vmatprep.subr.bf16.mxu0 0
        %4872 = vmatpush2.bf16.msra.mxu0 0
        %4873 = vmatprep.subr.bf16.mxu0 0
        %4874 = vmatpush2.bf16.msra.mxu0 0
        %4875 = vmatprep.subr.bf16.mxu0 0
        %4876 = vmatpush2.bf16.msra.mxu0 0
        %4877 = vmatprep.subr.bf16.mxu0 0
        %4878 = vmatpush2.bf16.msra.mxu0 0
        %4879 = vmatprep.subr.bf16.mxu0 0
        %4880 = vmatpush2.bf16.msra.mxu0 0
        %4881 = vmatprep.mubr.bf16.mxu0 0
        %4882 = vmatmul.mubr.bf16.gmra.mxu0 %v4844
        %v4883 = vpop.f32.mrf.mxu0
        %v4884 = vadd.f32 0.0, %v4883
        %v4885 = vpop.f32.mrf.mxu0
        %v4886 = vpop.f32.mrf.mxu0
        %v4887 = vpop.f32.mrf.mxu0
        %4888 = vdwg.mxu0
        %v4890 = vsel %vm4553, %v4655, 0
        %v4893 = vsel %vm4661, %v4166, 0
        %4895 = vmatprep.subr.bf16.mxu0 0
        %4896 = vmatpush1.bf16.msra.mxu0 0
        %4897 = vmatprep.subr.bf16.mxu0 0
        %4898 = vmatpush1.bf16.msra.mxu0 0
        %4899 = vmatprep.subr.bf16.mxu0 0
        %4900 = vmatpush1.bf16.msra.mxu0 0
        %4901 = vmatprep.subr.bf16.mxu0 0
        %4902 = vmatpush1.bf16.msra.mxu0 0
        %4903 = vmatprep.subr.bf16.mxu0 0
        %4904 = vmatpush1.bf16.msra.mxu0 0
        %4905 = vmatprep.subr.bf16.mxu0 0
        %4906 = vmatpush1.bf16.msra.mxu0 0
        %4907 = vmatprep.subr.bf16.mxu0 0
        %4908 = vmatpush1.bf16.msra.mxu0 0
        %4909 = vmatprep.subr.bf16.mxu0 0
        %4910 = vmatpush1.bf16.msra.mxu0 %v4893
        %4911 = vmatprep.subr.bf16.mxu0 0
        %4912 = vmatpush2.bf16.msra.mxu0 0
        %4913 = vmatprep.subr.bf16.mxu0 0
        %4914 = vmatpush2.bf16.msra.mxu0 0
        %4915 = vmatprep.subr.bf16.mxu0 0
        %4916 = vmatpush2.bf16.msra.mxu0 0
        %4917 = vmatprep.subr.bf16.mxu0 0
        %4918 = vmatpush2.bf16.msra.mxu0 0
        %4919 = vmatprep.subr.bf16.mxu0 0
        %4920 = vmatpush2.bf16.msra.mxu0 0
        %4921 = vmatprep.subr.bf16.mxu0 0
        %4922 = vmatpush2.bf16.msra.mxu0 0
        %4923 = vmatprep.subr.bf16.mxu0 0
        %4924 = vmatpush2.bf16.msra.mxu0 0
        %4925 = vmatprep.subr.bf16.mxu0 0
        %4926 = vmatpush2.bf16.msra.mxu0 0
        %4927 = vmatprep.mubr.bf16.mxu0 0
        %4928 = vmatmul.mubr.bf16.gmra.mxu0 %v4890
        %v4929 = vpop.f32.mrf.mxu0
        %v4930 = vadd.f32 0.0, %v4929
        %v4931 = vpop.f32.mrf.mxu0
        %v4932 = vpop.f32.mrf.mxu0
        %v4933 = vpop.f32.mrf.mxu0
        %4934 = vdwg.mxu0
        %v4936 = vsel %vm4553, %v4656, 0
        %v4939 = vsel %vm4661, %v4167, 0
        %4941 = vmatprep.subr.bf16.mxu0 0
        %4942 = vmatpush1.bf16.msra.mxu0 0
        %4943 = vmatprep.subr.bf16.mxu0 0
        %4944 = vmatpush1.bf16.msra.mxu0 0
        %4945 = vmatprep.subr.bf16.mxu0 0
        %4946 = vmatpush1.bf16.msra.mxu0 0
        %4947 = vmatprep.subr.bf16.mxu0 0
        %4948 = vmatpush1.bf16.msra.mxu0 0
        %4949 = vmatprep.subr.bf16.mxu0 0
        %4950 = vmatpush1.bf16.msra.mxu0 0
        %4951 = vmatprep.subr.bf16.mxu0 0
        %4952 = vmatpush1.bf16.msra.mxu0 0
        %4953 = vmatprep.subr.bf16.mxu0 0
        %4954 = vmatpush1.bf16.msra.mxu0 0
        %4955 = vmatprep.subr.bf16.mxu0 0
        %4956 = vmatpush1.bf16.msra.mxu0 %v4939
        %4957 = vmatprep.subr.bf16.mxu0 0
        %4958 = vmatpush2.bf16.msra.mxu0 0
        %4959 = vmatprep.subr.bf16.mxu0 0
        %4960 = vmatpush2.bf16.msra.mxu0 0
        %4961 = vmatprep.subr.bf16.mxu0 0
        %4962 = vmatpush2.bf16.msra.mxu0 0
        %4963 = vmatprep.subr.bf16.mxu0 0
        %4964 = vmatpush2.bf16.msra.mxu0 0
        %4965 = vmatprep.subr.bf16.mxu0 0
        %4966 = vmatpush2.bf16.msra.mxu0 0
        %4967 = vmatprep.subr.bf16.mxu0 0
        %4968 = vmatpush2.bf16.msra.mxu0 0
        %4969 = vmatprep.subr.bf16.mxu0 0
        %4970 = vmatpush2.bf16.msra.mxu0 0
        %4971 = vmatprep.subr.bf16.mxu0 0
        %4972 = vmatpush2.bf16.msra.mxu0 0
        %4973 = vmatprep.mubr.bf16.mxu0 0
        %4974 = vmatmul.mubr.bf16.gmra.mxu0 %v4936
        %v4975 = vpop.f32.mrf.mxu0
        %v4976 = vadd.f32 0.0, %v4975
        %v4977 = vpop.f32.mrf.mxu0
        %v4978 = vpop.f32.mrf.mxu0
        %v4979 = vpop.f32.mrf.mxu0
        %4980 = vdwg.mxu0
        %v4982 = vsel %vm4553, %v4657, 0
        %v4985 = vsel %vm4661, %v4168, 0
        %4987 = vmatprep.subr.bf16.mxu0 0
        %4988 = vmatpush1.bf16.msra.mxu0 0
        %4989 = vmatprep.subr.bf16.mxu0 0
        %4990 = vmatpush1.bf16.msra.mxu0 0
        %4991 = vmatprep.subr.bf16.mxu0 0
        %4992 = vmatpush1.bf16.msra.mxu0 0
        %4993 = vmatprep.subr.bf16.mxu0 0
        %4994 = vmatpush1.bf16.msra.mxu0 0
        %4995 = vmatprep.subr.bf16.mxu0 0
        %4996 = vmatpush1.bf16.msra.mxu0 0
        %4997 = vmatprep.subr.bf16.mxu0 0
        %4998 = vmatpush1.bf16.msra.mxu0 0
        %4999 = vmatprep.subr.bf16.mxu0 0
        %5000 = vmatpush1.bf16.msra.mxu0 0
        %5001 = vmatprep.subr.bf16.mxu0 0
        %5002 = vmatpush1.bf16.msra.mxu0 %v4985
        %5003 = vmatprep.subr.bf16.mxu0 0
        %5004 = vmatpush2.bf16.msra.mxu0 0
        %5005 = vmatprep.subr.bf16.mxu0 0
        %5006 = vmatpush2.bf16.msra.mxu0 0
        %5007 = vmatprep.subr.bf16.mxu0 0
        %5008 = vmatpush2.bf16.msra.mxu0 0
        %5009 = vmatprep.subr.bf16.mxu0 0
        %5010 = vmatpush2.bf16.msra.mxu0 0
        %5011 = vmatprep.subr.bf16.mxu0 0
        %5012 = vmatpush2.bf16.msra.mxu0 0
        %5013 = vmatprep.subr.bf16.mxu0 0
        %5014 = vmatpush2.bf16.msra.mxu0 0
        %5015 = vmatprep.subr.bf16.mxu0 0
        %5016 = vmatpush2.bf16.msra.mxu0 0
        %5017 = vmatprep.subr.bf16.mxu0 0
        %5018 = vmatpush2.bf16.msra.mxu0 0
        %5019 = vmatprep.mubr.bf16.mxu0 0
        %5020 = vmatmul.mubr.bf16.gmra.mxu0 %v4982
        %v5021 = vpop.f32.mrf.mxu0
        %v5022 = vadd.f32 0.0, %v5021
        %v5023 = vpop.f32.mrf.mxu0
        %v5024 = vpop.f32.mrf.mxu0
        %v5025 = vpop.f32.mrf.mxu0
        %5026 = vdwg.mxu0
        %v5027 = vcombine.low %v4700, %v4792
        %v5028 = vcombine.high %v4700, %v4792
        %v5030 = vunpack.c.l.s4 1983009808
        %v5031 = vunpack.c.0.s8 %v5030
        %v5032 = vlaneseq
        %v5033 = vshrl.u32 %v5032, 7
        %v5034 = vsub.s32 %v5031, %v5033
        %v5035 = vrot.slane %v5027, %v5034
        %v5037 = vunpack.c.l.s4 1983009808
        %v5038 = vunpack.c.0.s8 %v5037
        %v5039 = vlaneseq
        %v5040 = vshrl.u32 %v5039, 7
        %v5041 = vsub.s32 %v5038, %v5040
        %v5042 = vrot.slane %v5028, %v5041
        %v5043 = vcombine.low %v4746, %v4838
        %v5044 = vcombine.high %v4746, %v4838
        %v5046 = vunpack.c.l.s4 1983009808
        %v5047 = vunpack.c.0.s8 %v5046
        %v5048 = vlaneseq
        %v5049 = vshrl.u32 %v5048, 7
        %v5050 = vsub.s32 %v5047, %v5049
        %v5051 = vrot.slane %v5043, %v5050
        %v5053 = vunpack.c.l.s4 1983009808
        %v5054 = vunpack.c.0.s8 %v5053
        %v5055 = vlaneseq
        %v5056 = vshrl.u32 %v5055, 7
        %v5057 = vsub.s32 %v5054, %v5056
        %v5058 = vrot.slane %v5044, %v5057
        %v5059 = vcombine.low %v4884, %v4976
        %v5060 = vcombine.high %v4884, %v4976
        %v5062 = vunpack.c.l.s4 1983009808
        %v5063 = vunpack.c.0.s8 %v5062
        %v5064 = vlaneseq
        %v5065 = vshrl.u32 %v5064, 7
        %v5066 = vsub.s32 %v5063, %v5065
        %v5067 = vrot.slane %v5059, %v5066
        %v5069 = vunpack.c.l.s4 1983009808
        %v5070 = vunpack.c.0.s8 %v5069
        %v5071 = vlaneseq
        %v5072 = vshrl.u32 %v5071, 7
        %v5073 = vsub.s32 %v5070, %v5072
        %v5074 = vrot.slane %v5060, %v5073
        %v5075 = vcombine.low %v4930, %v5022
        %v5076 = vcombine.high %v4930, %v5022
        %v5078 = vunpack.c.l.s4 1983009808
        %v5079 = vunpack.c.0.s8 %v5078
        %v5080 = vlaneseq
        %v5081 = vshrl.u32 %v5080, 7
        %v5082 = vsub.s32 %v5079, %v5081
        %v5083 = vrot.slane %v5075, %v5082
        %v5085 = vunpack.c.l.s4 1983009808
        %v5086 = vunpack.c.0.s8 %v5085
        %v5087 = vlaneseq
        %v5088 = vshrl.u32 %v5087, 7
        %v5089 = vsub.s32 %v5086, %v5088
        %v5090 = vrot.slane %v5076, %v5089
        %v5091 = vcombine.low %v5035, %v5051
        %v5092 = vcombine.high %v5035, %v5051
        %v5094 = vunpack.c.l.s4 1934713408
        %v5095 = vunpack.c.0.s8 %v5094
        %v5096 = vlaneseq
        %v5097 = vshrl.u32 %v5096, 7
        %v5098 = vsub.s32 %v5095, %v5097
        %v5099 = vrot.slane %v5091, %v5098
        %v5101 = vunpack.c.l.s4 1934713408
        %v5102 = vunpack.c.0.s8 %v5101
        %v5103 = vlaneseq
        %v5104 = vshrl.u32 %v5103, 7
        %v5105 = vsub.s32 %v5102, %v5104
        %v5106 = vrot.slane %v5092, %v5105
        %v5107 = vcombine.low %v5042, %v5058
        %v5108 = vcombine.high %v5042, %v5058
        %v5110 = vunpack.c.l.s4 1934713408
        %v5111 = vunpack.c.0.s8 %v5110
        %v5112 = vlaneseq
        %v5113 = vshrl.u32 %v5112, 7
        %v5114 = vsub.s32 %v5111, %v5113
        %v5115 = vrot.slane %v5107, %v5114
        %v5117 = vunpack.c.l.s4 1934713408
        %v5118 = vunpack.c.0.s8 %v5117
        %v5119 = vlaneseq
        %v5120 = vshrl.u32 %v5119, 7
        %v5121 = vsub.s32 %v5118, %v5120
        %v5122 = vrot.slane %v5108, %v5121
        %v5123 = vcombine.low %v5067, %v5083
        %v5124 = vcombine.high %v5067, %v5083
        %v5126 = vunpack.c.l.s4 1934713408
        %v5127 = vunpack.c.0.s8 %v5126
        %v5128 = vlaneseq
        %v5129 = vshrl.u32 %v5128, 7
        %v5130 = vsub.s32 %v5127, %v5129
        %v5131 = vrot.slane %v5123, %v5130
        %v5133 = vunpack.c.l.s4 1934713408
        %v5134 = vunpack.c.0.s8 %v5133
        %v5135 = vlaneseq
        %v5136 = vshrl.u32 %v5135, 7
        %v5137 = vsub.s32 %v5134, %v5136
        %v5138 = vrot.slane %v5124, %v5137
        %v5139 = vcombine.low %v5074, %v5090
        %v5140 = vcombine.high %v5074, %v5090
        %v5142 = vunpack.c.l.s4 1934713408
        %v5143 = vunpack.c.0.s8 %v5142
        %v5144 = vlaneseq
        %v5145 = vshrl.u32 %v5144, 7
        %v5146 = vsub.s32 %v5143, %v5145
        %v5147 = vrot.slane %v5139, %v5146
        %v5149 = vunpack.c.l.s4 1934713408
        %v5150 = vunpack.c.0.s8 %v5149
        %v5151 = vlaneseq
        %v5152 = vshrl.u32 %v5151, 7
        %v5153 = vsub.s32 %v5150, %v5152
        %v5154 = vrot.slane %v5140, %v5153
        %v5155 = vcombine.low %v5099, %v5131
        %v5156 = vcombine.high %v5099, %v5131
        %v5157 = vcombine.low %v5106, %v5138
        %v5158 = vcombine.high %v5106, %v5138
        %v5159 = vcombine.low %v5115, %v5147
        %v5160 = vcombine.high %v5115, %v5147
        %v5161 = vcombine.low %v5122, %v5154
        %v5162 = vcombine.high %v5122, %v5154
        %v5163 = vcombine.low %v5155, %v5157
        %v5164 = vcombine.high %v5155, %v5157
        %v5166 = vunpack.c.l.s4 1983009808
        %v5167 = vunpack.c.0.s8 %v5166
        %v5168 = vlaneseq
        %v5169 = vshrl.u32 %v5168, 7
        %v5170 = vsub.s32 %v5167, %v5169
        %v5171 = vrot.slane %v5163, %v5170
        %v5173 = vunpack.c.l.s4 1983009808
        %v5174 = vunpack.c.0.s8 %v5173
        %v5175 = vlaneseq
        %v5176 = vshrl.u32 %v5175, 7
        %v5177 = vsub.s32 %v5174, %v5176
        %v5178 = vrot.slane %v5164, %v5177
        %v5179 = vcombine.low %v5156, %v5158
        %v5180 = vcombine.high %v5156, %v5158
        %v5182 = vunpack.c.l.s4 1983009808
        %v5183 = vunpack.c.0.s8 %v5182
        %v5184 = vlaneseq
        %v5185 = vshrl.u32 %v5184, 7
        %v5186 = vsub.s32 %v5183, %v5185
        %v5187 = vrot.slane %v5179, %v5186
        %v5189 = vunpack.c.l.s4 1983009808
        %v5190 = vunpack.c.0.s8 %v5189
        %v5191 = vlaneseq
        %v5192 = vshrl.u32 %v5191, 7
        %v5193 = vsub.s32 %v5190, %v5192
        %v5194 = vrot.slane %v5180, %v5193
        %v5195 = vcombine.low %v5159, %v5161
        %v5196 = vcombine.high %v5159, %v5161
        %v5198 = vunpack.c.l.s4 1983009808
        %v5199 = vunpack.c.0.s8 %v5198
        %v5200 = vlaneseq
        %v5201 = vshrl.u32 %v5200, 7
        %v5202 = vsub.s32 %v5199, %v5201
        %v5203 = vrot.slane %v5195, %v5202
        %v5205 = vunpack.c.l.s4 1983009808
        %v5206 = vunpack.c.0.s8 %v5205
        %v5207 = vlaneseq
        %v5208 = vshrl.u32 %v5207, 7
        %v5209 = vsub.s32 %v5206, %v5208
        %v5210 = vrot.slane %v5196, %v5209
        %v5211 = vcombine.low %v5160, %v5162
        %v5212 = vcombine.high %v5160, %v5162
        %v5214 = vunpack.c.l.s4 1983009808
        %v5215 = vunpack.c.0.s8 %v5214
        %v5216 = vlaneseq
        %v5217 = vshrl.u32 %v5216, 7
        %v5218 = vsub.s32 %v5215, %v5217
        %v5219 = vrot.slane %v5211, %v5218
        %v5221 = vunpack.c.l.s4 1983009808
        %v5222 = vunpack.c.0.s8 %v5221
        %v5223 = vlaneseq
        %v5224 = vshrl.u32 %v5223, 7
        %v5225 = vsub.s32 %v5222, %v5224
        %v5226 = vrot.slane %v5212, %v5225
        %v5227 = vcombine.low %v5171, %v5187
        %v5228 = vcombine.high %v5171, %v5187
        %v5230 = vunpack.c.l.s4 1934713408
        %v5231 = vunpack.c.0.s8 %v5230
        %v5232 = vlaneseq
        %v5233 = vshrl.u32 %v5232, 7
        %v5234 = vsub.s32 %v5231, %v5233
        %v5235 = vrot.slane %v5227, %v5234
        %v5237 = vunpack.c.l.s4 1934713408
        %v5238 = vunpack.c.0.s8 %v5237
        %v5239 = vlaneseq
        %v5240 = vshrl.u32 %v5239, 7
        %v5241 = vsub.s32 %v5238, %v5240
        %v5242 = vrot.slane %v5228, %v5241
        %v5243 = vcombine.low %v5178, %v5194
        %v5244 = vcombine.high %v5178, %v5194
        %v5246 = vunpack.c.l.s4 1934713408
        %v5247 = vunpack.c.0.s8 %v5246
        %v5248 = vlaneseq
        %v5249 = vshrl.u32 %v5248, 7
        %v5250 = vsub.s32 %v5247, %v5249
        %v5251 = vrot.slane %v5243, %v5250
        %v5253 = vunpack.c.l.s4 1934713408
        %v5254 = vunpack.c.0.s8 %v5253
        %v5255 = vlaneseq
        %v5256 = vshrl.u32 %v5255, 7
        %v5257 = vsub.s32 %v5254, %v5256
        %v5258 = vrot.slane %v5244, %v5257
        %v5259 = vcombine.low %v5203, %v5219
        %v5260 = vcombine.high %v5203, %v5219
        %v5262 = vunpack.c.l.s4 1934713408
        %v5263 = vunpack.c.0.s8 %v5262
        %v5264 = vlaneseq
        %v5265 = vshrl.u32 %v5264, 7
        %v5266 = vsub.s32 %v5263, %v5265
        %v5267 = vrot.slane %v5259, %v5266
        %v5269 = vunpack.c.l.s4 1934713408
        %v5270 = vunpack.c.0.s8 %v5269
        %v5271 = vlaneseq
        %v5272 = vshrl.u32 %v5271, 7
        %v5273 = vsub.s32 %v5270, %v5272
        %v5274 = vrot.slane %v5260, %v5273
        %v5275 = vcombine.low %v5210, %v5226
        %v5276 = vcombine.high %v5210, %v5226
        %v5278 = vunpack.c.l.s4 1934713408
        %v5279 = vunpack.c.0.s8 %v5278
        %v5280 = vlaneseq
        %v5281 = vshrl.u32 %v5280, 7
        %v5282 = vsub.s32 %v5279, %v5281
        %v5283 = vrot.slane %v5275, %v5282
        %v5285 = vunpack.c.l.s4 1934713408
        %v5286 = vunpack.c.0.s8 %v5285
        %v5287 = vlaneseq
        %v5288 = vshrl.u32 %v5287, 7
        %v5289 = vsub.s32 %v5286, %v5288
        %v5290 = vrot.slane %v5276, %v5289
        %v5291 = vcombine.low %v5235, %v5267
        %v5292 = vcombine.high %v5235, %v5267
        %v5293 = vcombine.low %v5242, %v5274
        %v5294 = vcombine.high %v5242, %v5274
        %v5295 = vcombine.low %v5251, %v5283
        %v5296 = vcombine.high %v5251, %v5283
        %v5297 = vcombine.low %v5258, %v5290
        %v5298 = vcombine.high %v5258, %v5290
        %5300 = vrot.lane.b32.xlu0 %v5292, 64
        %v5301 = vpop.permute.xlu0 %5300
        %5304 = vrot.lane.b32.xlu0 %v5294, 64
        %v5305 = vpop.permute.xlu0 %5304
        %5308 = vrot.lane.b32.xlu0 %v5296, 64
        %v5309 = vpop.permute.xlu0 %5308
        %5312 = vrot.lane.b32.xlu0 %v5298, 64
        %v5313 = vpop.permute.xlu0 %5312
        %v5315 = vsel %vm4169, %v5291, %v5301
        %v5316 = vsel %vm4169, %v5293, %v5305
        %v5317 = vsel %vm4169, %v5295, %v5309
        %v5318 = vsel %vm4169, %v5297, %v5313
        %v5319 = vpack.c.bf16 %v5315, %v5315
        %v5320 = vpack.c.bf16 %v5316, %v5316
        %v5321 = vpack.c.bf16 %v5317, %v5317
        %v5322 = vpack.c.bf16 %v5318, %v5318
        %v5323 = vld [vmem:[#allocation10] sm:$0xff]
        %v5324 = vld [vmem:[#allocation10 + $0x8] sm:$0xff]
        %v5325 = vld [vmem:[#allocation10 + $0x10] sm:$0xff]
        %v5326 = vld [vmem:[#allocation10 + $0x18] sm:$0xff]
        %v5327 = vld [vmem:[#allocation10 + $0x20] sm:$0xff]
        %v5328 = vld [vmem:[#allocation10 + $0x28] sm:$0xff]
        %v5329 = vld [vmem:[#allocation10 + $0x30] sm:$0xff]
        %v5330 = vld [vmem:[#allocation10 + $0x38] sm:$0xff]
        %v5331 = vld [vmem:[#allocation10 + $0x40] sm:$0xff]
        %v5332 = vld [vmem:[#allocation10 + $0x48] sm:$0xff]
        %v5333 = vld [vmem:[#allocation10 + $0x50] sm:$0xff]
        %v5334 = vld [vmem:[#allocation10 + $0x58] sm:$0xff]
        %v5335 = vld [vmem:[#allocation10 + $0x60] sm:$0xff]
        %v5336 = vld [vmem:[#allocation10 + $0x68] sm:$0xff]
        %v5337 = vld [vmem:[#allocation10 + $0x70] sm:$0xff]
        %v5338 = vld [vmem:[#allocation10 + $0x78] sm:$0xff]
        %v5339 = vld [vmem:[#allocation10 + $0x80] sm:$0xff]
        %v5340 = vld [vmem:[#allocation10 + $0x88] sm:$0xff]
        %v5341 = vld [vmem:[#allocation10 + $0x90] sm:$0xff]
        %v5342 = vld [vmem:[#allocation10 + $0x98] sm:$0xff]
        %v5343 = vld [vmem:[#allocation10 + $0xa0] sm:$0xff]
        %v5344 = vld [vmem:[#allocation10 + $0xa8] sm:$0xff]
        %v5345 = vld [vmem:[#allocation10 + $0xb0] sm:$0xff]
        %v5346 = vld [vmem:[#allocation10 + $0xb8] sm:$0xff]
        %v5347 = vld [vmem:[#allocation10 + $0xc0] sm:$0xff]
        %v5348 = vld [vmem:[#allocation10 + $0xc8] sm:$0xff]
        %v5349 = vld [vmem:[#allocation10 + $0xd0] sm:$0xff]
        %v5350 = vld [vmem:[#allocation10 + $0xd8] sm:$0xff]
        %v5351 = vld [vmem:[#allocation10 + $0xe0] sm:$0xff]
        %v5352 = vld [vmem:[#allocation10 + $0xe8] sm:$0xff]
        %v5353 = vld [vmem:[#allocation10 + $0xf0] sm:$0xff]
        %v5354 = vld [vmem:[#allocation10 + $0xf8] sm:$0xff]
        %v5355 = vld [vmem:[#allocation10 + $0x100] sm:$0xff]
        %v5356 = vld [vmem:[#allocation10 + $0x108] sm:$0xff]
        %v5357 = vld [vmem:[#allocation10 + $0x110] sm:$0xff]
        %v5358 = vld [vmem:[#allocation10 + $0x118] sm:$0xff]
        %v5359 = vld [vmem:[#allocation10 + $0x120] sm:$0xff]
        %v5360 = vld [vmem:[#allocation10 + $0x128] sm:$0xff]
        %v5361 = vld [vmem:[#allocation10 + $0x130] sm:$0xff]
        %v5362 = vld [vmem:[#allocation10 + $0x138] sm:$0xff]
        %v5363 = vld [vmem:[#allocation10 + $0x140] sm:$0xff]
        %v5364 = vld [vmem:[#allocation10 + $0x148] sm:$0xff]
        %v5365 = vld [vmem:[#allocation10 + $0x150] sm:$0xff]
        %v5366 = vld [vmem:[#allocation10 + $0x158] sm:$0xff]
        %v5367 = vld [vmem:[#allocation10 + $0x160] sm:$0xff]
        %v5368 = vld [vmem:[#allocation10 + $0x168] sm:$0xff]
        %v5369 = vld [vmem:[#allocation10 + $0x170] sm:$0xff]
        %v5370 = vld [vmem:[#allocation10 + $0x178] sm:$0xff]
        %v5371 = vld [vmem:[#allocation10 + $0x180] sm:$0xff]
        %v5372 = vld [vmem:[#allocation10 + $0x188] sm:$0xff]
        %v5373 = vld [vmem:[#allocation10 + $0x190] sm:$0xff]
        %v5374 = vld [vmem:[#allocation10 + $0x198] sm:$0xff]
        %v5375 = vld [vmem:[#allocation10 + $0x1a0] sm:$0xff]
        %v5376 = vld [vmem:[#allocation10 + $0x1a8] sm:$0xff]
        %v5377 = vld [vmem:[#allocation10 + $0x1b0] sm:$0xff]
        %v5378 = vld [vmem:[#allocation10 + $0x1b8] sm:$0xff]
        %v5379 = vld [vmem:[#allocation10 + $0x1c0] sm:$0xff]
        %v5380 = vld [vmem:[#allocation10 + $0x1c8] sm:$0xff]
        %v5381 = vld [vmem:[#allocation10 + $0x1d0] sm:$0xff]
        %v5382 = vld [vmem:[#allocation10 + $0x1d8] sm:$0xff]
        %v5383 = vld [vmem:[#allocation10 + $0x1e0] sm:$0xff]
        %v5384 = vld [vmem:[#allocation10 + $0x1e8] sm:$0xff]
        %v5385 = vld [vmem:[#allocation10 + $0x1f0] sm:$0xff]
        %v5386 = vld [vmem:[#allocation10 + $0x1f8] sm:$0xff]
        %v5387 = vld [vmem:[#allocation10 + $0x200] sm:$0xff]
        %v5388 = vld [vmem:[#allocation10 + $0x208] sm:$0xff]
        %v5389 = vld [vmem:[#allocation10 + $0x210] sm:$0xff]
        %v5390 = vld [vmem:[#allocation10 + $0x218] sm:$0xff]
        %v5391 = vld [vmem:[#allocation10 + $0x220] sm:$0xff]
        %v5392 = vld [vmem:[#allocation10 + $0x228] sm:$0xff]
        %v5393 = vld [vmem:[#allocation10 + $0x230] sm:$0xff]
        %v5394 = vld [vmem:[#allocation10 + $0x238] sm:$0xff]
        %v5395 = vld [vmem:[#allocation10 + $0x240] sm:$0xff]
        %v5396 = vld [vmem:[#allocation10 + $0x248] sm:$0xff]
        %v5397 = vld [vmem:[#allocation10 + $0x250] sm:$0xff]
        %v5398 = vld [vmem:[#allocation10 + $0x258] sm:$0xff]
        %v5399 = vld [vmem:[#allocation10 + $0x260] sm:$0xff]
        %v5400 = vld [vmem:[#allocation10 + $0x268] sm:$0xff]
        %v5401 = vld [vmem:[#allocation10 + $0x270] sm:$0xff]
        %v5402 = vld [vmem:[#allocation10 + $0x278] sm:$0xff]
        %v5403 = vld [vmem:[#allocation10 + $0x280] sm:$0xff]
        %v5404 = vld [vmem:[#allocation10 + $0x288] sm:$0xff]
        %v5405 = vld [vmem:[#allocation10 + $0x290] sm:$0xff]
        %v5406 = vld [vmem:[#allocation10 + $0x298] sm:$0xff]
        %v5407 = vld [vmem:[#allocation10 + $0x2a0] sm:$0xff]
        %v5408 = vld [vmem:[#allocation10 + $0x2a8] sm:$0xff]
        %v5409 = vld [vmem:[#allocation10 + $0x2b0] sm:$0xff]
        %v5410 = vld [vmem:[#allocation10 + $0x2b8] sm:$0xff]
        %v5411 = vld [vmem:[#allocation10 + $0x2c0] sm:$0xff]
        %v5412 = vld [vmem:[#allocation10 + $0x2c8] sm:$0xff]
        %v5413 = vld [vmem:[#allocation10 + $0x2d0] sm:$0xff]
        %v5414 = vld [vmem:[#allocation10 + $0x2d8] sm:$0xff]
        %v5415 = vld [vmem:[#allocation10 + $0x2e0] sm:$0xff]
        %v5416 = vld [vmem:[#allocation10 + $0x2e8] sm:$0xff]
        %v5417 = vld [vmem:[#allocation10 + $0x2f0] sm:$0xff]
        %v5418 = vld [vmem:[#allocation10 + $0x2f8] sm:$0xff]
        %v5419 = vld [vmem:[#allocation10 + $0x300] sm:$0xff]
        %v5420 = vld [vmem:[#allocation10 + $0x308] sm:$0xff]
        %v5421 = vld [vmem:[#allocation10 + $0x310] sm:$0xff]
        %v5422 = vld [vmem:[#allocation10 + $0x318] sm:$0xff]
        %v5423 = vld [vmem:[#allocation10 + $0x320] sm:$0xff]
        %v5424 = vld [vmem:[#allocation10 + $0x328] sm:$0xff]
        %v5425 = vld [vmem:[#allocation10 + $0x330] sm:$0xff]
        %v5426 = vld [vmem:[#allocation10 + $0x338] sm:$0xff]
        %v5427 = vld [vmem:[#allocation10 + $0x340] sm:$0xff]
        %v5428 = vld [vmem:[#allocation10 + $0x348] sm:$0xff]
        %v5429 = vld [vmem:[#allocation10 + $0x350] sm:$0xff]
        %v5430 = vld [vmem:[#allocation10 + $0x358] sm:$0xff]
        %v5431 = vld [vmem:[#allocation10 + $0x360] sm:$0xff]
        %v5432 = vld [vmem:[#allocation10 + $0x368] sm:$0xff]
        %v5433 = vld [vmem:[#allocation10 + $0x370] sm:$0xff]
        %v5434 = vld [vmem:[#allocation10 + $0x378] sm:$0xff]
        %v5435 = vld [vmem:[#allocation10 + $0x380] sm:$0xff]
        %v5436 = vld [vmem:[#allocation10 + $0x388] sm:$0xff]
        %v5437 = vld [vmem:[#allocation10 + $0x390] sm:$0xff]
        %v5438 = vld [vmem:[#allocation10 + $0x398] sm:$0xff]
        %v5439 = vld [vmem:[#allocation10 + $0x3a0] sm:$0xff]
        %v5440 = vld [vmem:[#allocation10 + $0x3a8] sm:$0xff]
        %v5441 = vld [vmem:[#allocation10 + $0x3b0] sm:$0xff]
        %v5442 = vld [vmem:[#allocation10 + $0x3b8] sm:$0xff]
        %v5443 = vld [vmem:[#allocation10 + $0x3c0] sm:$0xff]
        %v5444 = vld [vmem:[#allocation10 + $0x3c8] sm:$0xff]
        %v5445 = vld [vmem:[#allocation10 + $0x3d0] sm:$0xff]
        %v5446 = vld [vmem:[#allocation10 + $0x3d8] sm:$0xff]
        %v5447 = vld [vmem:[#allocation10 + $0x3e0] sm:$0xff]
        %v5448 = vld [vmem:[#allocation10 + $0x3e8] sm:$0xff]
        %v5449 = vld [vmem:[#allocation10 + $0x3f0] sm:$0xff]
        %v5450 = vld [vmem:[#allocation10 + $0x3f8] sm:$0xff]
        %v5579 = vunpack.c.l.b16 %v5323
        %v5580 = vunpack.c.h.b16 %v5323
        %v5581 = vunpack.c.l.b16 %v5324
        %v5582 = vunpack.c.h.b16 %v5324
        %v5583 = vunpack.c.l.b16 %v5325
        %v5584 = vunpack.c.h.b16 %v5325
        %v5585 = vunpack.c.l.b16 %v5326
        %v5586 = vunpack.c.h.b16 %v5326
        %v5587 = vunpack.c.l.b16 %v5327
        %v5588 = vunpack.c.h.b16 %v5327
        %v5589 = vunpack.c.l.b16 %v5328
        %v5590 = vunpack.c.h.b16 %v5328
        %v5591 = vunpack.c.l.b16 %v5329
        %v5592 = vunpack.c.h.b16 %v5329
        %v5593 = vunpack.c.l.b16 %v5330
        %v5594 = vunpack.c.h.b16 %v5330
        %v5595 = vunpack.c.l.b16 %v5331
        %v5596 = vunpack.c.h.b16 %v5331
        %v5597 = vunpack.c.l.b16 %v5332
        %v5598 = vunpack.c.h.b16 %v5332
        %v5599 = vunpack.c.l.b16 %v5333
        %v5600 = vunpack.c.h.b16 %v5333
        %v5601 = vunpack.c.l.b16 %v5334
        %v5602 = vunpack.c.h.b16 %v5334
        %v5603 = vunpack.c.l.b16 %v5335
        %v5604 = vunpack.c.h.b16 %v5335
        %v5605 = vunpack.c.l.b16 %v5336
        %v5606 = vunpack.c.h.b16 %v5336
        %v5607 = vunpack.c.l.b16 %v5337
        %v5608 = vunpack.c.h.b16 %v5337
        %v5609 = vunpack.c.l.b16 %v5338
        %v5610 = vunpack.c.h.b16 %v5338
        %v5611 = vunpack.c.l.b16 %v5339
        %v5612 = vunpack.c.h.b16 %v5339
        %v5613 = vunpack.c.l.b16 %v5340
        %v5614 = vunpack.c.h.b16 %v5340
        %v5615 = vunpack.c.l.b16 %v5341
        %v5616 = vunpack.c.h.b16 %v5341
        %v5617 = vunpack.c.l.b16 %v5342
        %v5618 = vunpack.c.h.b16 %v5342
        %v5619 = vunpack.c.l.b16 %v5343
        %v5620 = vunpack.c.h.b16 %v5343
        %v5621 = vunpack.c.l.b16 %v5344
        %v5622 = vunpack.c.h.b16 %v5344
        %v5623 = vunpack.c.l.b16 %v5345
        %v5624 = vunpack.c.h.b16 %v5345
        %v5625 = vunpack.c.l.b16 %v5346
        %v5626 = vunpack.c.h.b16 %v5346
        %v5627 = vunpack.c.l.b16 %v5347
        %v5628 = vunpack.c.h.b16 %v5347
        %v5629 = vunpack.c.l.b16 %v5348
        %v5630 = vunpack.c.h.b16 %v5348
        %v5631 = vunpack.c.l.b16 %v5349
        %v5632 = vunpack.c.h.b16 %v5349
        %v5633 = vunpack.c.l.b16 %v5350
        %v5634 = vunpack.c.h.b16 %v5350
        %v5635 = vunpack.c.l.b16 %v5351
        %v5636 = vunpack.c.h.b16 %v5351
        %v5637 = vunpack.c.l.b16 %v5352
        %v5638 = vunpack.c.h.b16 %v5352
        %v5639 = vunpack.c.l.b16 %v5353
        %v5640 = vunpack.c.h.b16 %v5353
        %v5641 = vunpack.c.l.b16 %v5354
        %v5642 = vunpack.c.h.b16 %v5354
        %v5643 = vunpack.c.l.b16 %v5355
        %v5644 = vunpack.c.h.b16 %v5355
        %v5645 = vunpack.c.l.b16 %v5356
        %v5646 = vunpack.c.h.b16 %v5356
        %v5647 = vunpack.c.l.b16 %v5357
        %v5648 = vunpack.c.h.b16 %v5357
        %v5649 = vunpack.c.l.b16 %v5358
        %v5650 = vunpack.c.h.b16 %v5358
        %v5651 = vunpack.c.l.b16 %v5359
        %v5652 = vunpack.c.h.b16 %v5359
        %v5653 = vunpack.c.l.b16 %v5360
        %v5654 = vunpack.c.h.b16 %v5360
        %v5655 = vunpack.c.l.b16 %v5361
        %v5656 = vunpack.c.h.b16 %v5361
        %v5657 = vunpack.c.l.b16 %v5362
        %v5658 = vunpack.c.h.b16 %v5362
        %v5659 = vunpack.c.l.b16 %v5363
        %v5660 = vunpack.c.h.b16 %v5363
        %v5661 = vunpack.c.l.b16 %v5364
        %v5662 = vunpack.c.h.b16 %v5364
        %v5663 = vunpack.c.l.b16 %v5365
        %v5664 = vunpack.c.h.b16 %v5365
        %v5665 = vunpack.c.l.b16 %v5366
        %v5666 = vunpack.c.h.b16 %v5366
        %v5667 = vunpack.c.l.b16 %v5367
        %v5668 = vunpack.c.h.b16 %v5367
        %v5669 = vunpack.c.l.b16 %v5368
        %v5670 = vunpack.c.h.b16 %v5368
        %v5671 = vunpack.c.l.b16 %v5369
        %v5672 = vunpack.c.h.b16 %v5369
        %v5673 = vunpack.c.l.b16 %v5370
        %v5674 = vunpack.c.h.b16 %v5370
        %v5675 = vunpack.c.l.b16 %v5371
        %v5676 = vunpack.c.h.b16 %v5371
        %v5677 = vunpack.c.l.b16 %v5372
        %v5678 = vunpack.c.h.b16 %v5372
        %v5679 = vunpack.c.l.b16 %v5373
        %v5680 = vunpack.c.h.b16 %v5373
        %v5681 = vunpack.c.l.b16 %v5374
        %v5682 = vunpack.c.h.b16 %v5374
        %v5683 = vunpack.c.l.b16 %v5375
        %v5684 = vunpack.c.h.b16 %v5375
        %v5685 = vunpack.c.l.b16 %v5376
        %v5686 = vunpack.c.h.b16 %v5376
        %v5687 = vunpack.c.l.b16 %v5377
        %v5688 = vunpack.c.h.b16 %v5377
        %v5689 = vunpack.c.l.b16 %v5378
        %v5690 = vunpack.c.h.b16 %v5378
        %v5691 = vunpack.c.l.b16 %v5379
        %v5692 = vunpack.c.h.b16 %v5379
        %v5693 = vunpack.c.l.b16 %v5380
        %v5694 = vunpack.c.h.b16 %v5380
        %v5695 = vunpack.c.l.b16 %v5381
        %v5696 = vunpack.c.h.b16 %v5381
        %v5697 = vunpack.c.l.b16 %v5382
        %v5698 = vunpack.c.h.b16 %v5382
        %v5699 = vunpack.c.l.b16 %v5383
        %v5700 = vunpack.c.h.b16 %v5383
        %v5701 = vunpack.c.l.b16 %v5384
        %v5702 = vunpack.c.h.b16 %v5384
        %v5703 = vunpack.c.l.b16 %v5385
        %v5704 = vunpack.c.h.b16 %v5385
        %v5705 = vunpack.c.l.b16 %v5386
        %v5706 = vunpack.c.h.b16 %v5386
        %v5707 = vunpack.c.l.b16 %v5387
        %v5708 = vunpack.c.h.b16 %v5387
        %v5709 = vunpack.c.l.b16 %v5388
        %v5710 = vunpack.c.h.b16 %v5388
        %v5711 = vunpack.c.l.b16 %v5389
        %v5712 = vunpack.c.h.b16 %v5389
        %v5713 = vunpack.c.l.b16 %v5390
        %v5714 = vunpack.c.h.b16 %v5390
        %v5715 = vunpack.c.l.b16 %v5391
        %v5716 = vunpack.c.h.b16 %v5391
        %v5717 = vunpack.c.l.b16 %v5392
        %v5718 = vunpack.c.h.b16 %v5392
        %v5719 = vunpack.c.l.b16 %v5393
        %v5720 = vunpack.c.h.b16 %v5393
        %v5721 = vunpack.c.l.b16 %v5394
        %v5722 = vunpack.c.h.b16 %v5394
        %v5723 = vunpack.c.l.b16 %v5395
        %v5724 = vunpack.c.h.b16 %v5395
        %v5725 = vunpack.c.l.b16 %v5396
        %v5726 = vunpack.c.h.b16 %v5396
        %v5727 = vunpack.c.l.b16 %v5397
        %v5728 = vunpack.c.h.b16 %v5397
        %v5729 = vunpack.c.l.b16 %v5398
        %v5730 = vunpack.c.h.b16 %v5398
        %v5731 = vunpack.c.l.b16 %v5399
        %v5732 = vunpack.c.h.b16 %v5399
        %v5733 = vunpack.c.l.b16 %v5400
        %v5734 = vunpack.c.h.b16 %v5400
        %v5735 = vunpack.c.l.b16 %v5401
        %v5736 = vunpack.c.h.b16 %v5401
        %v5737 = vunpack.c.l.b16 %v5402
        %v5738 = vunpack.c.h.b16 %v5402
        %v5739 = vunpack.c.l.b16 %v5403
        %v5740 = vunpack.c.h.b16 %v5403
        %v5741 = vunpack.c.l.b16 %v5404
        %v5742 = vunpack.c.h.b16 %v5404
        %v5743 = vunpack.c.l.b16 %v5405
        %v5744 = vunpack.c.h.b16 %v5405
        %v5745 = vunpack.c.l.b16 %v5406
        %v5746 = vunpack.c.h.b16 %v5406
        %v5747 = vunpack.c.l.b16 %v5407
        %v5748 = vunpack.c.h.b16 %v5407
        %v5749 = vunpack.c.l.b16 %v5408
        %v5750 = vunpack.c.h.b16 %v5408
        %v5751 = vunpack.c.l.b16 %v5409
        %v5752 = vunpack.c.h.b16 %v5409
        %v5753 = vunpack.c.l.b16 %v5410
        %v5754 = vunpack.c.h.b16 %v5410
        %v5755 = vunpack.c.l.b16 %v5411
        %v5756 = vunpack.c.h.b16 %v5411
        %v5757 = vunpack.c.l.b16 %v5412
        %v5758 = vunpack.c.h.b16 %v5412
        %v5759 = vunpack.c.l.b16 %v5413
        %v5760 = vunpack.c.h.b16 %v5413
        %v5761 = vunpack.c.l.b16 %v5414
        %v5762 = vunpack.c.h.b16 %v5414
        %v5763 = vunpack.c.l.b16 %v5415
        %v5764 = vunpack.c.h.b16 %v5415
        %v5765 = vunpack.c.l.b16 %v5416
        %v5766 = vunpack.c.h.b16 %v5416
        %v5767 = vunpack.c.l.b16 %v5417
        %v5768 = vunpack.c.h.b16 %v5417
        %v5769 = vunpack.c.l.b16 %v5418
        %v5770 = vunpack.c.h.b16 %v5418
        %v5771 = vunpack.c.l.b16 %v5419
        %v5772 = vunpack.c.h.b16 %v5419
        %v5773 = vunpack.c.l.b16 %v5420
        %v5774 = vunpack.c.h.b16 %v5420
        %v5775 = vunpack.c.l.b16 %v5421
        %v5776 = vunpack.c.h.b16 %v5421
        %v5777 = vunpack.c.l.b16 %v5422
        %v5778 = vunpack.c.h.b16 %v5422
        %v5779 = vunpack.c.l.b16 %v5423
        %v5780 = vunpack.c.h.b16 %v5423
        %v5781 = vunpack.c.l.b16 %v5424
        %v5782 = vunpack.c.h.b16 %v5424
        %v5783 = vunpack.c.l.b16 %v5425
        %v5784 = vunpack.c.h.b16 %v5425
        %v5785 = vunpack.c.l.b16 %v5426
        %v5786 = vunpack.c.h.b16 %v5426
        %v5787 = vunpack.c.l.b16 %v5427
        %v5788 = vunpack.c.h.b16 %v5427
        %v5789 = vunpack.c.l.b16 %v5428
        %v5790 = vunpack.c.h.b16 %v5428
        %v5791 = vunpack.c.l.b16 %v5429
        %v5792 = vunpack.c.h.b16 %v5429
        %v5793 = vunpack.c.l.b16 %v5430
        %v5794 = vunpack.c.h.b16 %v5430
        %v5795 = vunpack.c.l.b16 %v5431
        %v5796 = vunpack.c.h.b16 %v5431
        %v5797 = vunpack.c.l.b16 %v5432
        %v5798 = vunpack.c.h.b16 %v5432
        %v5799 = vunpack.c.l.b16 %v5433
        %v5800 = vunpack.c.h.b16 %v5433
        %v5801 = vunpack.c.l.b16 %v5434
        %v5802 = vunpack.c.h.b16 %v5434
        %v5803 = vunpack.c.l.b16 %v5435
        %v5804 = vunpack.c.h.b16 %v5435
        %v5805 = vunpack.c.l.b16 %v5436
        %v5806 = vunpack.c.h.b16 %v5436
        %v5807 = vunpack.c.l.b16 %v5437
        %v5808 = vunpack.c.h.b16 %v5437
        %v5809 = vunpack.c.l.b16 %v5438
        %v5810 = vunpack.c.h.b16 %v5438
        %v5811 = vunpack.c.l.b16 %v5439
        %v5812 = vunpack.c.h.b16 %v5439
        %v5813 = vunpack.c.l.b16 %v5440
        %v5814 = vunpack.c.h.b16 %v5440
        %v5815 = vunpack.c.l.b16 %v5441
        %v5816 = vunpack.c.h.b16 %v5441
        %v5817 = vunpack.c.l.b16 %v5442
        %v5818 = vunpack.c.h.b16 %v5442
        %v5819 = vunpack.c.l.b16 %v5443
        %v5820 = vunpack.c.h.b16 %v5443
        %v5821 = vunpack.c.l.b16 %v5444
        %v5822 = vunpack.c.h.b16 %v5444
        %v5823 = vunpack.c.l.b16 %v5445
        %v5824 = vunpack.c.h.b16 %v5445
        %v5825 = vunpack.c.l.b16 %v5446
        %v5826 = vunpack.c.h.b16 %v5446
        %v5827 = vunpack.c.l.b16 %v5447
        %v5828 = vunpack.c.h.b16 %v5447
        %v5829 = vunpack.c.l.b16 %v5448
        %v5830 = vunpack.c.h.b16 %v5448
        %v5831 = vunpack.c.l.b16 %v5449
        %v5832 = vunpack.c.h.b16 %v5449
        %v5833 = vunpack.c.l.b16 %v5450
        %v5834 = vunpack.c.h.b16 %v5450
        %v5835 = vpack.c.b16 %v5583, %v5579
        %v5836 = vpack.c.b16 %v5584, %v5580
        %v5837 = vpack.c.b16 %v5585, %v5581
        %v5838 = vpack.c.b16 %v5586, %v5582
        %v5839 = vpack.c.b16 %v5591, %v5587
        %v5840 = vpack.c.b16 %v5592, %v5588
        %v5841 = vpack.c.b16 %v5593, %v5589
        %v5842 = vpack.c.b16 %v5594, %v5590
        %v5843 = vpack.c.b16 %v5599, %v5595
        %v5844 = vpack.c.b16 %v5600, %v5596
        %v5845 = vpack.c.b16 %v5601, %v5597
        %v5846 = vpack.c.b16 %v5602, %v5598
        %v5847 = vpack.c.b16 %v5607, %v5603
        %v5848 = vpack.c.b16 %v5608, %v5604
        %v5849 = vpack.c.b16 %v5609, %v5605
        %v5850 = vpack.c.b16 %v5610, %v5606
        %v5851 = vpack.c.b16 %v5615, %v5611
        %v5852 = vpack.c.b16 %v5616, %v5612
        %v5853 = vpack.c.b16 %v5617, %v5613
        %v5854 = vpack.c.b16 %v5618, %v5614
        %v5855 = vpack.c.b16 %v5623, %v5619
        %v5856 = vpack.c.b16 %v5624, %v5620
        %v5857 = vpack.c.b16 %v5625, %v5621
        %v5858 = vpack.c.b16 %v5626, %v5622
        %v5859 = vpack.c.b16 %v5631, %v5627
        %v5860 = vpack.c.b16 %v5632, %v5628
        %v5861 = vpack.c.b16 %v5633, %v5629
        %v5862 = vpack.c.b16 %v5634, %v5630
        %v5863 = vpack.c.b16 %v5639, %v5635
        %v5864 = vpack.c.b16 %v5640, %v5636
        %v5865 = vpack.c.b16 %v5641, %v5637
        %v5866 = vpack.c.b16 %v5642, %v5638
        %v5867 = vpack.c.b16 %v5647, %v5643
        %v5868 = vpack.c.b16 %v5648, %v5644
        %v5869 = vpack.c.b16 %v5649, %v5645
        %v5870 = vpack.c.b16 %v5650, %v5646
        %v5871 = vpack.c.b16 %v5655, %v5651
        %v5872 = vpack.c.b16 %v5656, %v5652
        %v5873 = vpack.c.b16 %v5657, %v5653
        %v5874 = vpack.c.b16 %v5658, %v5654
        %v5875 = vpack.c.b16 %v5663, %v5659
        %v5876 = vpack.c.b16 %v5664, %v5660
        %v5877 = vpack.c.b16 %v5665, %v5661
        %v5878 = vpack.c.b16 %v5666, %v5662
        %v5879 = vpack.c.b16 %v5671, %v5667
        %v5880 = vpack.c.b16 %v5672, %v5668
        %v5881 = vpack.c.b16 %v5673, %v5669
        %v5882 = vpack.c.b16 %v5674, %v5670
        %v5883 = vpack.c.b16 %v5679, %v5675
        %v5884 = vpack.c.b16 %v5680, %v5676
        %v5885 = vpack.c.b16 %v5681, %v5677
        %v5886 = vpack.c.b16 %v5682, %v5678
        %v5887 = vpack.c.b16 %v5687, %v5683
        %v5888 = vpack.c.b16 %v5688, %v5684
        %v5889 = vpack.c.b16 %v5689, %v5685
        %v5890 = vpack.c.b16 %v5690, %v5686
        %v5891 = vpack.c.b16 %v5695, %v5691
        %v5892 = vpack.c.b16 %v5696, %v5692
        %v5893 = vpack.c.b16 %v5697, %v5693
        %v5894 = vpack.c.b16 %v5698, %v5694
        %v5895 = vpack.c.b16 %v5703, %v5699
        %v5896 = vpack.c.b16 %v5704, %v5700
        %v5897 = vpack.c.b16 %v5705, %v5701
        %v5898 = vpack.c.b16 %v5706, %v5702
        %v5899 = vpack.c.b16 %v5711, %v5707
        %v5900 = vpack.c.b16 %v5712, %v5708
        %v5901 = vpack.c.b16 %v5713, %v5709
        %v5902 = vpack.c.b16 %v5714, %v5710
        %v5903 = vpack.c.b16 %v5719, %v5715
        %v5904 = vpack.c.b16 %v5720, %v5716
        %v5905 = vpack.c.b16 %v5721, %v5717
        %v5906 = vpack.c.b16 %v5722, %v5718
        %v5907 = vpack.c.b16 %v5727, %v5723
        %v5908 = vpack.c.b16 %v5728, %v5724
        %v5909 = vpack.c.b16 %v5729, %v5725
        %v5910 = vpack.c.b16 %v5730, %v5726
        %v5911 = vpack.c.b16 %v5735, %v5731
        %v5912 = vpack.c.b16 %v5736, %v5732
        %v5913 = vpack.c.b16 %v5737, %v5733
        %v5914 = vpack.c.b16 %v5738, %v5734
        %v5915 = vpack.c.b16 %v5743, %v5739
        %v5916 = vpack.c.b16 %v5744, %v5740
        %v5917 = vpack.c.b16 %v5745, %v5741
        %v5918 = vpack.c.b16 %v5746, %v5742
        %v5919 = vpack.c.b16 %v5751, %v5747
        %v5920 = vpack.c.b16 %v5752, %v5748
        %v5921 = vpack.c.b16 %v5753, %v5749
        %v5922 = vpack.c.b16 %v5754, %v5750
        %v5923 = vpack.c.b16 %v5759, %v5755
        %v5924 = vpack.c.b16 %v5760, %v5756
        %v5925 = vpack.c.b16 %v5761, %v5757
        %v5926 = vpack.c.b16 %v5762, %v5758
        %v5927 = vpack.c.b16 %v5767, %v5763
        %v5928 = vpack.c.b16 %v5768, %v5764
        %v5929 = vpack.c.b16 %v5769, %v5765
        %v5930 = vpack.c.b16 %v5770, %v5766
        %v5931 = vpack.c.b16 %v5775, %v5771
        %v5932 = vpack.c.b16 %v5776, %v5772
        %v5933 = vpack.c.b16 %v5777, %v5773
        %v5934 = vpack.c.b16 %v5778, %v5774
        %v5935 = vpack.c.b16 %v5783, %v5779
        %v5936 = vpack.c.b16 %v5784, %v5780
        %v5937 = vpack.c.b16 %v5785, %v5781
        %v5938 = vpack.c.b16 %v5786, %v5782
        %v5939 = vpack.c.b16 %v5791, %v5787
        %v5940 = vpack.c.b16 %v5792, %v5788
        %v5941 = vpack.c.b16 %v5793, %v5789
        %v5942 = vpack.c.b16 %v5794, %v5790
        %v5943 = vpack.c.b16 %v5799, %v5795
        %v5944 = vpack.c.b16 %v5800, %v5796
        %v5945 = vpack.c.b16 %v5801, %v5797
        %v5946 = vpack.c.b16 %v5802, %v5798
        %v5947 = vpack.c.b16 %v5807, %v5803
        %v5948 = vpack.c.b16 %v5808, %v5804
        %v5949 = vpack.c.b16 %v5809, %v5805
        %v5950 = vpack.c.b16 %v5810, %v5806
        %v5951 = vpack.c.b16 %v5815, %v5811
        %v5952 = vpack.c.b16 %v5816, %v5812
        %v5953 = vpack.c.b16 %v5817, %v5813
        %v5954 = vpack.c.b16 %v5818, %v5814
        %v5955 = vpack.c.b16 %v5823, %v5819
        %v5956 = vpack.c.b16 %v5824, %v5820
        %v5957 = vpack.c.b16 %v5825, %v5821
        %v5958 = vpack.c.b16 %v5826, %v5822
        %v5959 = vpack.c.b16 %v5831, %v5827
        %v5960 = vpack.c.b16 %v5832, %v5828
        %v5961 = vpack.c.b16 %v5833, %v5829
        %v5962 = vpack.c.b16 %v5834, %v5830
        %6091 = vmatprep.subr.bf16.mxu0 %v5864
        %6092 = vmatpush1.bf16.msra.mxu0 %v5863
        %6093 = vmatprep.subr.bf16.mxu0 %v5860
        %6094 = vmatpush1.bf16.msra.mxu0 %v5859
        %6095 = vmatprep.subr.bf16.mxu0 %v5856
        %6096 = vmatpush1.bf16.msra.mxu0 %v5855
        %6097 = vmatprep.subr.bf16.mxu0 %v5852
        %6098 = vmatpush1.bf16.msra.mxu0 %v5851
        %6099 = vmatprep.subr.bf16.mxu0 %v5848
        %6100 = vmatpush1.bf16.msra.mxu0 %v5847
        %6101 = vmatprep.subr.bf16.mxu0 %v5844
        %6102 = vmatpush1.bf16.msra.mxu0 %v5843
        %6103 = vmatprep.subr.bf16.mxu0 %v5840
        %6104 = vmatpush1.bf16.msra.mxu0 %v5839
        %6105 = vmatprep.subr.bf16.mxu0 %v5836
        %6106 = vmatpush1.bf16.msra.mxu0 %v5835
        %6107 = vmatprep.subr.bf16.mxu0 %v5896
        %6108 = vmatpush2.bf16.msra.mxu0 %v5895
        %6109 = vmatprep.subr.bf16.mxu0 %v5892
        %6110 = vmatpush2.bf16.msra.mxu0 %v5891
        %6111 = vmatprep.subr.bf16.mxu0 %v5888
        %6112 = vmatpush2.bf16.msra.mxu0 %v5887
        %6113 = vmatprep.subr.bf16.mxu0 %v5884
        %6114 = vmatpush2.bf16.msra.mxu0 %v5883
        %6115 = vmatprep.subr.bf16.mxu0 %v5880
        %6116 = vmatpush2.bf16.msra.mxu0 %v5879
        %6117 = vmatprep.subr.bf16.mxu0 %v5876
        %6118 = vmatpush2.bf16.msra.mxu0 %v5875
        %6119 = vmatprep.subr.bf16.mxu0 %v5872
        %6120 = vmatpush2.bf16.msra.mxu0 %v5871
        %6121 = vmatprep.subr.bf16.mxu0 %v5868
        %6122 = vmatpush2.bf16.msra.mxu0 %v5867
        %6123 = vmatprep.mubr.bf16.mxu0 %v5320
        %6124 = vmatmul.mubr.bf16.gmra.mxu0 %v5319
        %v6125 = vpop.f32.mrf.mxu0
        %v6126 = vadd.f32 %v459, %v6125
        %v6127 = vpop.f32.mrf.mxu0
        %v6128 = vadd.f32 %v460, %v6127
        %v6129 = vpop.f32.mrf.mxu0
        %v6130 = vpop.f32.mrf.mxu0
        %6131 = vdwg.mxu0
        %6132 = vmatprep.subr.bf16.mxu0 %v5928
        %6133 = vmatpush1.bf16.msra.mxu0 %v5927
        %6134 = vmatprep.subr.bf16.mxu0 %v5924
        %6135 = vmatpush1.bf16.msra.mxu0 %v5923
        %6136 = vmatprep.subr.bf16.mxu0 %v5920
        %6137 = vmatpush1.bf16.msra.mxu0 %v5919
        %6138 = vmatprep.subr.bf16.mxu0 %v5916
        %6139 = vmatpush1.bf16.msra.mxu0 %v5915
        %6140 = vmatprep.subr.bf16.mxu0 %v5912
        %6141 = vmatpush1.bf16.msra.mxu0 %v5911
        %6142 = vmatprep.subr.bf16.mxu0 %v5908
        %6143 = vmatpush1.bf16.msra.mxu0 %v5907
        %6144 = vmatprep.subr.bf16.mxu0 %v5904
        %6145 = vmatpush1.bf16.msra.mxu0 %v5903
        %6146 = vmatprep.subr.bf16.mxu0 %v5900
        %6147 = vmatpush1.bf16.msra.mxu0 %v5899
        %6148 = vmatprep.subr.bf16.mxu0 %v5960
        %6149 = vmatpush2.bf16.msra.mxu0 %v5959
        %6150 = vmatprep.subr.bf16.mxu0 %v5956
        %6151 = vmatpush2.bf16.msra.mxu0 %v5955
        %6152 = vmatprep.subr.bf16.mxu0 %v5952
        %6153 = vmatpush2.bf16.msra.mxu0 %v5951
        %6154 = vmatprep.subr.bf16.mxu0 %v5948
        %6155 = vmatpush2.bf16.msra.mxu0 %v5947
        %6156 = vmatprep.subr.bf16.mxu0 %v5944
        %6157 = vmatpush2.bf16.msra.mxu0 %v5943
        %6158 = vmatprep.subr.bf16.mxu0 %v5940
        %6159 = vmatpush2.bf16.msra.mxu0 %v5939
        %6160 = vmatprep.subr.bf16.mxu0 %v5936
        %6161 = vmatpush2.bf16.msra.mxu0 %v5935
        %6162 = vmatprep.subr.bf16.mxu0 %v5932
        %6163 = vmatpush2.bf16.msra.mxu0 %v5931
        %6164 = vmatprep.mubr.bf16.mxu0 %v5322
        %6165 = vmatmul.mubr.bf16.gmra.mxu0 %v5321
        %v6166 = vpop.f32.mrf.mxu0
        %v6167 = vadd.f32 %v6126, %v6166
        %v6168 = vpop.f32.mrf.mxu0
        %v6169 = vadd.f32 %v6128, %v6168
        %v6170 = vpop.f32.mrf.mxu0
        %v6171 = vpop.f32.mrf.mxu0
        %6172 = vdwg.mxu0
        %6173 = vmatprep.subr.bf16.mxu0 %v5866
        %6174 = vmatpush1.bf16.msra.mxu0 %v5865
        %6175 = vmatprep.subr.bf16.mxu0 %v5862
        %6176 = vmatpush1.bf16.msra.mxu0 %v5861
        %6177 = vmatprep.subr.bf16.mxu0 %v5858
        %6178 = vmatpush1.bf16.msra.mxu0 %v5857
        %6179 = vmatprep.subr.bf16.mxu0 %v5854
        %6180 = vmatpush1.bf16.msra.mxu0 %v5853
        %6181 = vmatprep.subr.bf16.mxu0 %v5850
        %6182 = vmatpush1.bf16.msra.mxu0 %v5849
        %6183 = vmatprep.subr.bf16.mxu0 %v5846
        %6184 = vmatpush1.bf16.msra.mxu0 %v5845
        %6185 = vmatprep.subr.bf16.mxu0 %v5842
        %6186 = vmatpush1.bf16.msra.mxu0 %v5841
        %6187 = vmatprep.subr.bf16.mxu0 %v5838
        %6188 = vmatpush1.bf16.msra.mxu0 %v5837
        %6189 = vmatprep.subr.bf16.mxu0 %v5898
        %6190 = vmatpush2.bf16.msra.mxu0 %v5897
        %6191 = vmatprep.subr.bf16.mxu0 %v5894
        %6192 = vmatpush2.bf16.msra.mxu0 %v5893
        %6193 = vmatprep.subr.bf16.mxu0 %v5890
        %6194 = vmatpush2.bf16.msra.mxu0 %v5889
        %6195 = vmatprep.subr.bf16.mxu0 %v5886
        %6196 = vmatpush2.bf16.msra.mxu0 %v5885
        %6197 = vmatprep.subr.bf16.mxu0 %v5882
        %6198 = vmatpush2.bf16.msra.mxu0 %v5881
        %6199 = vmatprep.subr.bf16.mxu0 %v5878
        %6200 = vmatpush2.bf16.msra.mxu0 %v5877
        %6201 = vmatprep.subr.bf16.mxu0 %v5874
        %6202 = vmatpush2.bf16.msra.mxu0 %v5873
        %6203 = vmatprep.subr.bf16.mxu0 %v5870
        %6204 = vmatpush2.bf16.msra.mxu0 %v5869
        %6205 = vmatprep.mubr.bf16.mxu0 %v5320
        %6206 = vmatmul.mubr.bf16.gmra.mxu0 %v5319
        %v6207 = vpop.f32.mrf.mxu0
        %v6208 = vadd.f32 %v461, %v6207
        %v6209 = vpop.f32.mrf.mxu0
        %v6210 = vadd.f32 %v462, %v6209
        %v6211 = vpop.f32.mrf.mxu0
        %v6212 = vpop.f32.mrf.mxu0
        %6213 = vdwg.mxu0
        %6214 = vmatprep.subr.bf16.mxu0 %v5930
        %6215 = vmatpush1.bf16.msra.mxu0 %v5929
        %6216 = vmatprep.subr.bf16.mxu0 %v5926
        %6217 = vmatpush1.bf16.msra.mxu0 %v5925
        %6218 = vmatprep.subr.bf16.mxu0 %v5922
        %6219 = vmatpush1.bf16.msra.mxu0 %v5921
        %6220 = vmatprep.subr.bf16.mxu0 %v5918
        %6221 = vmatpush1.bf16.msra.mxu0 %v5917
        %6222 = vmatprep.subr.bf16.mxu0 %v5914
        %6223 = vmatpush1.bf16.msra.mxu0 %v5913
        %6224 = vmatprep.subr.bf16.mxu0 %v5910
        %6225 = vmatpush1.bf16.msra.mxu0 %v5909
        %6226 = vmatprep.subr.bf16.mxu0 %v5906
        %6227 = vmatpush1.bf16.msra.mxu0 %v5905
        %6228 = vmatprep.subr.bf16.mxu0 %v5902
        %6229 = vmatpush1.bf16.msra.mxu0 %v5901
        %6230 = vmatprep.subr.bf16.mxu0 %v5962
        %6231 = vmatpush2.bf16.msra.mxu0 %v5961
        %6232 = vmatprep.subr.bf16.mxu0 %v5958
        %6233 = vmatpush2.bf16.msra.mxu0 %v5957
        %6234 = vmatprep.subr.bf16.mxu0 %v5954
        %6235 = vmatpush2.bf16.msra.mxu0 %v5953
        %6236 = vmatprep.subr.bf16.mxu0 %v5950
        %6237 = vmatpush2.bf16.msra.mxu0 %v5949
        %6238 = vmatprep.subr.bf16.mxu0 %v5946
        %6239 = vmatpush2.bf16.msra.mxu0 %v5945
        %6240 = vmatprep.subr.bf16.mxu0 %v5942
        %6241 = vmatpush2.bf16.msra.mxu0 %v5941
        %6242 = vmatprep.subr.bf16.mxu0 %v5938
        %6243 = vmatpush2.bf16.msra.mxu0 %v5937
        %6244 = vmatprep.subr.bf16.mxu0 %v5934
        %6245 = vmatpush2.bf16.msra.mxu0 %v5933
        %6246 = vmatprep.mubr.bf16.mxu0 %v5322
        %6247 = vmatmul.mubr.bf16.gmra.mxu0 %v5321
        %v6248 = vpop.f32.mrf.mxu0
        %v6249 = vadd.f32 %v6208, %v6248
        %v6250 = vpop.f32.mrf.mxu0
        %v6251 = vadd.f32 %v6210, %v6250
        %v6252 = vpop.f32.mrf.mxu0
        %v6253 = vpop.f32.mrf.mxu0
        %6254 = vdwg.mxu0
        %v6255 = vadd.f32 %v6167, %v6169
        %v6256 = vadd.f32 %v6255, %v6249
        %v6257 = vadd.f32 %v6256, %v6251
        %6258 = vadd.xlane.f32.xlu0 %v6257
        %v6259 = vpop.xlane.xlu0 %6258
        %v6260 = vrcp.pop 512.0
        %v6261 = vmul.f32 %v6259, %v6260
        %v6262 = vsub.f32 %v6167, %v6261
        %v6263 = vsub.f32 %v6169, %v6261
        %v6264 = vsub.f32 %v6249, %v6261
        %v6265 = vsub.f32 %v6251, %v6261
        %v6266 = vmul.f32 %v6262, %v6262
        %v6267 = vmul.f32 %v6263, %v6263
        %v6268 = vmul.f32 %v6264, %v6264
        %v6269 = vmul.f32 %v6265, %v6265
        %v6270 = vadd.f32 %v6266, %v6267
        %v6271 = vadd.f32 %v6270, %v6268
        %v6272 = vadd.f32 %v6271, %v6269
        %6273 = vadd.xlane.f32.xlu0 %v6272
        %v6274 = vpop.xlane.xlu0 %6273
        %v6275 = vmul.f32 %v6274, %v6260
        %v6276 = vadd.f32 %v6275, 1e-05
        %v6277 = vrsqrt.pop %v6276
        %v6278 = vmul.f32 %v6262, %v6277
        %v6279 = vmul.f32 %v6263, %v6277
        %v6280 = vmul.f32 %v6264, %v6277
        %v6281 = vmul.f32 %v6265, %v6277
        %6282 = vst [vmem:[%s441] sm:$0xff] %v6278
        %6283 = vst [vmem:[%s441 + $0x8] sm:$0xff] %v6279
        %6284 = vst [vmem:[%s441 + $0x10] sm:$0xff] %v6280
        %6285 = vst [vmem:[%s441 + $0x18] sm:$0xff] %v6281
        %s6286 = sand.u32 %s204, 1
        %s6287 = scalar_lea.sflag [#allocation4], %s6286
        %s6288 = sand.u32 %s204, 1
        %s6289 = smul.addr %s6288, 32
        %s6290 = scalar_lea.vmem [#allocation11], %s6289
        %s6291 = sand.u32 %s232, 1
        %s6292 = scalar_lea.sflag [#allocation13], %s6291
        %s6293 = sand.u32 %s232, 1
        %s6294 = smul.addr %s6293, 64
        %s6295 = scalar_lea.vmem [#allocation12], %s6294
        // Predicated region
        $region65: #{multi_head_attention.1} parent=43 // pred_check
          %p6296 = pneg %p214
        $region66: #{multi_head_attention.1} parent=43 // pred_check_branch
          %6298 = sbr.rel (%p6296) target = $region68
        $region67: #{multi_head_attention.1} parent=43 // pred_region
          %s6300 = ssub.s32 512, 512
          %6301 = vsyncadd %s6287, %s6300
          %s6302 = smul.addr %s37, 4
          %s6303 = smul.addr %s36, 4
          %s6304 = sadd.s32 %s6302, %s6303
          %s6305 = smul.addr %s6304, 128
          %s6306 = scalar_lea.hbm %s6, %s6305
          %s6308 = sshll.u32 %s6290, 4
          %s6309 = int_to_ptr.vmem [resolvable:$true] %s6308
          %6311 = dma.vmem_to_hbm [thread:$0]  %s6309, 512, %s6306, %s6287
        $region68: #{multi_head_attention.1} parent=43 // pred_fallthru
          _
        // Predicated region
        $region69: #{multi_head_attention.1} parent=43 // pred_check
          %p6312 = pneg %p242
        $region70: #{multi_head_attention.1} parent=43 // pred_check_branch
          %6314 = sbr.rel (%p6312) target = $region72
        $region71: #{multi_head_attention.1} parent=43 // pred_region
          %s6316 = ssub.s32 1024, 1024
          %6317 = vsyncadd %s6292, %s6316
          %s6318 = smul.addr %s36, 8
          %s6319 = sadd.s32 %s37, %s6318
          %s6320 = smul.addr %s6319, 128
          %s6321 = scalar_lea.hbm %s7, %s6320
          %s6322 = sshll.u32 %s6295, 4
          %s6323 = int_to_ptr.vmem [resolvable:$true] %s6322
          %6328 = dma.vmem_to_hbm [thread:$0]  %s6323, 1024, %s6321, %s6292, 128, 128, 8
        $region72: #{multi_head_attention.1} parent=43 // pred_fallthru
          _
      $region44: #{multi_head_attention.1} parent=5 // pred_fallthru
        _
      %p6329 = scmp.le.s32.totalorder 2, %s27
      // Predicated region
      $region73: #{multi_head_attention.1} parent=5 // pred_check
        %p6330 = pneg %p6329
      $region74: #{multi_head_attention.1} parent=5 // pred_check_branch
        %6332 = sbr.rel (%p6330) target = $region76
      $region75: #{multi_head_attention.1} parent=5 // pred_region
        %s6333 = ssub.s32 %s27, 2
        // Predicated region
        $region77: #{multi_head_attention.1} parent=75 // pred_check
          %p6334 = pneg %p220
        $region78: #{multi_head_attention.1} parent=75 // pred_check_branch
          %6336 = sbr.rel (%p6334) target = $region80
        $region79: #{multi_head_attention.1} parent=75 // pred_region
          %s6337 = sand.u32 %s205, 1
          %s6338 = scalar_lea.sflag [#allocation4], %s6337
          %s6339 = sand.u32 %s205, 1
          %s6340 = smul.addr %s6339, 32
          %s6341 = scalar_lea.vmem [#allocation11], %s6340
          %6342 = dma.done %s6338, 512
        $region80: #{multi_head_attention.1} parent=75 // pred_fallthru
          _
        // Predicated region
        $region81: #{multi_head_attention.1} parent=75 // pred_check
          %p6343 = pneg %p248
        $region82: #{multi_head_attention.1} parent=75 // pred_check_branch
          %6345 = sbr.rel (%p6343) target = $region84
        $region83: #{multi_head_attention.1} parent=75 // pred_region
          %s6346 = sand.u32 %s233, 1
          %s6347 = scalar_lea.sflag [#allocation13], %s6346
          %s6348 = sand.u32 %s233, 1
          %s6349 = smul.addr %s6348, 64
          %s6350 = scalar_lea.vmem [#allocation12], %s6349
          %6351 = dma.done %s6347, 1024
        $region84: #{multi_head_attention.1} parent=75 // pred_fallthru
          _
      $region76: #{multi_head_attention.1} parent=5 // pred_fallthru
        _
    $region6: #{multi_head_attention.1} parent=1 // loop_footer
      %s31 = sadd.s32 1, %s27
    $region7: #{multi_head_attention.1} parent=1 // loop_footer_branch
      %26 = sbr.rel target = $region3
    $region8: #{multi_head_attention.1} parent=1 // loop_exit
      _
    %6352 = vsyncpa [#allocation3], 1
    %s6353 = scalar_lea.sflag [#allocation3], 1
    %6354 = vsyncpa %s6353, 1
    %6355 = vsyncpa [#allocation6], 1
    %s6356 = scalar_lea.sflag [#allocation6], 1
    %6357 = vsyncpa %s6356, 1
    %6358 = vsyncpa [#allocation9], 1
    %6359 = vsyncpa [#allocation4], 1
    %s6360 = scalar_lea.sflag [#allocation4], 1
    %6361 = vsyncpa %s6360, 1
    %6362 = vsyncpa [#allocation13], 1
    %s6363 = scalar_lea.sflag [#allocation13], 1
    %6364 = vsyncpa %s6363, 1

</llo_original>
